<compile_context>
chip_gen: v7x
topology: tpu7x:2x2x1
jax: 0.10.0
libtpu: 0.0.40
codegen_flags: <defaults>
</compile_context>

<pallas_src>
import jax
import jax.numpy as jnp
from jax.experimental import pallas as pl
from jax.experimental.pallas import tpu as pltpu


def _make_kernel(H, W, C):
    """Fused conv5x5(Cin=1)+BN+ReLU -> conv3x3+BN+ReLU kernel for one image."""

    def kernel(x_ref, w1_ref, b1_ref, w2_ref, b2_ref, o_ref, y1p_ref):
        # x_ref : (1, H+4, W+4, C)  input, channel-replicated (Cin == 1)
        # w1_ref: (25, C)           conv1 weights [tap, cout], BN1 scale folded
        # b1_ref: (1, 1, C)         conv1 + BN1 folded bias
        # w2_ref: (9, C, C)         conv2 weights [tap, cout, cin], BN2 scale folded
        # b2_ref: (C, 1)            conv2 + BN2 folded bias
        # o_ref : (1, C, H*W)       output, channel-major (== flattened NCHW)
        # y1p_ref: (H+2, W+2, C)    zero-padded layer-1 activation (VMEM scratch)

        # ---- layer 1: 5x5 conv (Cin=1) as 25 shifted VPU MACs + bias + ReLU ----
        acc1 = jnp.zeros((H, W, C), jnp.float32)
        for t in range(25):
            dy, dx = divmod(t, 5)
            xs = x_ref[0, dy:dy + H, dx:dx + W, :]          # (H, W, C)
            acc1 = acc1 + xs * w1_ref[t]                    # (C,) lane broadcast
        y1 = jnp.maximum(acc1 + b1_ref[...], 0.0)           # (H, W, C)

        # ---- stage y1 into a zero-padded VMEM scratch for the 3x3 window ----
        y1p_ref[...] = jnp.zeros_like(y1p_ref)
        y1p_ref[1:H + 1, 1:W + 1, :] = y1

        # ---- layer 2: 3x3 conv as 9 MXU matmuls over the channel axis ----
        acc2 = jnp.zeros((C, H * W), jnp.float32)
        for t in range(9):
            dy, dx = divmod(t, 3)
            slab = y1p_ref[dy:dy + H, dx:dx + W, :]         # (H, W, C)
            slab2d = slab.reshape(H * W, C)                 # collapse leading dims
            # (Cout, Cin) contracted with (M, Cin) -> (Cout, M)
            acc2 = acc2 + jax.lax.dot_general(
                w2_ref[t], slab2d,
                dimension_numbers=(((1,), (1,)), ((), ())),
                preferred_element_type=jnp.float32)
        # bias + ReLU; lane-dense (H*W wide) store, already NCHW ordered.
        o_ref[0] = jnp.maximum(acc2 + b2_ref[...], 0.0)

    return kernel


def downsampling1_forward(x, params, eps=1e-5):
    """x: [N, 1, H, W] f32 (NCHW) -> [N, 32, H, W] f32 (NCHW)."""
    N, Cin, H, W = x.shape
    assert Cin == 1
    C = 32

    # Fold eval-mode BatchNorm into the conv weights / bias.
    s1 = params["g1"] / jnp.sqrt(params["rv1"] + eps)
    bias1 = (params["b1"] - params["rm1"]) * s1 + params["beta1"]
    s2 = params["g2"] / jnp.sqrt(params["rv2"] + eps)
    bias2 = (params["b2"] - params["rm2"]) * s2 + params["beta2"]

    w1f = (params["w1"].reshape(C, 25) * s1[:, None]).T            # (25, C)
    w2f = params["w2"] * s2[:, None, None, None]                   # (Cout, Cin, 3, 3)
    w2f = w2f.transpose(2, 3, 0, 1).reshape(9, C, C)               # (9, Cout, Cin)

    # Pad spatially for the 5x5 / pad=2 conv and replicate the single input
    # channel onto the lane axis (keeps every in-kernel op lane-aligned).
    xp = jnp.pad(x[:, 0, :, :], ((0, 0), (2, 2), (2, 2)))          # (N, H+4, W+4)
    x_rep = jnp.broadcast_to(xp[..., None], (N, H + 4, W + 4, C))

    kernel = _make_kernel(H, W, C)
    out = pl.pallas_call(
        kernel,
        out_shape=jax.ShapeDtypeStruct((N, C, H * W), jnp.float32),
        grid=(N,),
        in_specs=[
            pl.BlockSpec((1, H + 4, W + 4, C), lambda n: (n, 0, 0, 0)),
            pl.BlockSpec((25, C), lambda n: (0, 0)),         # VMEM-resident
            pl.BlockSpec((1, 1, C), lambda n: (0, 0, 0)),    # VMEM-resident
            pl.BlockSpec((9, C, C), lambda n: (0, 0, 0)),    # VMEM-resident
            pl.BlockSpec((C, 1), lambda n: (0, 0)),          # VMEM-resident
        ],
        out_specs=pl.BlockSpec((1, C, H * W), lambda n: (n, 0, 0)),
        scratch_shapes=[pltpu.VMEM((H + 2, W + 2, C), jnp.float32)],
        compiler_params=pltpu.CompilerParams(dimension_semantics=("parallel",)),
    )(x_rep, w1f, bias1.reshape(1, 1, C), w2f, bias2.reshape(C, 1))

    # Channel-major [N, C, H*W] is already NCHW: pure reshape, no transpose.
    return out.reshape(N, C, H, W)


def _ref_forward(x, params, eps=1e-5):
    """Plain-JAX reference (eval-mode BN), for a numerical sanity check."""
    dn = ("NCHW", "OIHW", "NCHW")
    hp = jax.lax.Precision.HIGHEST
    y = jax.lax.conv_general_dilated(x, params["w1"], (1, 1), ((2, 2), (2, 2)),
                                     dimension_numbers=dn, precision=hp)
    y = y + params["b1"][None, :, None, None]
    y = ((y - params["rm1"][None, :, None, None])
         * (params["g1"] / jnp.sqrt(params["rv1"] + eps))[None, :, None, None]
         + params["beta1"][None, :, None, None])
    y = jnp.maximum(y, 0.0)
    y = jax.lax.conv_general_dilated(y, params["w2"], (1, 1), ((1, 1), (1, 1)),
                                     dimension_numbers=dn, precision=hp)
    y = y + params["b2"][None, :, None, None]
    y = ((y - params["rm2"][None, :, None, None])
         * (params["g2"] / jnp.sqrt(params["rv2"] + eps))[None, :, None, None]
         + params["beta2"][None, :, None, None])
    return jnp.maximum(y, 0.0)


def init_params(key):
    k = jax.random.split(key, 4)
    p = {}
    # conv1: Conv2d(1, 32, kernel_size=5)
    fan1 = 1 * 5 * 5
    p["w1"] = jax.random.uniform(k[0], (32, 1, 5, 5), jnp.float32,
                                 -1.0 / jnp.sqrt(fan1), 1.0 / jnp.sqrt(fan1))
    p["b1"] = jax.random.uniform(k[1], (32,), jnp.float32,
                                 -1.0 / jnp.sqrt(fan1), 1.0 / jnp.sqrt(fan1))
    # bn1: BatchNorm2d(32) (eval-mode running stats)
    p["g1"] = jnp.ones((32,), jnp.float32)
    p["beta1"] = jnp.zeros((32,), jnp.float32)
    p["rm1"] = jnp.zeros((32,), jnp.float32)
    p["rv1"] = jnp.ones((32,), jnp.float32)
    # conv2: Conv2d(32, 32, kernel_size=3)
    fan2 = 32 * 3 * 3
    p["w2"] = jax.random.uniform(k[2], (32, 32, 3, 3), jnp.float32,
                                 -1.0 / jnp.sqrt(fan2), 1.0 / jnp.sqrt(fan2))
    p["b2"] = jax.random.uniform(k[3], (32,), jnp.float32,
                                 -1.0 / jnp.sqrt(fan2), 1.0 / jnp.sqrt(fan2))
    # bn2
    p["g2"] = jnp.ones((32,), jnp.float32)
    p["beta2"] = jnp.zeros((32,), jnp.float32)
    p["rm2"] = jnp.zeros((32,), jnp.float32)
    p["rv2"] = jnp.ones((32,), jnp.float32)
    return p


if __name__ == "__main__":
    key = jax.random.PRNGKey(0)
    kx, kp = jax.random.split(key)
    x = jax.random.normal(kx, (2, 1, 16, 16), dtype=jnp.float32)  # NCHW, Cin=1
    params = init_params(kp)

    out = jax.jit(downsampling1_forward)(x, params)
    out = jax.block_until_ready(out)
    assert out.shape == (2, 32, 16, 16), out.shape
    assert jnp.all(out >= 0.0)  # ReLU output

    ref = _ref_forward(x, params)
    err = float(jnp.max(jnp.abs(out - ref)))
    assert err < 2e-2, f"max abs err vs reference: {err}"
    print("KERNEL_OK")
</pallas_src>

<mosaic_0001>
module attributes {stable_mosaic.version = 11 : i64} {
  func.func @kernel(%arg0: i32, %arg1: memref<1x20x20x32xf32, #tpu.memory_space<vmem>>, %arg2: memref<25x32xf32, #tpu.memory_space<vmem>>, %arg3: memref<1x1x32xf32, #tpu.memory_space<vmem>>, %arg4: memref<9x32x32xf32, #tpu.memory_space<vmem>>, %arg5: memref<32x1xf32, #tpu.memory_space<vmem>>, %arg6: memref<1x32x256xf32, #tpu.memory_space<vmem>>, %arg7: memref<18x18x32xf32, #tpu.memory_space<vmem>>) attributes {dimension_semantics = [#tpu.dimension_semantics<parallel>], iteration_bounds = array<i64: 2>, scalar_prefetch = 0 : i64, scratch_operands = 1 : i64, tpu.core_type = #tpu.core_type<tc>, window_params = [{transform_indices = @transform_0, window_bounds = array<i64: 1, 20, 20, 32>}, {pipeline_mode = #tpu.pipeline_mode<synchronous>, transform_indices = @transform_1, window_bounds = array<i64: 25, 32>}, {pipeline_mode = #tpu.pipeline_mode<synchronous>, transform_indices = @transform_2, window_bounds = array<i64: 1, 1, 32>}, {pipeline_mode = #tpu.pipeline_mode<synchronous>, transform_indices = @transform_3, window_bounds = array<i64: 9, 32, 32>}, {pipeline_mode = #tpu.pipeline_mode<synchronous>, transform_indices = @transform_4, window_bounds = array<i64: 32, 1>}, {transform_indices = @transform_5, window_bounds = array<i64: 1, 32, 256>}]} {
    %cst = arith.constant 0.000000e+00 : f32
    %0 = vector.broadcast %cst : f32 to vector<16x16x32xf32>
    %c0 = arith.constant 0 : index
    %c0_0 = arith.constant 0 : index
    %c0_1 = arith.constant 0 : index
    %c0_2 = arith.constant 0 : index
    %1 = vector.load %arg1[%c0, %c0_0, %c0_1, %c0_2] : memref<1x20x20x32xf32, #tpu.memory_space<vmem>>, vector<1x16x16x32xf32>
    %2 = vector.shape_cast %1 : vector<1x16x16x32xf32> to vector<16x16x32xf32>
    %c0_3 = arith.constant 0 : index
    %c0_4 = arith.constant 0 : index
    %3 = vector.load %arg2[%c0_3, %c0_4] : memref<25x32xf32, #tpu.memory_space<vmem>>, vector<1x32xf32>
    %4 = vector.shape_cast %3 : vector<1x32xf32> to vector<32xf32>
    %5 = vector.shape_cast %4 : vector<32xf32> to vector<1x1x32xf32>
    %6 = vector.broadcast %5 : vector<1x1x32xf32> to vector<16x16x32xf32>
    %7 = arith.mulf %2, %6 : vector<16x16x32xf32>
    %8 = arith.addf %0, %7 : vector<16x16x32xf32>
    %c0_5 = arith.constant 0 : index
    %c0_6 = arith.constant 0 : index
    %c1 = arith.constant 1 : index
    %c0_7 = arith.constant 0 : index
    %9 = vector.load %arg1[%c0_5, %c0_6, %c1, %c0_7] : memref<1x20x20x32xf32, #tpu.memory_space<vmem>>, vector<1x16x16x32xf32>
    %10 = vector.shape_cast %9 : vector<1x16x16x32xf32> to vector<16x16x32xf32>
    %c1_8 = arith.constant 1 : index
    %c0_9 = arith.constant 0 : index
    %11 = vector.load %arg2[%c1_8, %c0_9] : memref<25x32xf32, #tpu.memory_space<vmem>>, vector<1x32xf32>
    %12 = vector.shape_cast %11 : vector<1x32xf32> to vector<32xf32>
    %13 = vector.shape_cast %12 : vector<32xf32> to vector<1x1x32xf32>
    %14 = vector.broadcast %13 : vector<1x1x32xf32> to vector<16x16x32xf32>
    %15 = arith.mulf %10, %14 : vector<16x16x32xf32>
    %16 = arith.addf %8, %15 : vector<16x16x32xf32>
    %c0_10 = arith.constant 0 : index
    %c0_11 = arith.constant 0 : index
    %c2 = arith.constant 2 : index
    %c0_12 = arith.constant 0 : index
    %17 = vector.load %arg1[%c0_10, %c0_11, %c2, %c0_12] : memref<1x20x20x32xf32, #tpu.memory_space<vmem>>, vector<1x16x16x32xf32>
    %18 = vector.shape_cast %17 : vector<1x16x16x32xf32> to vector<16x16x32xf32>
    %c2_13 = arith.constant 2 : index
    %c0_14 = arith.constant 0 : index
    %19 = vector.load %arg2[%c2_13, %c0_14] : memref<25x32xf32, #tpu.memory_space<vmem>>, vector<1x32xf32>
    %20 = vector.shape_cast %19 : vector<1x32xf32> to vector<32xf32>
    %21 = vector.shape_cast %20 : vector<32xf32> to vector<1x1x32xf32>
    %22 = vector.broadcast %21 : vector<1x1x32xf32> to vector<16x16x32xf32>
    %23 = arith.mulf %18, %22 : vector<16x16x32xf32>
    %24 = arith.addf %16, %23 : vector<16x16x32xf32>
    %c0_15 = arith.constant 0 : index
    %c0_16 = arith.constant 0 : index
    %c3 = arith.constant 3 : index
    %c0_17 = arith.constant 0 : index
    %25 = vector.load %arg1[%c0_15, %c0_16, %c3, %c0_17] : memref<1x20x20x32xf32, #tpu.memory_space<vmem>>, vector<1x16x16x32xf32>
    %26 = vector.shape_cast %25 : vector<1x16x16x32xf32> to vector<16x16x32xf32>
    %c3_18 = arith.constant 3 : index
    %c0_19 = arith.constant 0 : index
    %27 = vector.load %arg2[%c3_18, %c0_19] : memref<25x32xf32, #tpu.memory_space<vmem>>, vector<1x32xf32>
    %28 = vector.shape_cast %27 : vector<1x32xf32> to vector<32xf32>
    %29 = vector.shape_cast %28 : vector<32xf32> to vector<1x1x32xf32>
    %30 = vector.broadcast %29 : vector<1x1x32xf32> to vector<16x16x32xf32>
    %31 = arith.mulf %26, %30 : vector<16x16x32xf32>
    %32 = arith.addf %24, %31 : vector<16x16x32xf32>
    %c0_20 = arith.constant 0 : index
    %c0_21 = arith.constant 0 : index
    %c4 = arith.constant 4 : index
    %c0_22 = arith.constant 0 : index
    %33 = vector.load %arg1[%c0_20, %c0_21, %c4, %c0_22] : memref<1x20x20x32xf32, #tpu.memory_space<vmem>>, vector<1x16x16x32xf32>
    %34 = vector.shape_cast %33 : vector<1x16x16x32xf32> to vector<16x16x32xf32>
    %c4_23 = arith.constant 4 : index
    %c0_24 = arith.constant 0 : index
    %35 = vector.load %arg2[%c4_23, %c0_24] : memref<25x32xf32, #tpu.memory_space<vmem>>, vector<1x32xf32>
    %36 = vector.shape_cast %35 : vector<1x32xf32> to vector<32xf32>
    %37 = vector.shape_cast %36 : vector<32xf32> to vector<1x1x32xf32>
    %38 = vector.broadcast %37 : vector<1x1x32xf32> to vector<16x16x32xf32>
    %39 = arith.mulf %34, %38 : vector<16x16x32xf32>
    %40 = arith.addf %32, %39 : vector<16x16x32xf32>
    %c0_25 = arith.constant 0 : index
    %c1_26 = arith.constant 1 : index
    %c0_27 = arith.constant 0 : index
    %c0_28 = arith.constant 0 : index
    %41 = vector.load %arg1[%c0_25, %c1_26, %c0_27, %c0_28] : memref<1x20x20x32xf32, #tpu.memory_space<vmem>>, vector<1x16x16x32xf32>
    %42 = vector.shape_cast %41 : vector<1x16x16x32xf32> to vector<16x16x32xf32>
    %c5 = arith.constant 5 : index
    %c0_29 = arith.constant 0 : index
    %43 = vector.load %arg2[%c5, %c0_29] : memref<25x32xf32, #tpu.memory_space<vmem>>, vector<1x32xf32>
    %44 = vector.shape_cast %43 : vector<1x32xf32> to vector<32xf32>
    %45 = vector.shape_cast %44 : vector<32xf32> to vector<1x1x32xf32>
    %46 = vector.broadcast %45 : vector<1x1x32xf32> to vector<16x16x32xf32>
    %47 = arith.mulf %42, %46 : vector<16x16x32xf32>
    %48 = arith.addf %40, %47 : vector<16x16x32xf32>
    %c0_30 = arith.constant 0 : index
    %c1_31 = arith.constant 1 : index
    %c1_32 = arith.constant 1 : index
    %c0_33 = arith.constant 0 : index
    %49 = vector.load %arg1[%c0_30, %c1_31, %c1_32, %c0_33] : memref<1x20x20x32xf32, #tpu.memory_space<vmem>>, vector<1x16x16x32xf32>
    %50 = vector.shape_cast %49 : vector<1x16x16x32xf32> to vector<16x16x32xf32>
    %c6 = arith.constant 6 : index
    %c0_34 = arith.constant 0 : index
    %51 = vector.load %arg2[%c6, %c0_34] : memref<25x32xf32, #tpu.memory_space<vmem>>, vector<1x32xf32>
    %52 = vector.shape_cast %51 : vector<1x32xf32> to vector<32xf32>
    %53 = vector.shape_cast %52 : vector<32xf32> to vector<1x1x32xf32>
    %54 = vector.broadcast %53 : vector<1x1x32xf32> to vector<16x16x32xf32>
    %55 = arith.mulf %50, %54 : vector<16x16x32xf32>
    %56 = arith.addf %48, %55 : vector<16x16x32xf32>
    %c0_35 = arith.constant 0 : index
    %c1_36 = arith.constant 1 : index
    %c2_37 = arith.constant 2 : index
    %c0_38 = arith.constant 0 : index
    %57 = vector.load %arg1[%c0_35, %c1_36, %c2_37, %c0_38] : memref<1x20x20x32xf32, #tpu.memory_space<vmem>>, vector<1x16x16x32xf32>
    %58 = vector.shape_cast %57 : vector<1x16x16x32xf32> to vector<16x16x32xf32>
    %c7 = arith.constant 7 : index
    %c0_39 = arith.constant 0 : index
    %59 = vector.load %arg2[%c7, %c0_39] : memref<25x32xf32, #tpu.memory_space<vmem>>, vector<1x32xf32>
    %60 = vector.shape_cast %59 : vector<1x32xf32> to vector<32xf32>
    %61 = vector.shape_cast %60 : vector<32xf32> to vector<1x1x32xf32>
    %62 = vector.broadcast %61 : vector<1x1x32xf32> to vector<16x16x32xf32>
    %63 = arith.mulf %58, %62 : vector<16x16x32xf32>
    %64 = arith.addf %56, %63 : vector<16x16x32xf32>
    %c0_40 = arith.constant 0 : index
    %c1_41 = arith.constant 1 : index
    %c3_42 = arith.constant 3 : index
    %c0_43 = arith.constant 0 : index
    %65 = vector.load %arg1[%c0_40, %c1_41, %c3_42, %c0_43] : memref<1x20x20x32xf32, #tpu.memory_space<vmem>>, vector<1x16x16x32xf32>
    %66 = vector.shape_cast %65 : vector<1x16x16x32xf32> to vector<16x16x32xf32>
    %c8 = arith.constant 8 : index
    %c0_44 = arith.constant 0 : index
    %67 = vector.load %arg2[%c8, %c0_44] : memref<25x32xf32, #tpu.memory_space<vmem>>, vector<1x32xf32>
    %68 = vector.shape_cast %67 : vector<1x32xf32> to vector<32xf32>
    %69 = vector.shape_cast %68 : vector<32xf32> to vector<1x1x32xf32>
    %70 = vector.broadcast %69 : vector<1x1x32xf32> to vector<16x16x32xf32>
    %71 = arith.mulf %66, %70 : vector<16x16x32xf32>
    %72 = arith.addf %64, %71 : vector<16x16x32xf32>
    %c0_45 = arith.constant 0 : index
    %c1_46 = arith.constant 1 : index
    %c4_47 = arith.constant 4 : index
    %c0_48 = arith.constant 0 : index
    %73 = vector.load %arg1[%c0_45, %c1_46, %c4_47, %c0_48] : memref<1x20x20x32xf32, #tpu.memory_space<vmem>>, vector<1x16x16x32xf32>
    %74 = vector.shape_cast %73 : vector<1x16x16x32xf32> to vector<16x16x32xf32>
    %c9 = arith.constant 9 : index
    %c0_49 = arith.constant 0 : index
    %75 = vector.load %arg2[%c9, %c0_49] : memref<25x32xf32, #tpu.memory_space<vmem>>, vector<1x32xf32>
    %76 = vector.shape_cast %75 : vector<1x32xf32> to vector<32xf32>
    %77 = vector.shape_cast %76 : vector<32xf32> to vector<1x1x32xf32>
    %78 = vector.broadcast %77 : vector<1x1x32xf32> to vector<16x16x32xf32>
    %79 = arith.mulf %74, %78 : vector<16x16x32xf32>
    %80 = arith.addf %72, %79 : vector<16x16x32xf32>
    %c0_50 = arith.constant 0 : index
    %c2_51 = arith.constant 2 : index
    %c0_52 = arith.constant 0 : index
    %c0_53 = arith.constant 0 : index
    %81 = vector.load %arg1[%c0_50, %c2_51, %c0_52, %c0_53] : memref<1x20x20x32xf32, #tpu.memory_space<vmem>>, vector<1x16x16x32xf32>
    %82 = vector.shape_cast %81 : vector<1x16x16x32xf32> to vector<16x16x32xf32>
    %c10 = arith.constant 10 : index
    %c0_54 = arith.constant 0 : index
    %83 = vector.load %arg2[%c10, %c0_54] : memref<25x32xf32, #tpu.memory_space<vmem>>, vector<1x32xf32>
    %84 = vector.shape_cast %83 : vector<1x32xf32> to vector<32xf32>
    %85 = vector.shape_cast %84 : vector<32xf32> to vector<1x1x32xf32>
    %86 = vector.broadcast %85 : vector<1x1x32xf32> to vector<16x16x32xf32>
    %87 = arith.mulf %82, %86 : vector<16x16x32xf32>
    %88 = arith.addf %80, %87 : vector<16x16x32xf32>
    %c0_55 = arith.constant 0 : index
    %c2_56 = arith.constant 2 : index
    %c1_57 = arith.constant 1 : index
    %c0_58 = arith.constant 0 : index
    %89 = vector.load %arg1[%c0_55, %c2_56, %c1_57, %c0_58] : memref<1x20x20x32xf32, #tpu.memory_space<vmem>>, vector<1x16x16x32xf32>
    %90 = vector.shape_cast %89 : vector<1x16x16x32xf32> to vector<16x16x32xf32>
    %c11 = arith.constant 11 : index
    %c0_59 = arith.constant 0 : index
    %91 = vector.load %arg2[%c11, %c0_59] : memref<25x32xf32, #tpu.memory_space<vmem>>, vector<1x32xf32>
    %92 = vector.shape_cast %91 : vector<1x32xf32> to vector<32xf32>
    %93 = vector.shape_cast %92 : vector<32xf32> to vector<1x1x32xf32>
    %94 = vector.broadcast %93 : vector<1x1x32xf32> to vector<16x16x32xf32>
    %95 = arith.mulf %90, %94 : vector<16x16x32xf32>
    %96 = arith.addf %88, %95 : vector<16x16x32xf32>
    %c0_60 = arith.constant 0 : index
    %c2_61 = arith.constant 2 : index
    %c2_62 = arith.constant 2 : index
    %c0_63 = arith.constant 0 : index
    %97 = vector.load %arg1[%c0_60, %c2_61, %c2_62, %c0_63] : memref<1x20x20x32xf32, #tpu.memory_space<vmem>>, vector<1x16x16x32xf32>
    %98 = vector.shape_cast %97 : vector<1x16x16x32xf32> to vector<16x16x32xf32>
    %c12 = arith.constant 12 : index
    %c0_64 = arith.constant 0 : index
    %99 = vector.load %arg2[%c12, %c0_64] : memref<25x32xf32, #tpu.memory_space<vmem>>, vector<1x32xf32>
    %100 = vector.shape_cast %99 : vector<1x32xf32> to vector<32xf32>
    %101 = vector.shape_cast %100 : vector<32xf32> to vector<1x1x32xf32>
    %102 = vector.broadcast %101 : vector<1x1x32xf32> to vector<16x16x32xf32>
    %103 = arith.mulf %98, %102 : vector<16x16x32xf32>
    %104 = arith.addf %96, %103 : vector<16x16x32xf32>
    %c0_65 = arith.constant 0 : index
    %c2_66 = arith.constant 2 : index
    %c3_67 = arith.constant 3 : index
    %c0_68 = arith.constant 0 : index
    %105 = vector.load %arg1[%c0_65, %c2_66, %c3_67, %c0_68] : memref<1x20x20x32xf32, #tpu.memory_space<vmem>>, vector<1x16x16x32xf32>
    %106 = vector.shape_cast %105 : vector<1x16x16x32xf32> to vector<16x16x32xf32>
    %c13 = arith.constant 13 : index
    %c0_69 = arith.constant 0 : index
    %107 = vector.load %arg2[%c13, %c0_69] : memref<25x32xf32, #tpu.memory_space<vmem>>, vector<1x32xf32>
    %108 = vector.shape_cast %107 : vector<1x32xf32> to vector<32xf32>
    %109 = vector.shape_cast %108 : vector<32xf32> to vector<1x1x32xf32>
    %110 = vector.broadcast %109 : vector<1x1x32xf32> to vector<16x16x32xf32>
    %111 = arith.mulf %106, %110 : vector<16x16x32xf32>
    %112 = arith.addf %104, %111 : vector<16x16x32xf32>
    %c0_70 = arith.constant 0 : index
    %c2_71 = arith.constant 2 : index
    %c4_72 = arith.constant 4 : index
    %c0_73 = arith.constant 0 : index
    %113 = vector.load %arg1[%c0_70, %c2_71, %c4_72, %c0_73] : memref<1x20x20x32xf32, #tpu.memory_space<vmem>>, vector<1x16x16x32xf32>
    %114 = vector.shape_cast %113 : vector<1x16x16x32xf32> to vector<16x16x32xf32>
    %c14 = arith.constant 14 : index
    %c0_74 = arith.constant 0 : index
    %115 = vector.load %arg2[%c14, %c0_74] : memref<25x32xf32, #tpu.memory_space<vmem>>, vector<1x32xf32>
    %116 = vector.shape_cast %115 : vector<1x32xf32> to vector<32xf32>
    %117 = vector.shape_cast %116 : vector<32xf32> to vector<1x1x32xf32>
    %118 = vector.broadcast %117 : vector<1x1x32xf32> to vector<16x16x32xf32>
    %119 = arith.mulf %114, %118 : vector<16x16x32xf32>
    %120 = arith.addf %112, %119 : vector<16x16x32xf32>
    %c0_75 = arith.constant 0 : index
    %c3_76 = arith.constant 3 : index
    %c0_77 = arith.constant 0 : index
    %c0_78 = arith.constant 0 : index
    %121 = vector.load %arg1[%c0_75, %c3_76, %c0_77, %c0_78] : memref<1x20x20x32xf32, #tpu.memory_space<vmem>>, vector<1x16x16x32xf32>
    %122 = vector.shape_cast %121 : vector<1x16x16x32xf32> to vector<16x16x32xf32>
    %c15 = arith.constant 15 : index
    %c0_79 = arith.constant 0 : index
    %123 = vector.load %arg2[%c15, %c0_79] : memref<25x32xf32, #tpu.memory_space<vmem>>, vector<1x32xf32>
    %124 = vector.shape_cast %123 : vector<1x32xf32> to vector<32xf32>
    %125 = vector.shape_cast %124 : vector<32xf32> to vector<1x1x32xf32>
    %126 = vector.broadcast %125 : vector<1x1x32xf32> to vector<16x16x32xf32>
    %127 = arith.mulf %122, %126 : vector<16x16x32xf32>
    %128 = arith.addf %120, %127 : vector<16x16x32xf32>
    %c0_80 = arith.constant 0 : index
    %c3_81 = arith.constant 3 : index
    %c1_82 = arith.constant 1 : index
    %c0_83 = arith.constant 0 : index
    %129 = vector.load %arg1[%c0_80, %c3_81, %c1_82, %c0_83] : memref<1x20x20x32xf32, #tpu.memory_space<vmem>>, vector<1x16x16x32xf32>
    %130 = vector.shape_cast %129 : vector<1x16x16x32xf32> to vector<16x16x32xf32>
    %c16 = arith.constant 16 : index
    %c0_84 = arith.constant 0 : index
    %131 = vector.load %arg2[%c16, %c0_84] : memref<25x32xf32, #tpu.memory_space<vmem>>, vector<1x32xf32>
    %132 = vector.shape_cast %131 : vector<1x32xf32> to vector<32xf32>
    %133 = vector.shape_cast %132 : vector<32xf32> to vector<1x1x32xf32>
    %134 = vector.broadcast %133 : vector<1x1x32xf32> to vector<16x16x32xf32>
    %135 = arith.mulf %130, %134 : vector<16x16x32xf32>
    %136 = arith.addf %128, %135 : vector<16x16x32xf32>
    %c0_85 = arith.constant 0 : index
    %c3_86 = arith.constant 3 : index
    %c2_87 = arith.constant 2 : index
    %c0_88 = arith.constant 0 : index
    %137 = vector.load %arg1[%c0_85, %c3_86, %c2_87, %c0_88] : memref<1x20x20x32xf32, #tpu.memory_space<vmem>>, vector<1x16x16x32xf32>
    %138 = vector.shape_cast %137 : vector<1x16x16x32xf32> to vector<16x16x32xf32>
    %c17 = arith.constant 17 : index
    %c0_89 = arith.constant 0 : index
    %139 = vector.load %arg2[%c17, %c0_89] : memref<25x32xf32, #tpu.memory_space<vmem>>, vector<1x32xf32>
    %140 = vector.shape_cast %139 : vector<1x32xf32> to vector<32xf32>
    %141 = vector.shape_cast %140 : vector<32xf32> to vector<1x1x32xf32>
    %142 = vector.broadcast %141 : vector<1x1x32xf32> to vector<16x16x32xf32>
    %143 = arith.mulf %138, %142 : vector<16x16x32xf32>
    %144 = arith.addf %136, %143 : vector<16x16x32xf32>
    %c0_90 = arith.constant 0 : index
    %c3_91 = arith.constant 3 : index
    %c3_92 = arith.constant 3 : index
    %c0_93 = arith.constant 0 : index
    %145 = vector.load %arg1[%c0_90, %c3_91, %c3_92, %c0_93] : memref<1x20x20x32xf32, #tpu.memory_space<vmem>>, vector<1x16x16x32xf32>
    %146 = vector.shape_cast %145 : vector<1x16x16x32xf32> to vector<16x16x32xf32>
    %c18 = arith.constant 18 : index
    %c0_94 = arith.constant 0 : index
    %147 = vector.load %arg2[%c18, %c0_94] : memref<25x32xf32, #tpu.memory_space<vmem>>, vector<1x32xf32>
    %148 = vector.shape_cast %147 : vector<1x32xf32> to vector<32xf32>
    %149 = vector.shape_cast %148 : vector<32xf32> to vector<1x1x32xf32>
    %150 = vector.broadcast %149 : vector<1x1x32xf32> to vector<16x16x32xf32>
    %151 = arith.mulf %146, %150 : vector<16x16x32xf32>
    %152 = arith.addf %144, %151 : vector<16x16x32xf32>
    %c0_95 = arith.constant 0 : index
    %c3_96 = arith.constant 3 : index
    %c4_97 = arith.constant 4 : index
    %c0_98 = arith.constant 0 : index
    %153 = vector.load %arg1[%c0_95, %c3_96, %c4_97, %c0_98] : memref<1x20x20x32xf32, #tpu.memory_space<vmem>>, vector<1x16x16x32xf32>
    %154 = vector.shape_cast %153 : vector<1x16x16x32xf32> to vector<16x16x32xf32>
    %c19 = arith.constant 19 : index
    %c0_99 = arith.constant 0 : index
    %155 = vector.load %arg2[%c19, %c0_99] : memref<25x32xf32, #tpu.memory_space<vmem>>, vector<1x32xf32>
    %156 = vector.shape_cast %155 : vector<1x32xf32> to vector<32xf32>
    %157 = vector.shape_cast %156 : vector<32xf32> to vector<1x1x32xf32>
    %158 = vector.broadcast %157 : vector<1x1x32xf32> to vector<16x16x32xf32>
    %159 = arith.mulf %154, %158 : vector<16x16x32xf32>
    %160 = arith.addf %152, %159 : vector<16x16x32xf32>
    %c0_100 = arith.constant 0 : index
    %c4_101 = arith.constant 4 : index
    %c0_102 = arith.constant 0 : index
    %c0_103 = arith.constant 0 : index
    %161 = vector.load %arg1[%c0_100, %c4_101, %c0_102, %c0_103] : memref<1x20x20x32xf32, #tpu.memory_space<vmem>>, vector<1x16x16x32xf32>
    %162 = vector.shape_cast %161 : vector<1x16x16x32xf32> to vector<16x16x32xf32>
    %c20 = arith.constant 20 : index
    %c0_104 = arith.constant 0 : index
    %163 = vector.load %arg2[%c20, %c0_104] : memref<25x32xf32, #tpu.memory_space<vmem>>, vector<1x32xf32>
    %164 = vector.shape_cast %163 : vector<1x32xf32> to vector<32xf32>
    %165 = vector.shape_cast %164 : vector<32xf32> to vector<1x1x32xf32>
    %166 = vector.broadcast %165 : vector<1x1x32xf32> to vector<16x16x32xf32>
    %167 = arith.mulf %162, %166 : vector<16x16x32xf32>
    %168 = arith.addf %160, %167 : vector<16x16x32xf32>
    %c0_105 = arith.constant 0 : index
    %c4_106 = arith.constant 4 : index
    %c1_107 = arith.constant 1 : index
    %c0_108 = arith.constant 0 : index
    %169 = vector.load %arg1[%c0_105, %c4_106, %c1_107, %c0_108] : memref<1x20x20x32xf32, #tpu.memory_space<vmem>>, vector<1x16x16x32xf32>
    %170 = vector.shape_cast %169 : vector<1x16x16x32xf32> to vector<16x16x32xf32>
    %c21 = arith.constant 21 : index
    %c0_109 = arith.constant 0 : index
    %171 = vector.load %arg2[%c21, %c0_109] : memref<25x32xf32, #tpu.memory_space<vmem>>, vector<1x32xf32>
    %172 = vector.shape_cast %171 : vector<1x32xf32> to vector<32xf32>
    %173 = vector.shape_cast %172 : vector<32xf32> to vector<1x1x32xf32>
    %174 = vector.broadcast %173 : vector<1x1x32xf32> to vector<16x16x32xf32>
    %175 = arith.mulf %170, %174 : vector<16x16x32xf32>
    %176 = arith.addf %168, %175 : vector<16x16x32xf32>
    %c0_110 = arith.constant 0 : index
    %c4_111 = arith.constant 4 : index
    %c2_112 = arith.constant 2 : index
    %c0_113 = arith.constant 0 : index
    %177 = vector.load %arg1[%c0_110, %c4_111, %c2_112, %c0_113] : memref<1x20x20x32xf32, #tpu.memory_space<vmem>>, vector<1x16x16x32xf32>
    %178 = vector.shape_cast %177 : vector<1x16x16x32xf32> to vector<16x16x32xf32>
    %c22 = arith.constant 22 : index
    %c0_114 = arith.constant 0 : index
    %179 = vector.load %arg2[%c22, %c0_114] : memref<25x32xf32, #tpu.memory_space<vmem>>, vector<1x32xf32>
    %180 = vector.shape_cast %179 : vector<1x32xf32> to vector<32xf32>
    %181 = vector.shape_cast %180 : vector<32xf32> to vector<1x1x32xf32>
    %182 = vector.broadcast %181 : vector<1x1x32xf32> to vector<16x16x32xf32>
    %183 = arith.mulf %178, %182 : vector<16x16x32xf32>
    %184 = arith.addf %176, %183 : vector<16x16x32xf32>
    %c0_115 = arith.constant 0 : index
    %c4_116 = arith.constant 4 : index
    %c3_117 = arith.constant 3 : index
    %c0_118 = arith.constant 0 : index
    %185 = vector.load %arg1[%c0_115, %c4_116, %c3_117, %c0_118] : memref<1x20x20x32xf32, #tpu.memory_space<vmem>>, vector<1x16x16x32xf32>
    %186 = vector.shape_cast %185 : vector<1x16x16x32xf32> to vector<16x16x32xf32>
    %c23 = arith.constant 23 : index
    %c0_119 = arith.constant 0 : index
    %187 = vector.load %arg2[%c23, %c0_119] : memref<25x32xf32, #tpu.memory_space<vmem>>, vector<1x32xf32>
    %188 = vector.shape_cast %187 : vector<1x32xf32> to vector<32xf32>
    %189 = vector.shape_cast %188 : vector<32xf32> to vector<1x1x32xf32>
    %190 = vector.broadcast %189 : vector<1x1x32xf32> to vector<16x16x32xf32>
    %191 = arith.mulf %186, %190 : vector<16x16x32xf32>
    %192 = arith.addf %184, %191 : vector<16x16x32xf32>
    %c0_120 = arith.constant 0 : index
    %c4_121 = arith.constant 4 : index
    %c4_122 = arith.constant 4 : index
    %c0_123 = arith.constant 0 : index
    %193 = vector.load %arg1[%c0_120, %c4_121, %c4_122, %c0_123] : memref<1x20x20x32xf32, #tpu.memory_space<vmem>>, vector<1x16x16x32xf32>
    %194 = vector.shape_cast %193 : vector<1x16x16x32xf32> to vector<16x16x32xf32>
    %c24 = arith.constant 24 : index
    %c0_124 = arith.constant 0 : index
    %195 = vector.load %arg2[%c24, %c0_124] : memref<25x32xf32, #tpu.memory_space<vmem>>, vector<1x32xf32>
    %196 = vector.shape_cast %195 : vector<1x32xf32> to vector<32xf32>
    %197 = vector.shape_cast %196 : vector<32xf32> to vector<1x1x32xf32>
    %198 = vector.broadcast %197 : vector<1x1x32xf32> to vector<16x16x32xf32>
    %199 = arith.mulf %194, %198 : vector<16x16x32xf32>
    %200 = arith.addf %192, %199 : vector<16x16x32xf32>
    %c0_125 = arith.constant 0 : index
    %c0_126 = arith.constant 0 : index
    %c0_127 = arith.constant 0 : index
    %201 = vector.load %arg3[%c0_125, %c0_126, %c0_127] : memref<1x1x32xf32, #tpu.memory_space<vmem>>, vector<1x1x32xf32>
    %202 = vector.broadcast %201 : vector<1x1x32xf32> to vector<16x16x32xf32>
    %203 = arith.addf %200, %202 : vector<16x16x32xf32>
    %cst_128 = arith.constant 0.000000e+00 : f32
    %204 = vector.broadcast %cst_128 : f32 to vector<16x16x32xf32>
    %205 = arith.maximumf %203, %204 : vector<16x16x32xf32>
    %cst_129 = arith.constant 0.000000e+00 : f32
    %206 = vector.broadcast %cst_129 : f32 to vector<18x18x32xf32>
    %c0_130 = arith.constant 0 : index
    %c0_131 = arith.constant 0 : index
    %c0_132 = arith.constant 0 : index
    %207 = vector.load %arg7[%c0_130, %c0_131, %c0_132] : memref<18x18x32xf32, #tpu.memory_space<vmem>>, vector<18x18x32xf32>
    tpu.vector_store %arg7[%c0_130, %c0_131, %c0_132], %206 {strides = array<i32>} : memref<18x18x32xf32, #tpu.memory_space<vmem>>, vector<18x18x32xf32>,
    %c1_133 = arith.constant 1 : index
    %c1_134 = arith.constant 1 : index
    %c0_135 = arith.constant 0 : index
    %208 = vector.load %arg7[%c1_133, %c1_134, %c0_135] : memref<18x18x32xf32, #tpu.memory_space<vmem>>, vector<16x16x32xf32>
    tpu.vector_store %arg7[%c1_133, %c1_134, %c0_135], %205 {strides = array<i32>} : memref<18x18x32xf32, #tpu.memory_space<vmem>>, vector<16x16x32xf32>,
    %cst_136 = arith.constant 0.000000e+00 : f32
    %209 = vector.broadcast %cst_136 : f32 to vector<32x256xf32>
    %c0_137 = arith.constant 0 : index
    %c0_138 = arith.constant 0 : index
    %c0_139 = arith.constant 0 : index
    %210 = vector.load %arg7[%c0_137, %c0_138, %c0_139] : memref<18x18x32xf32, #tpu.memory_space<vmem>>, vector<16x16x32xf32>
    %211 = vector.shape_cast %210 : vector<16x16x32xf32> to vector<256x32xf32>
    %c0_140 = arith.constant 0 : index
    %c0_141 = arith.constant 0 : index
    %c0_142 = arith.constant 0 : index
    %212 = vector.load %arg4[%c0_140, %c0_141, %c0_142] : memref<9x32x32xf32, #tpu.memory_space<vmem>>, vector<1x32x32xf32>
    %213 = vector.shape_cast %212 : vector<1x32x32xf32> to vector<32x32xf32>
    %cst_143 = arith.constant dense<0.000000e+00> : vector<32x256xf32>
    %214 = tpu.matmul %213, %211, %cst_143 {dimension_numbers = #tpu.dot_dimension_numbers<[1], [1], [0], [0], [0, 0, 1, 0], [], []>} : vector<32x32xf32>, vector<256x32xf32>, vector<32x256xf32> -> vector<32x256xf32>
    %215 = arith.addf %209, %214 : vector<32x256xf32>
    %c0_144 = arith.constant 0 : index
    %c1_145 = arith.constant 1 : index
    %c0_146 = arith.constant 0 : index
    %216 = vector.load %arg7[%c0_144, %c1_145, %c0_146] : memref<18x18x32xf32, #tpu.memory_space<vmem>>, vector<16x16x32xf32>
    %217 = vector.shape_cast %216 : vector<16x16x32xf32> to vector<256x32xf32>
    %c1_147 = arith.constant 1 : index
    %c0_148 = arith.constant 0 : index
    %c0_149 = arith.constant 0 : index
    %218 = vector.load %arg4[%c1_147, %c0_148, %c0_149] : memref<9x32x32xf32, #tpu.memory_space<vmem>>, vector<1x32x32xf32>
    %219 = vector.shape_cast %218 : vector<1x32x32xf32> to vector<32x32xf32>
    %cst_150 = arith.constant dense<0.000000e+00> : vector<32x256xf32>
    %220 = tpu.matmul %219, %217, %cst_150 {dimension_numbers = #tpu.dot_dimension_numbers<[1], [1], [0], [0], [0, 0, 1, 0], [], []>} : vector<32x32xf32>, vector<256x32xf32>, vector<32x256xf32> -> vector<32x256xf32>
    %221 = arith.addf %215, %220 : vector<32x256xf32>
    %c0_151 = arith.constant 0 : index
    %c2_152 = arith.constant 2 : index
    %c0_153 = arith.constant 0 : index
    %222 = vector.load %arg7[%c0_151, %c2_152, %c0_153] : memref<18x18x32xf32, #tpu.memory_space<vmem>>, vector<16x16x32xf32>
    %223 = vector.shape_cast %222 : vector<16x16x32xf32> to vector<256x32xf32>
    %c2_154 = arith.constant 2 : index
    %c0_155 = arith.constant 0 : index
    %c0_156 = arith.constant 0 : index
    %224 = vector.load %arg4[%c2_154, %c0_155, %c0_156] : memref<9x32x32xf32, #tpu.memory_space<vmem>>, vector<1x32x32xf32>
    %225 = vector.shape_cast %224 : vector<1x32x32xf32> to vector<32x32xf32>
    %cst_157 = arith.constant dense<0.000000e+00> : vector<32x256xf32>
    %226 = tpu.matmul %225, %223, %cst_157 {dimension_numbers = #tpu.dot_dimension_numbers<[1], [1], [0], [0], [0, 0, 1, 0], [], []>} : vector<32x32xf32>, vector<256x32xf32>, vector<32x256xf32> -> vector<32x256xf32>
    %227 = arith.addf %221, %226 : vector<32x256xf32>
    %c1_158 = arith.constant 1 : index
    %c0_159 = arith.constant 0 : index
    %c0_160 = arith.constant 0 : index
    %228 = vector.load %arg7[%c1_158, %c0_159, %c0_160] : memref<18x18x32xf32, #tpu.memory_space<vmem>>, vector<16x16x32xf32>
    %229 = vector.shape_cast %228 : vector<16x16x32xf32> to vector<256x32xf32>
    %c3_161 = arith.constant 3 : index
    %c0_162 = arith.constant 0 : index
    %c0_163 = arith.constant 0 : index
    %230 = vector.load %arg4[%c3_161, %c0_162, %c0_163] : memref<9x32x32xf32, #tpu.memory_space<vmem>>, vector<1x32x32xf32>
    %231 = vector.shape_cast %230 : vector<1x32x32xf32> to vector<32x32xf32>
    %cst_164 = arith.constant dense<0.000000e+00> : vector<32x256xf32>
    %232 = tpu.matmul %231, %229, %cst_164 {dimension_numbers = #tpu.dot_dimension_numbers<[1], [1], [0], [0], [0, 0, 1, 0], [], []>} : vector<32x32xf32>, vector<256x32xf32>, vector<32x256xf32> -> vector<32x256xf32>
    %233 = arith.addf %227, %232 : vector<32x256xf32>
    %c1_165 = arith.constant 1 : index
    %c1_166 = arith.constant 1 : index
    %c0_167 = arith.constant 0 : index
    %234 = vector.load %arg7[%c1_165, %c1_166, %c0_167] : memref<18x18x32xf32, #tpu.memory_space<vmem>>, vector<16x16x32xf32>
    %235 = vector.shape_cast %234 : vector<16x16x32xf32> to vector<256x32xf32>
    %c4_168 = arith.constant 4 : index
    %c0_169 = arith.constant 0 : index
    %c0_170 = arith.constant 0 : index
    %236 = vector.load %arg4[%c4_168, %c0_169, %c0_170] : memref<9x32x32xf32, #tpu.memory_space<vmem>>, vector<1x32x32xf32>
    %237 = vector.shape_cast %236 : vector<1x32x32xf32> to vector<32x32xf32>
    %cst_171 = arith.constant dense<0.000000e+00> : vector<32x256xf32>
    %238 = tpu.matmul %237, %235, %cst_171 {dimension_numbers = #tpu.dot_dimension_numbers<[1], [1], [0], [0], [0, 0, 1, 0], [], []>} : vector<32x32xf32>, vector<256x32xf32>, vector<32x256xf32> -> vector<32x256xf32>
    %239 = arith.addf %233, %238 : vector<32x256xf32>
    %c1_172 = arith.constant 1 : index
    %c2_173 = arith.constant 2 : index
    %c0_174 = arith.constant 0 : index
    %240 = vector.load %arg7[%c1_172, %c2_173, %c0_174] : memref<18x18x32xf32, #tpu.memory_space<vmem>>, vector<16x16x32xf32>
    %241 = vector.shape_cast %240 : vector<16x16x32xf32> to vector<256x32xf32>
    %c5_175 = arith.constant 5 : index
    %c0_176 = arith.constant 0 : index
    %c0_177 = arith.constant 0 : index
    %242 = vector.load %arg4[%c5_175, %c0_176, %c0_177] : memref<9x32x32xf32, #tpu.memory_space<vmem>>, vector<1x32x32xf32>
    %243 = vector.shape_cast %242 : vector<1x32x32xf32> to vector<32x32xf32>
    %cst_178 = arith.constant dense<0.000000e+00> : vector<32x256xf32>
    %244 = tpu.matmul %243, %241, %cst_178 {dimension_numbers = #tpu.dot_dimension_numbers<[1], [1], [0], [0], [0, 0, 1, 0], [], []>} : vector<32x32xf32>, vector<256x32xf32>, vector<32x256xf32> -> vector<32x256xf32>
    %245 = arith.addf %239, %244 : vector<32x256xf32>
    %c2_179 = arith.constant 2 : index
    %c0_180 = arith.constant 0 : index
    %c0_181 = arith.constant 0 : index
    %246 = vector.load %arg7[%c2_179, %c0_180, %c0_181] : memref<18x18x32xf32, #tpu.memory_space<vmem>>, vector<16x16x32xf32>
    %247 = vector.shape_cast %246 : vector<16x16x32xf32> to vector<256x32xf32>
    %c6_182 = arith.constant 6 : index
    %c0_183 = arith.constant 0 : index
    %c0_184 = arith.constant 0 : index
    %248 = vector.load %arg4[%c6_182, %c0_183, %c0_184] : memref<9x32x32xf32, #tpu.memory_space<vmem>>, vector<1x32x32xf32>
    %249 = vector.shape_cast %248 : vector<1x32x32xf32> to vector<32x32xf32>
    %cst_185 = arith.constant dense<0.000000e+00> : vector<32x256xf32>
    %250 = tpu.matmul %249, %247, %cst_185 {dimension_numbers = #tpu.dot_dimension_numbers<[1], [1], [0], [0], [0, 0, 1, 0], [], []>} : vector<32x32xf32>, vector<256x32xf32>, vector<32x256xf32> -> vector<32x256xf32>
    %251 = arith.addf %245, %250 : vector<32x256xf32>
    %c2_186 = arith.constant 2 : index
    %c1_187 = arith.constant 1 : index
    %c0_188 = arith.constant 0 : index
    %252 = vector.load %arg7[%c2_186, %c1_187, %c0_188] : memref<18x18x32xf32, #tpu.memory_space<vmem>>, vector<16x16x32xf32>
    %253 = vector.shape_cast %252 : vector<16x16x32xf32> to vector<256x32xf32>
    %c7_189 = arith.constant 7 : index
    %c0_190 = arith.constant 0 : index
    %c0_191 = arith.constant 0 : index
    %254 = vector.load %arg4[%c7_189, %c0_190, %c0_191] : memref<9x32x32xf32, #tpu.memory_space<vmem>>, vector<1x32x32xf32>
    %255 = vector.shape_cast %254 : vector<1x32x32xf32> to vector<32x32xf32>
    %cst_192 = arith.constant dense<0.000000e+00> : vector<32x256xf32>
    %256 = tpu.matmul %255, %253, %cst_192 {dimension_numbers = #tpu.dot_dimension_numbers<[1], [1], [0], [0], [0, 0, 1, 0], [], []>} : vector<32x32xf32>, vector<256x32xf32>, vector<32x256xf32> -> vector<32x256xf32>
    %257 = arith.addf %251, %256 : vector<32x256xf32>
    %c2_193 = arith.constant 2 : index
    %c2_194 = arith.constant 2 : index
    %c0_195 = arith.constant 0 : index
    %258 = vector.load %arg7[%c2_193, %c2_194, %c0_195] : memref<18x18x32xf32, #tpu.memory_space<vmem>>, vector<16x16x32xf32>
    %259 = vector.shape_cast %258 : vector<16x16x32xf32> to vector<256x32xf32>
    %c8_196 = arith.constant 8 : index
    %c0_197 = arith.constant 0 : index
    %c0_198 = arith.constant 0 : index
    %260 = vector.load %arg4[%c8_196, %c0_197, %c0_198] : memref<9x32x32xf32, #tpu.memory_space<vmem>>, vector<1x32x32xf32>
    %261 = vector.shape_cast %260 : vector<1x32x32xf32> to vector<32x32xf32>
    %cst_199 = arith.constant dense<0.000000e+00> : vector<32x256xf32>
    %262 = tpu.matmul %261, %259, %cst_199 {dimension_numbers = #tpu.dot_dimension_numbers<[1], [1], [0], [0], [0, 0, 1, 0], [], []>} : vector<32x32xf32>, vector<256x32xf32>, vector<32x256xf32> -> vector<32x256xf32>
    %263 = arith.addf %257, %262 : vector<32x256xf32>
    %c0_200 = arith.constant 0 : index
    %c0_201 = arith.constant 0 : index
    %264 = vector.load %arg5[%c0_200, %c0_201] : memref<32x1xf32, #tpu.memory_space<vmem>>, vector<32x1xf32>
    %265 = vector.broadcast %264 : vector<32x1xf32> to vector<32x256xf32>
    %266 = arith.addf %263, %265 : vector<32x256xf32>
    %cst_202 = arith.constant 0.000000e+00 : f32
    %267 = vector.broadcast %cst_202 : f32 to vector<32x256xf32>
    %268 = arith.maximumf %266, %267 : vector<32x256xf32>
    %c0_203 = arith.constant 0 : index
    %c0_204 = arith.constant 0 : index
    %c0_205 = arith.constant 0 : index
    %269 = vector.load %arg6[%c0_203, %c0_204, %c0_205] : memref<1x32x256xf32, #tpu.memory_space<vmem>>, vector<1x32x256xf32>
    %270 = vector.shape_cast %269 : vector<1x32x256xf32> to vector<32x256xf32>
    %271 = vector.shape_cast %268 : vector<32x256xf32> to vector<1x32x256xf32>
    tpu.vector_store %arg6[%c0_203, %c0_204, %c0_205], %271 {strides = array<i32>} : memref<1x32x256xf32, #tpu.memory_space<vmem>>, vector<1x32x256xf32>,
    return
  }
  func.func @transform_0(%arg0: i32) -> (i32, i32, i32, i32) {
    %c0_i32 = arith.constant 0 : i32
    %c0_i32_0 = arith.constant 0 : i32
    %c0_i32_1 = arith.constant 0 : i32
    %c0_i32_2 = arith.constant 0 : i32
    return %arg0, %c0_i32, %c0_i32_0, %c0_i32_1 : i32, i32, i32, i32
  }
  func.func @transform_1(%arg0: i32) -> (i32, i32) {
    %c0_i32 = arith.constant 0 : i32
    %c0_i32_0 = arith.constant 0 : i32
    %c0_i32_1 = arith.constant 0 : i32
    return %c0_i32, %c0_i32_0 : i32, i32
  }
  func.func @transform_2(%arg0: i32) -> (i32, i32, i32) {
    %c0_i32 = arith.constant 0 : i32
    %c0_i32_0 = arith.constant 0 : i32
    %c0_i32_1 = arith.constant 0 : i32
    %c0_i32_2 = arith.constant 0 : i32
    return %c0_i32, %c0_i32_0, %c0_i32_1 : i32, i32, i32
  }
  func.func @transform_3(%arg0: i32) -> (i32, i32, i32) {
    %c0_i32 = arith.constant 0 : i32
    %c0_i32_0 = arith.constant 0 : i32
    %c0_i32_1 = arith.constant 0 : i32
    %c0_i32_2 = arith.constant 0 : i32
    return %c0_i32, %c0_i32_0, %c0_i32_1 : i32, i32, i32
  }
  func.func @transform_4(%arg0: i32) -> (i32, i32) {
    %c0_i32 = arith.constant 0 : i32
    %c0_i32_0 = arith.constant 0 : i32
    %c0_i32_1 = arith.constant 0 : i32
    return %c0_i32, %c0_i32_0 : i32, i32
  }
  func.func @transform_5(%arg0: i32) -> (i32, i32, i32) {
    %c0_i32 = arith.constant 0 : i32
    %c0_i32_0 = arith.constant 0 : i32
    %c0_i32_1 = arith.constant 0 : i32
    return %arg0, %c0_i32, %c0_i32_0 : i32, i32, i32
  }
}

</mosaic_0001>

<llo_original>
// kernel: downsampling1_forward.1
$region0: #{downsampling1_forward.1}
  #allocation0 [shape = 'u32[]', space=smem, size = 0x4, offset = 0x4, fixed_abs, tag = 'smem constant byte address 0x4 - core index']
  #allocation1 [shape = 'u32[144,128]{1,0:T(1,128)}', space=vmem, size = 0x12000, scoped, tag = 'internal scratch']
  #allocation2 [shape = 'f32[18,18,32]{2,1,0:T(8,128)}', space=vmem, size = 0x36000, scoped, tag = 'scratch operand']
  %s0 = inlined_call_operand.vmem [shape: f32[2,20,20,32], index: 0, kind: input, shape index: {}]
  %s1 = inlined_call_operand.vmem [shape: f32[25,32], index: 1, kind: input, shape index: {}]
  %s2 = inlined_call_operand.vmem [shape: f32[1,1,32], index: 2, kind: input, shape index: {}]
  %s3 = inlined_call_operand.vmem [shape: f32[9,32,32], index: 3, kind: input, shape index: {}]
  %s4 = inlined_call_operand.vmem [shape: f32[32,1], index: 4, kind: input, shape index: {}]
  %s5 = inlined_call_operand.vmem [shape: f32[2,32,256], index: 5, kind: output, shape index: {}]
  %s6 = sld [smem:[#allocation0]]
  $region53: #{downsampling1_forward.1} parent=0
    _
  %s8 = ssub.s32 1, %s6
  %s9 = scalar_select 0, %s8, %s6
  loop: start=0, step=1, limit=4
  $region2: #{downsampling1_forward.1} parent=0 // loop_pre_header
    _
  $region3: #{downsampling1_forward.1} parent=0 // loop_header
    %s11 = sphi 0, %s15
    %p12 = scmp.ge.s32.totalorder %s11, 4
    %s21 = sphi 0, %s23
    %s24 = sphi 0, %s21
    %s25 = sphi 0, %s24
    %s41 = sphi 0, %s25
    %s45 = sphi 0, %s45
    %s47 = sphi 0, %s45
    %s48 = sphi 0, %s47
    %s62 = sphi 0, %s48
    %s66 = sphi 0, %s66
    %s68 = sphi 0, %s66
    %s69 = sphi 0, %s68
    %s83 = sphi 0, %s69
    %s87 = sphi 0, %s87
    %s89 = sphi 0, %s87
    %s90 = sphi 0, %s89
    %s104 = sphi 0, %s90
    %s108 = sphi 0, %s108
    %s110 = sphi 0, %s108
    %s111 = sphi 0, %s110
    %s125 = sphi 0, %s111
    %s131 = sphi 0, %s133
    %s134 = sphi 0, %s131
    %s135 = sphi 0, %s134
    %s151 = sphi 0, %s135
  $region4: #{downsampling1_forward.1} parent=0 // loop_header_branch
    %14 = sbr.rel (%p12) target = $region8
  $region5: #{downsampling1_forward.1} parent=0 // loop_body
    %s16 = ssub.s32 %s11, 1
    %s17 = ssub.s32 %s11, 2
    %s18 = sadd.s32 %s11, 1
    %s19 = ssub.s32 %s11, %s18
    %p20 = scmp.eq.s32.totalorder %s19, 0
    %s22 = sadd.s32 %s21, 1
    %s23 = scalar_select %p20, %s21, %s22
    %p26 = pneg %p20
    %p27 = scmp.eq.s32.totalorder %s11, 1
    %p28 = por %p26, %p27
    %p29 = scmp.ne.s32.totalorder %s21, %s24
    %p30 = scmp.eq.s32.totalorder %s11, 0
    %p31 = por %p29, %p30
    %p32 = scmp.ne.s32.totalorder %s21, %s24
    %p33 = scmp.eq.s32.totalorder %s16, 1
    %p34 = por %p32, %p33
    %p35 = scmp.ne.s32.totalorder %s24, %s25
    %p36 = scmp.eq.s32.totalorder %s16, 0
    %p37 = por %p35, %p36
    %p38 = scmp.ne.s32.totalorder %s24, %s25
    %p39 = scmp.eq.s32.totalorder %s17, 1
    %p40 = por %p38, %p39
    %p42 = scmp.ne.s32.totalorder %s25, %s41
    %p43 = scmp.eq.s32.totalorder %s17, 0
    %p44 = por %p42, %p43
    %s46 = sadd.s32 %s45, 1
    %p49 = scmp.eq.s32.totalorder %s11, 1
    %p50 = scmp.ne.s32.totalorder %s45, %s47
    %p51 = scmp.eq.s32.totalorder %s11, 0
    %p52 = por %p50, %p51
    %p53 = scmp.ne.s32.totalorder %s45, %s47
    %p54 = scmp.eq.s32.totalorder %s16, 1
    %p55 = por %p53, %p54
    %p56 = scmp.ne.s32.totalorder %s47, %s48
    %p57 = scmp.eq.s32.totalorder %s16, 0
    %p58 = por %p56, %p57
    %p59 = scmp.ne.s32.totalorder %s47, %s48
    %p60 = scmp.eq.s32.totalorder %s17, 1
    %p61 = por %p59, %p60
    %p63 = scmp.ne.s32.totalorder %s48, %s62
    %p64 = scmp.eq.s32.totalorder %s17, 0
    %p65 = por %p63, %p64
    %s67 = sadd.s32 %s66, 1
    %p70 = scmp.eq.s32.totalorder %s11, 1
    %p71 = scmp.ne.s32.totalorder %s66, %s68
    %p72 = scmp.eq.s32.totalorder %s11, 0
    %p73 = por %p71, %p72
    %p74 = scmp.ne.s32.totalorder %s66, %s68
    %p75 = scmp.eq.s32.totalorder %s16, 1
    %p76 = por %p74, %p75
    %p77 = scmp.ne.s32.totalorder %s68, %s69
    %p78 = scmp.eq.s32.totalorder %s16, 0
    %p79 = por %p77, %p78
    %p80 = scmp.ne.s32.totalorder %s68, %s69
    %p81 = scmp.eq.s32.totalorder %s17, 1
    %p82 = por %p80, %p81
    %p84 = scmp.ne.s32.totalorder %s69, %s83
    %p85 = scmp.eq.s32.totalorder %s17, 0
    %p86 = por %p84, %p85
    %s88 = sadd.s32 %s87, 1
    %p91 = scmp.eq.s32.totalorder %s11, 1
    %p92 = scmp.ne.s32.totalorder %s87, %s89
    %p93 = scmp.eq.s32.totalorder %s11, 0
    %p94 = por %p92, %p93
    %p95 = scmp.ne.s32.totalorder %s87, %s89
    %p96 = scmp.eq.s32.totalorder %s16, 1
    %p97 = por %p95, %p96
    %p98 = scmp.ne.s32.totalorder %s89, %s90
    %p99 = scmp.eq.s32.totalorder %s16, 0
    %p100 = por %p98, %p99
    %p101 = scmp.ne.s32.totalorder %s89, %s90
    %p102 = scmp.eq.s32.totalorder %s17, 1
    %p103 = por %p101, %p102
    %p105 = scmp.ne.s32.totalorder %s90, %s104
    %p106 = scmp.eq.s32.totalorder %s17, 0
    %p107 = por %p105, %p106
    %s109 = sadd.s32 %s108, 1
    %p112 = scmp.eq.s32.totalorder %s11, 1
    %p113 = scmp.ne.s32.totalorder %s108, %s110
    %p114 = scmp.eq.s32.totalorder %s11, 0
    %p115 = por %p113, %p114
    %p116 = scmp.ne.s32.totalorder %s108, %s110
    %p117 = scmp.eq.s32.totalorder %s16, 1
    %p118 = por %p116, %p117
    %p119 = scmp.ne.s32.totalorder %s110, %s111
    %p120 = scmp.eq.s32.totalorder %s16, 0
    %p121 = por %p119, %p120
    %p122 = scmp.ne.s32.totalorder %s110, %s111
    %p123 = scmp.eq.s32.totalorder %s17, 1
    %p124 = por %p122, %p123
    %p126 = scmp.ne.s32.totalorder %s111, %s125
    %p127 = scmp.eq.s32.totalorder %s17, 0
    %p128 = por %p126, %p127
    %s129 = ssub.s32 %s11, %s18
    %p130 = scmp.eq.s32.totalorder %s129, 0
    %s132 = sadd.s32 %s131, 1
    %s133 = scalar_select %p130, %s131, %s132
    %p136 = pneg %p130
    %p137 = scmp.eq.s32.totalorder %s11, 1
    %p138 = por %p136, %p137
    %p139 = scmp.ne.s32.totalorder %s131, %s134
    %p140 = scmp.eq.s32.totalorder %s11, 0
    %p141 = por %p139, %p140
    %p142 = scmp.ne.s32.totalorder %s131, %s134
    %p143 = scmp.eq.s32.totalorder %s16, 1
    %p144 = por %p142, %p143
    %p145 = scmp.ne.s32.totalorder %s134, %s135
    %p146 = scmp.eq.s32.totalorder %s16, 0
    %p147 = por %p145, %p146
    %p148 = scmp.ne.s32.totalorder %s134, %s135
    %p149 = scmp.eq.s32.totalorder %s17, 1
    %p150 = por %p148, %p149
    %p152 = scmp.ne.s32.totalorder %s135, %s151
    %p153 = scmp.eq.s32.totalorder %s17, 0
    %p154 = por %p152, %p153
    %p155 = scmp.le.s32.totalorder 1, %s11
    %p156 = scmp.lt.s32.totalorder %s11, 3
    %p157 = pnand %p155, %p156
    %p158 = pneg %p157
    // Predicated region
    $region9: #{downsampling1_forward.1} parent=5 // pred_check
      _
    $region10: #{downsampling1_forward.1} parent=5 // pred_check_branch
      %160 = sbr.rel (%p157) target = $region12
    $region11: #{downsampling1_forward.1} parent=5 // pred_region
      %s161 = ssub.s32 %s11, 1
      // Predicated region
      $region13: #{downsampling1_forward.1} parent=11 // pred_check
        %p162 = pneg %p58
      $region14: #{downsampling1_forward.1} parent=11 // pred_check_branch
        %164 = sbr.rel (%p162) target = $region16
      $region15: #{downsampling1_forward.1} parent=11 // pred_region
        _
      $region16: #{downsampling1_forward.1} parent=11 // pred_fallthru
        _
      // Predicated region
      $region17: #{downsampling1_forward.1} parent=11 // pred_check
        %p165 = pneg %p79
      $region18: #{downsampling1_forward.1} parent=11 // pred_check_branch
        %167 = sbr.rel (%p165) target = $region20
      $region19: #{downsampling1_forward.1} parent=11 // pred_region
        _
      $region20: #{downsampling1_forward.1} parent=11 // pred_fallthru
        _
      // Predicated region
      $region21: #{downsampling1_forward.1} parent=11 // pred_check
        %p168 = pneg %p100
      $region22: #{downsampling1_forward.1} parent=11 // pred_check_branch
        %170 = sbr.rel (%p168) target = $region24
      $region23: #{downsampling1_forward.1} parent=11 // pred_region
        _
      $region24: #{downsampling1_forward.1} parent=11 // pred_fallthru
        _
      // Predicated region
      $region25: #{downsampling1_forward.1} parent=11 // pred_check
        %p171 = pneg %p121
      $region26: #{downsampling1_forward.1} parent=11 // pred_check_branch
        %173 = sbr.rel (%p171) target = $region28
      $region27: #{downsampling1_forward.1} parent=11 // pred_region
        _
      $region28: #{downsampling1_forward.1} parent=11 // pred_fallthru
        _
    $region12: #{downsampling1_forward.1} parent=5 // pred_fallthru
      _
    %p174 = scmp.lt.s32.totalorder %s11, 2
    // Predicated region
    $region29: #{downsampling1_forward.1} parent=5 // pred_check
      %p175 = pneg %p174
    $region30: #{downsampling1_forward.1} parent=5 // pred_check_branch
      %177 = sbr.rel (%p175) target = $region32
    $region31: #{downsampling1_forward.1} parent=5 // pred_region
      // Predicated region
      $region33: #{downsampling1_forward.1} parent=31 // pred_check
        %p178 = pneg %p31
      $region34: #{downsampling1_forward.1} parent=31 // pred_check_branch
        %180 = sbr.rel (%p178) target = $region36
      $region35: #{downsampling1_forward.1} parent=31 // pred_region
        %p181 = scmp.lt.s32.totalorder %s11, 1
        %s182 = scalar_select %p181, %s11, 1
        %s183 = smul.addr %s182, 60
        %s184 = smul.addr %s183, 8
        %s185 = scalar_lea.vmem %s0, %s184
      $region36: #{downsampling1_forward.1} parent=31 // pred_fallthru
        _
    $region32: #{downsampling1_forward.1} parent=5 // pred_fallthru
      _
    %p186 = scmp.le.s32.totalorder 1, %s11
    %p187 = scmp.lt.s32.totalorder %s11, 3
    %p188 = pnand %p186, %p187
    %p189 = pneg %p188
    // Predicated region
    $region37: #{downsampling1_forward.1} parent=5 // pred_check
      _
    $region38: #{downsampling1_forward.1} parent=5 // pred_check_branch
      %191 = sbr.rel (%p188) target = $region40
    $region39: #{downsampling1_forward.1} parent=5 // pred_region
      %s192 = ssub.s32 %s11, 1
      %p193 = scmp.lt.s32.totalorder %s16, 1
      %s194 = scalar_select %p193, %s16, 1
      %s195 = smul.addr %s194, 60
      %s196 = smul.addr %s195, 8
      %s197 = scalar_lea.vmem %s0, %s196
      %p198 = pneg %p37
      %p199 = pneg %p34
      %p200 = pneg %p58
      %p201 = pneg %p55
      %p202 = pneg %p79
      %p203 = pneg %p76
      %p204 = pneg %p100
      %p205 = pneg %p97
      %p206 = pneg %p121
      %p207 = pneg %p118
      %p208 = pneg %p147
      %p209 = pneg %p144
      %p210 = scmp.lt.s32.totalorder %s16, 1
      %s211 = scalar_select %p210, %s16, 1
      %s212 = smul.addr %s211, 8
      %s213 = smul.addr %s212, 8
      %s214 = scalar_lea.vmem %s5, %s213
      %p215 = scmp.lt.s32.totalorder %s16, 1
      %s216 = scalar_select %p215, %s16, 1
      %s217 = smul.addr %s216, 60
      %s218 = smul.addr %s217, 8
      %s219 = scalar_lea.vmem %s0, %s218
      %p220 = scmp.lt.s32.totalorder %s16, 1
      %s221 = scalar_select %p220, %s16, 1
      %s222 = smul.addr %s221, 8
      %s223 = smul.addr %s222, 8
      %s224 = scalar_lea.vmem %s5, %s223
      %v225 = vld [vmem:[%s219] sm:$0xff]
      %v226 = vld [vmem:[%s219 + $0x8] sm:$0xff]
      %v227 = vld [vmem:[%s219 + $0x18] sm:$0xff]
      %v228 = vld [vmem:[%s219 + $0x20] sm:$0xff]
      %v229 = vld [vmem:[%s219 + $0x30] sm:$0xff]
      %v230 = vld [vmem:[%s219 + $0x38] sm:$0xff]
      %v231 = vld [vmem:[%s219 + $0x48] sm:$0xff]
      %v232 = vld [vmem:[%s219 + $0x50] sm:$0xff]
      %v233 = vld [vmem:[%s219 + $0x60] sm:$0xff]
      %v234 = vld [vmem:[%s219 + $0x68] sm:$0xff]
      %v235 = vld [vmem:[%s219 + $0x78] sm:$0xff]
      %v236 = vld [vmem:[%s219 + $0x80] sm:$0xff]
      %v237 = vld [vmem:[%s219 + $0x90] sm:$0xff]
      %v238 = vld [vmem:[%s219 + $0x98] sm:$0xff]
      %v239 = vld [vmem:[%s219 + $0xa8] sm:$0xff]
      %v240 = vld [vmem:[%s219 + $0xb0] sm:$0xff]
      %v241 = vld [vmem:[%s219 + $0xc0] sm:$0xff]
      %v242 = vld [vmem:[%s219 + $0xc8] sm:$0xff]
      %v243 = vld [vmem:[%s219 + $0xd8] sm:$0xff]
      %v244 = vld [vmem:[%s219 + $0xe0] sm:$0xff]
      %v245 = vld [vmem:[%s219 + $0xf0] sm:$0xff]
      %v246 = vld [vmem:[%s219 + $0xf8] sm:$0xff]
      %v247 = vld [vmem:[%s219 + $0x108] sm:$0xff]
      %v248 = vld [vmem:[%s219 + $0x110] sm:$0xff]
      %v249 = vld [vmem:[%s219 + $0x120] sm:$0xff]
      %v250 = vld [vmem:[%s219 + $0x128] sm:$0xff]
      %v251 = vld [vmem:[%s219 + $0x138] sm:$0xff]
      %v252 = vld [vmem:[%s219 + $0x140] sm:$0xff]
      %v253 = vld [vmem:[%s219 + $0x150] sm:$0xff]
      %v254 = vld [vmem:[%s219 + $0x158] sm:$0xff]
      %v255 = vld [vmem:[%s219 + $0x168] sm:$0xff]
      %v256 = vld [vmem:[%s219 + $0x170] sm:$0xff]
      %v257 = vld [vmem:[%s1] sm:$0x1]
      %v258 = vlaneseq
      %v259 = vshrl.u32 %v258, 7
      %v260 = vsub.s32 0, %v259
      %v261 = vrot.slane %v257, %v260
      %v262 = vmul.f32 %v225, %v261
      %v263 = vmul.f32 %v226, %v261
      %v264 = vmul.f32 %v227, %v261
      %v265 = vmul.f32 %v228, %v261
      %v266 = vmul.f32 %v229, %v261
      %v267 = vmul.f32 %v230, %v261
      %v268 = vmul.f32 %v231, %v261
      %v269 = vmul.f32 %v232, %v261
      %v270 = vmul.f32 %v233, %v261
      %v271 = vmul.f32 %v234, %v261
      %v272 = vmul.f32 %v235, %v261
      %v273 = vmul.f32 %v236, %v261
      %v274 = vmul.f32 %v237, %v261
      %v275 = vmul.f32 %v238, %v261
      %v276 = vmul.f32 %v239, %v261
      %v277 = vmul.f32 %v240, %v261
      %v278 = vmul.f32 %v241, %v261
      %v279 = vmul.f32 %v242, %v261
      %v280 = vmul.f32 %v243, %v261
      %v281 = vmul.f32 %v244, %v261
      %v282 = vmul.f32 %v245, %v261
      %v283 = vmul.f32 %v246, %v261
      %v284 = vmul.f32 %v247, %v261
      %v285 = vmul.f32 %v248, %v261
      %v286 = vmul.f32 %v249, %v261
      %v287 = vmul.f32 %v250, %v261
      %v288 = vmul.f32 %v251, %v261
      %v289 = vmul.f32 %v252, %v261
      %v290 = vmul.f32 %v253, %v261
      %v291 = vmul.f32 %v254, %v261
      %v292 = vmul.f32 %v255, %v261
      %v293 = vmul.f32 %v256, %v261
      %v294 = vadd.f32 %v262, 0.0
      %v295 = vadd.f32 %v263, 0.0
      %v296 = vadd.f32 %v264, 0.0
      %v297 = vadd.f32 %v265, 0.0
      %v298 = vadd.f32 %v266, 0.0
      %v299 = vadd.f32 %v267, 0.0
      %v300 = vadd.f32 %v268, 0.0
      %v301 = vadd.f32 %v269, 0.0
      %v302 = vadd.f32 %v270, 0.0
      %v303 = vadd.f32 %v271, 0.0
      %v304 = vadd.f32 %v272, 0.0
      %v305 = vadd.f32 %v273, 0.0
      %v306 = vadd.f32 %v274, 0.0
      %v307 = vadd.f32 %v275, 0.0
      %v308 = vadd.f32 %v276, 0.0
      %v309 = vadd.f32 %v277, 0.0
      %v310 = vadd.f32 %v278, 0.0
      %v311 = vadd.f32 %v279, 0.0
      %v312 = vadd.f32 %v280, 0.0
      %v313 = vadd.f32 %v281, 0.0
      %v314 = vadd.f32 %v282, 0.0
      %v315 = vadd.f32 %v283, 0.0
      %v316 = vadd.f32 %v284, 0.0
      %v317 = vadd.f32 %v285, 0.0
      %v318 = vadd.f32 %v286, 0.0
      %v319 = vadd.f32 %v287, 0.0
      %v320 = vadd.f32 %v288, 0.0
      %v321 = vadd.f32 %v289, 0.0
      %v322 = vadd.f32 %v290, 0.0
      %v323 = vadd.f32 %v291, 0.0
      %v324 = vadd.f32 %v292, 0.0
      %v325 = vadd.f32 %v293, 0.0
      %v326 = vld [vmem:[%s219 + $0x1] sm:$0xff]
      %v327 = vld [vmem:[%s219 + $0x9] sm:$0xff]
      %v328 = vld [vmem:[%s219 + $0x19] sm:$0xff]
      %v329 = vld [vmem:[%s219 + $0x21] sm:$0xff]
      %v330 = vld [vmem:[%s219 + $0x31] sm:$0xff]
      %v331 = vld [vmem:[%s219 + $0x39] sm:$0xff]
      %v332 = vld [vmem:[%s219 + $0x49] sm:$0xff]
      %v333 = vld [vmem:[%s219 + $0x51] sm:$0xff]
      %v334 = vld [vmem:[%s219 + $0x61] sm:$0xff]
      %v335 = vld [vmem:[%s219 + $0x69] sm:$0xff]
      %v336 = vld [vmem:[%s219 + $0x79] sm:$0xff]
      %v337 = vld [vmem:[%s219 + $0x81] sm:$0xff]
      %v338 = vld [vmem:[%s219 + $0x91] sm:$0xff]
      %v339 = vld [vmem:[%s219 + $0x99] sm:$0xff]
      %v340 = vld [vmem:[%s219 + $0xa9] sm:$0xff]
      %v341 = vld [vmem:[%s219 + $0xb1] sm:$0xff]
      %v342 = vld [vmem:[%s219 + $0xc1] sm:$0xff]
      %v343 = vld [vmem:[%s219 + $0xc9] sm:$0xff]
      %v344 = vld [vmem:[%s219 + $0xd9] sm:$0xff]
      %v345 = vld [vmem:[%s219 + $0xe1] sm:$0xff]
      %v346 = vld [vmem:[%s219 + $0xf1] sm:$0xff]
      %v347 = vld [vmem:[%s219 + $0xf9] sm:$0xff]
      %v348 = vld [vmem:[%s219 + $0x109] sm:$0xff]
      %v349 = vld [vmem:[%s219 + $0x111] sm:$0xff]
      %v350 = vld [vmem:[%s219 + $0x121] sm:$0xff]
      %v351 = vld [vmem:[%s219 + $0x129] sm:$0xff]
      %v352 = vld [vmem:[%s219 + $0x139] sm:$0xff]
      %v353 = vld [vmem:[%s219 + $0x141] sm:$0xff]
      %v354 = vld [vmem:[%s219 + $0x151] sm:$0xff]
      %v355 = vld [vmem:[%s219 + $0x159] sm:$0xff]
      %v356 = vld [vmem:[%s219 + $0x169] sm:$0xff]
      %v357 = vld [vmem:[%s219 + $0x171] sm:$0xff]
      %v358 = vld [vmem:[%s1 + $0x1] sm:$0x1]
      %v359 = vlaneseq
      %v360 = vshrl.u32 %v359, 7
      %v361 = vsub.s32 0, %v360
      %v362 = vrot.slane %v358, %v361
      %v363 = vmul.f32 %v326, %v362
      %v364 = vmul.f32 %v327, %v362
      %v365 = vmul.f32 %v328, %v362
      %v366 = vmul.f32 %v329, %v362
      %v367 = vmul.f32 %v330, %v362
      %v368 = vmul.f32 %v331, %v362
      %v369 = vmul.f32 %v332, %v362
      %v370 = vmul.f32 %v333, %v362
      %v371 = vmul.f32 %v334, %v362
      %v372 = vmul.f32 %v335, %v362
      %v373 = vmul.f32 %v336, %v362
      %v374 = vmul.f32 %v337, %v362
      %v375 = vmul.f32 %v338, %v362
      %v376 = vmul.f32 %v339, %v362
      %v377 = vmul.f32 %v340, %v362
      %v378 = vmul.f32 %v341, %v362
      %v379 = vmul.f32 %v342, %v362
      %v380 = vmul.f32 %v343, %v362
      %v381 = vmul.f32 %v344, %v362
      %v382 = vmul.f32 %v345, %v362
      %v383 = vmul.f32 %v346, %v362
      %v384 = vmul.f32 %v347, %v362
      %v385 = vmul.f32 %v348, %v362
      %v386 = vmul.f32 %v349, %v362
      %v387 = vmul.f32 %v350, %v362
      %v388 = vmul.f32 %v351, %v362
      %v389 = vmul.f32 %v352, %v362
      %v390 = vmul.f32 %v353, %v362
      %v391 = vmul.f32 %v354, %v362
      %v392 = vmul.f32 %v355, %v362
      %v393 = vmul.f32 %v356, %v362
      %v394 = vmul.f32 %v357, %v362
      %v395 = vadd.f32 %v294, %v363
      %v396 = vadd.f32 %v295, %v364
      %v397 = vadd.f32 %v296, %v365
      %v398 = vadd.f32 %v297, %v366
      %v399 = vadd.f32 %v298, %v367
      %v400 = vadd.f32 %v299, %v368
      %v401 = vadd.f32 %v300, %v369
      %v402 = vadd.f32 %v301, %v370
      %v403 = vadd.f32 %v302, %v371
      %v404 = vadd.f32 %v303, %v372
      %v405 = vadd.f32 %v304, %v373
      %v406 = vadd.f32 %v305, %v374
      %v407 = vadd.f32 %v306, %v375
      %v408 = vadd.f32 %v307, %v376
      %v409 = vadd.f32 %v308, %v377
      %v410 = vadd.f32 %v309, %v378
      %v411 = vadd.f32 %v310, %v379
      %v412 = vadd.f32 %v311, %v380
      %v413 = vadd.f32 %v312, %v381
      %v414 = vadd.f32 %v313, %v382
      %v415 = vadd.f32 %v314, %v383
      %v416 = vadd.f32 %v315, %v384
      %v417 = vadd.f32 %v316, %v385
      %v418 = vadd.f32 %v317, %v386
      %v419 = vadd.f32 %v318, %v387
      %v420 = vadd.f32 %v319, %v388
      %v421 = vadd.f32 %v320, %v389
      %v422 = vadd.f32 %v321, %v390
      %v423 = vadd.f32 %v322, %v391
      %v424 = vadd.f32 %v323, %v392
      %v425 = vadd.f32 %v324, %v393
      %v426 = vadd.f32 %v325, %v394
      %v427 = vld [vmem:[%s219 + $0x2] sm:$0xff]
      %v428 = vld [vmem:[%s219 + $0xa] sm:$0xff]
      %v429 = vld [vmem:[%s219 + $0x1a] sm:$0xff]
      %v430 = vld [vmem:[%s219 + $0x22] sm:$0xff]
      %v431 = vld [vmem:[%s219 + $0x32] sm:$0xff]
      %v432 = vld [vmem:[%s219 + $0x3a] sm:$0xff]
      %v433 = vld [vmem:[%s219 + $0x4a] sm:$0xff]
      %v434 = vld [vmem:[%s219 + $0x52] sm:$0xff]
      %v435 = vld [vmem:[%s219 + $0x62] sm:$0xff]
      %v436 = vld [vmem:[%s219 + $0x6a] sm:$0xff]
      %v437 = vld [vmem:[%s219 + $0x7a] sm:$0xff]
      %v438 = vld [vmem:[%s219 + $0x82] sm:$0xff]
      %v439 = vld [vmem:[%s219 + $0x92] sm:$0xff]
      %v440 = vld [vmem:[%s219 + $0x9a] sm:$0xff]
      %v441 = vld [vmem:[%s219 + $0xaa] sm:$0xff]
      %v442 = vld [vmem:[%s219 + $0xb2] sm:$0xff]
      %v443 = vld [vmem:[%s219 + $0xc2] sm:$0xff]
      %v444 = vld [vmem:[%s219 + $0xca] sm:$0xff]
      %v445 = vld [vmem:[%s219 + $0xda] sm:$0xff]
      %v446 = vld [vmem:[%s219 + $0xe2] sm:$0xff]
      %v447 = vld [vmem:[%s219 + $0xf2] sm:$0xff]
      %v448 = vld [vmem:[%s219 + $0xfa] sm:$0xff]
      %v449 = vld [vmem:[%s219 + $0x10a] sm:$0xff]
      %v450 = vld [vmem:[%s219 + $0x112] sm:$0xff]
      %v451 = vld [vmem:[%s219 + $0x122] sm:$0xff]
      %v452 = vld [vmem:[%s219 + $0x12a] sm:$0xff]
      %v453 = vld [vmem:[%s219 + $0x13a] sm:$0xff]
      %v454 = vld [vmem:[%s219 + $0x142] sm:$0xff]
      %v455 = vld [vmem:[%s219 + $0x152] sm:$0xff]
      %v456 = vld [vmem:[%s219 + $0x15a] sm:$0xff]
      %v457 = vld [vmem:[%s219 + $0x16a] sm:$0xff]
      %v458 = vld [vmem:[%s219 + $0x172] sm:$0xff]
      %v459 = vld [vmem:[%s1 + $0x2] sm:$0x1]
      %v460 = vlaneseq
      %v461 = vshrl.u32 %v460, 7
      %v462 = vsub.s32 0, %v461
      %v463 = vrot.slane %v459, %v462
      %v464 = vmul.f32 %v427, %v463
      %v465 = vmul.f32 %v428, %v463
      %v466 = vmul.f32 %v429, %v463
      %v467 = vmul.f32 %v430, %v463
      %v468 = vmul.f32 %v431, %v463
      %v469 = vmul.f32 %v432, %v463
      %v470 = vmul.f32 %v433, %v463
      %v471 = vmul.f32 %v434, %v463
      %v472 = vmul.f32 %v435, %v463
      %v473 = vmul.f32 %v436, %v463
      %v474 = vmul.f32 %v437, %v463
      %v475 = vmul.f32 %v438, %v463
      %v476 = vmul.f32 %v439, %v463
      %v477 = vmul.f32 %v440, %v463
      %v478 = vmul.f32 %v441, %v463
      %v479 = vmul.f32 %v442, %v463
      %v480 = vmul.f32 %v443, %v463
      %v481 = vmul.f32 %v444, %v463
      %v482 = vmul.f32 %v445, %v463
      %v483 = vmul.f32 %v446, %v463
      %v484 = vmul.f32 %v447, %v463
      %v485 = vmul.f32 %v448, %v463
      %v486 = vmul.f32 %v449, %v463
      %v487 = vmul.f32 %v450, %v463
      %v488 = vmul.f32 %v451, %v463
      %v489 = vmul.f32 %v452, %v463
      %v490 = vmul.f32 %v453, %v463
      %v491 = vmul.f32 %v454, %v463
      %v492 = vmul.f32 %v455, %v463
      %v493 = vmul.f32 %v456, %v463
      %v494 = vmul.f32 %v457, %v463
      %v495 = vmul.f32 %v458, %v463
      %v496 = vadd.f32 %v395, %v464
      %v497 = vadd.f32 %v396, %v465
      %v498 = vadd.f32 %v397, %v466
      %v499 = vadd.f32 %v398, %v467
      %v500 = vadd.f32 %v399, %v468
      %v501 = vadd.f32 %v400, %v469
      %v502 = vadd.f32 %v401, %v470
      %v503 = vadd.f32 %v402, %v471
      %v504 = vadd.f32 %v403, %v472
      %v505 = vadd.f32 %v404, %v473
      %v506 = vadd.f32 %v405, %v474
      %v507 = vadd.f32 %v406, %v475
      %v508 = vadd.f32 %v407, %v476
      %v509 = vadd.f32 %v408, %v477
      %v510 = vadd.f32 %v409, %v478
      %v511 = vadd.f32 %v410, %v479
      %v512 = vadd.f32 %v411, %v480
      %v513 = vadd.f32 %v412, %v481
      %v514 = vadd.f32 %v413, %v482
      %v515 = vadd.f32 %v414, %v483
      %v516 = vadd.f32 %v415, %v484
      %v517 = vadd.f32 %v416, %v485
      %v518 = vadd.f32 %v417, %v486
      %v519 = vadd.f32 %v418, %v487
      %v520 = vadd.f32 %v419, %v488
      %v521 = vadd.f32 %v420, %v489
      %v522 = vadd.f32 %v421, %v490
      %v523 = vadd.f32 %v422, %v491
      %v524 = vadd.f32 %v423, %v492
      %v525 = vadd.f32 %v424, %v493
      %v526 = vadd.f32 %v425, %v494
      %v527 = vadd.f32 %v426, %v495
      %v528 = vld [vmem:[%s219 + $0x3] sm:$0xff]
      %v529 = vld [vmem:[%s219 + $0xb] sm:$0xff]
      %v530 = vld [vmem:[%s219 + $0x1b] sm:$0xff]
      %v531 = vld [vmem:[%s219 + $0x23] sm:$0xff]
      %v532 = vld [vmem:[%s219 + $0x33] sm:$0xff]
      %v533 = vld [vmem:[%s219 + $0x3b] sm:$0xff]
      %v534 = vld [vmem:[%s219 + $0x4b] sm:$0xff]
      %v535 = vld [vmem:[%s219 + $0x53] sm:$0xff]
      %v536 = vld [vmem:[%s219 + $0x63] sm:$0xff]
      %v537 = vld [vmem:[%s219 + $0x6b] sm:$0xff]
      %v538 = vld [vmem:[%s219 + $0x7b] sm:$0xff]
      %v539 = vld [vmem:[%s219 + $0x83] sm:$0xff]
      %v540 = vld [vmem:[%s219 + $0x93] sm:$0xff]
      %v541 = vld [vmem:[%s219 + $0x9b] sm:$0xff]
      %v542 = vld [vmem:[%s219 + $0xab] sm:$0xff]
      %v543 = vld [vmem:[%s219 + $0xb3] sm:$0xff]
      %v544 = vld [vmem:[%s219 + $0xc3] sm:$0xff]
      %v545 = vld [vmem:[%s219 + $0xcb] sm:$0xff]
      %v546 = vld [vmem:[%s219 + $0xdb] sm:$0xff]
      %v547 = vld [vmem:[%s219 + $0xe3] sm:$0xff]
      %v548 = vld [vmem:[%s219 + $0xf3] sm:$0xff]
      %v549 = vld [vmem:[%s219 + $0xfb] sm:$0xff]
      %v550 = vld [vmem:[%s219 + $0x10b] sm:$0xff]
      %v551 = vld [vmem:[%s219 + $0x113] sm:$0xff]
      %v552 = vld [vmem:[%s219 + $0x123] sm:$0xff]
      %v553 = vld [vmem:[%s219 + $0x12b] sm:$0xff]
      %v554 = vld [vmem:[%s219 + $0x13b] sm:$0xff]
      %v555 = vld [vmem:[%s219 + $0x143] sm:$0xff]
      %v556 = vld [vmem:[%s219 + $0x153] sm:$0xff]
      %v557 = vld [vmem:[%s219 + $0x15b] sm:$0xff]
      %v558 = vld [vmem:[%s219 + $0x16b] sm:$0xff]
      %v559 = vld [vmem:[%s219 + $0x173] sm:$0xff]
      %v560 = vld [vmem:[%s1 + $0x3] sm:$0x1]
      %v561 = vlaneseq
      %v562 = vshrl.u32 %v561, 7
      %v563 = vsub.s32 0, %v562
      %v564 = vrot.slane %v560, %v563
      %v565 = vmul.f32 %v528, %v564
      %v566 = vmul.f32 %v529, %v564
      %v567 = vmul.f32 %v530, %v564
      %v568 = vmul.f32 %v531, %v564
      %v569 = vmul.f32 %v532, %v564
      %v570 = vmul.f32 %v533, %v564
      %v571 = vmul.f32 %v534, %v564
      %v572 = vmul.f32 %v535, %v564
      %v573 = vmul.f32 %v536, %v564
      %v574 = vmul.f32 %v537, %v564
      %v575 = vmul.f32 %v538, %v564
      %v576 = vmul.f32 %v539, %v564
      %v577 = vmul.f32 %v540, %v564
      %v578 = vmul.f32 %v541, %v564
      %v579 = vmul.f32 %v542, %v564
      %v580 = vmul.f32 %v543, %v564
      %v581 = vmul.f32 %v544, %v564
      %v582 = vmul.f32 %v545, %v564
      %v583 = vmul.f32 %v546, %v564
      %v584 = vmul.f32 %v547, %v564
      %v585 = vmul.f32 %v548, %v564
      %v586 = vmul.f32 %v549, %v564
      %v587 = vmul.f32 %v550, %v564
      %v588 = vmul.f32 %v551, %v564
      %v589 = vmul.f32 %v552, %v564
      %v590 = vmul.f32 %v553, %v564
      %v591 = vmul.f32 %v554, %v564
      %v592 = vmul.f32 %v555, %v564
      %v593 = vmul.f32 %v556, %v564
      %v594 = vmul.f32 %v557, %v564
      %v595 = vmul.f32 %v558, %v564
      %v596 = vmul.f32 %v559, %v564
      %v597 = vadd.f32 %v496, %v565
      %v598 = vadd.f32 %v497, %v566
      %v599 = vadd.f32 %v498, %v567
      %v600 = vadd.f32 %v499, %v568
      %v601 = vadd.f32 %v500, %v569
      %v602 = vadd.f32 %v501, %v570
      %v603 = vadd.f32 %v502, %v571
      %v604 = vadd.f32 %v503, %v572
      %v605 = vadd.f32 %v504, %v573
      %v606 = vadd.f32 %v505, %v574
      %v607 = vadd.f32 %v506, %v575
      %v608 = vadd.f32 %v507, %v576
      %v609 = vadd.f32 %v508, %v577
      %v610 = vadd.f32 %v509, %v578
      %v611 = vadd.f32 %v510, %v579
      %v612 = vadd.f32 %v511, %v580
      %v613 = vadd.f32 %v512, %v581
      %v614 = vadd.f32 %v513, %v582
      %v615 = vadd.f32 %v514, %v583
      %v616 = vadd.f32 %v515, %v584
      %v617 = vadd.f32 %v516, %v585
      %v618 = vadd.f32 %v517, %v586
      %v619 = vadd.f32 %v518, %v587
      %v620 = vadd.f32 %v519, %v588
      %v621 = vadd.f32 %v520, %v589
      %v622 = vadd.f32 %v521, %v590
      %v623 = vadd.f32 %v522, %v591
      %v624 = vadd.f32 %v523, %v592
      %v625 = vadd.f32 %v524, %v593
      %v626 = vadd.f32 %v525, %v594
      %v627 = vadd.f32 %v526, %v595
      %v628 = vadd.f32 %v527, %v596
      %v629 = vld [vmem:[%s219 + $0x4] sm:$0xff]
      %v630 = vld [vmem:[%s219 + $0xc] sm:$0xff]
      %v631 = vld [vmem:[%s219 + $0x1c] sm:$0xff]
      %v632 = vld [vmem:[%s219 + $0x24] sm:$0xff]
      %v633 = vld [vmem:[%s219 + $0x34] sm:$0xff]
      %v634 = vld [vmem:[%s219 + $0x3c] sm:$0xff]
      %v635 = vld [vmem:[%s219 + $0x4c] sm:$0xff]
      %v636 = vld [vmem:[%s219 + $0x54] sm:$0xff]
      %v637 = vld [vmem:[%s219 + $0x64] sm:$0xff]
      %v638 = vld [vmem:[%s219 + $0x6c] sm:$0xff]
      %v639 = vld [vmem:[%s219 + $0x7c] sm:$0xff]
      %v640 = vld [vmem:[%s219 + $0x84] sm:$0xff]
      %v641 = vld [vmem:[%s219 + $0x94] sm:$0xff]
      %v642 = vld [vmem:[%s219 + $0x9c] sm:$0xff]
      %v643 = vld [vmem:[%s219 + $0xac] sm:$0xff]
      %v644 = vld [vmem:[%s219 + $0xb4] sm:$0xff]
      %v645 = vld [vmem:[%s219 + $0xc4] sm:$0xff]
      %v646 = vld [vmem:[%s219 + $0xcc] sm:$0xff]
      %v647 = vld [vmem:[%s219 + $0xdc] sm:$0xff]
      %v648 = vld [vmem:[%s219 + $0xe4] sm:$0xff]
      %v649 = vld [vmem:[%s219 + $0xf4] sm:$0xff]
      %v650 = vld [vmem:[%s219 + $0xfc] sm:$0xff]
      %v651 = vld [vmem:[%s219 + $0x10c] sm:$0xff]
      %v652 = vld [vmem:[%s219 + $0x114] sm:$0xff]
      %v653 = vld [vmem:[%s219 + $0x124] sm:$0xff]
      %v654 = vld [vmem:[%s219 + $0x12c] sm:$0xff]
      %v655 = vld [vmem:[%s219 + $0x13c] sm:$0xff]
      %v656 = vld [vmem:[%s219 + $0x144] sm:$0xff]
      %v657 = vld [vmem:[%s219 + $0x154] sm:$0xff]
      %v658 = vld [vmem:[%s219 + $0x15c] sm:$0xff]
      %v659 = vld [vmem:[%s219 + $0x16c] sm:$0xff]
      %v660 = vld [vmem:[%s219 + $0x174] sm:$0xff]
      %v661 = vld [vmem:[%s1 + $0x4] sm:$0x1]
      %v662 = vlaneseq
      %v663 = vshrl.u32 %v662, 7
      %v664 = vsub.s32 0, %v663
      %v665 = vrot.slane %v661, %v664
      %v666 = vmul.f32 %v629, %v665
      %v667 = vmul.f32 %v630, %v665
      %v668 = vmul.f32 %v631, %v665
      %v669 = vmul.f32 %v632, %v665
      %v670 = vmul.f32 %v633, %v665
      %v671 = vmul.f32 %v634, %v665
      %v672 = vmul.f32 %v635, %v665
      %v673 = vmul.f32 %v636, %v665
      %v674 = vmul.f32 %v637, %v665
      %v675 = vmul.f32 %v638, %v665
      %v676 = vmul.f32 %v639, %v665
      %v677 = vmul.f32 %v640, %v665
      %v678 = vmul.f32 %v641, %v665
      %v679 = vmul.f32 %v642, %v665
      %v680 = vmul.f32 %v643, %v665
      %v681 = vmul.f32 %v644, %v665
      %v682 = vmul.f32 %v645, %v665
      %v683 = vmul.f32 %v646, %v665
      %v684 = vmul.f32 %v647, %v665
      %v685 = vmul.f32 %v648, %v665
      %v686 = vmul.f32 %v649, %v665
      %v687 = vmul.f32 %v650, %v665
      %v688 = vmul.f32 %v651, %v665
      %v689 = vmul.f32 %v652, %v665
      %v690 = vmul.f32 %v653, %v665
      %v691 = vmul.f32 %v654, %v665
      %v692 = vmul.f32 %v655, %v665
      %v693 = vmul.f32 %v656, %v665
      %v694 = vmul.f32 %v657, %v665
      %v695 = vmul.f32 %v658, %v665
      %v696 = vmul.f32 %v659, %v665
      %v697 = vmul.f32 %v660, %v665
      %v698 = vadd.f32 %v597, %v666
      %v699 = vadd.f32 %v598, %v667
      %v700 = vadd.f32 %v599, %v668
      %v701 = vadd.f32 %v600, %v669
      %v702 = vadd.f32 %v601, %v670
      %v703 = vadd.f32 %v602, %v671
      %v704 = vadd.f32 %v603, %v672
      %v705 = vadd.f32 %v604, %v673
      %v706 = vadd.f32 %v605, %v674
      %v707 = vadd.f32 %v606, %v675
      %v708 = vadd.f32 %v607, %v676
      %v709 = vadd.f32 %v608, %v677
      %v710 = vadd.f32 %v609, %v678
      %v711 = vadd.f32 %v610, %v679
      %v712 = vadd.f32 %v611, %v680
      %v713 = vadd.f32 %v612, %v681
      %v714 = vadd.f32 %v613, %v682
      %v715 = vadd.f32 %v614, %v683
      %v716 = vadd.f32 %v615, %v684
      %v717 = vadd.f32 %v616, %v685
      %v718 = vadd.f32 %v617, %v686
      %v719 = vadd.f32 %v618, %v687
      %v720 = vadd.f32 %v619, %v688
      %v721 = vadd.f32 %v620, %v689
      %v722 = vadd.f32 %v621, %v690
      %v723 = vadd.f32 %v622, %v691
      %v724 = vadd.f32 %v623, %v692
      %v725 = vadd.f32 %v624, %v693
      %v726 = vadd.f32 %v625, %v694
      %v727 = vadd.f32 %v626, %v695
      %v728 = vadd.f32 %v627, %v696
      %v729 = vadd.f32 %v628, %v697
      %s730 = scalar_lea.vmem %s219, 24
      %v731 = vld [vmem:[%s730] sm:$0xff]
      %v732 = vld [vmem:[%s730 + $0x8] sm:$0xff]
      %v733 = vld [vmem:[%s730 + $0x18] sm:$0xff]
      %v734 = vld [vmem:[%s730 + $0x20] sm:$0xff]
      %v735 = vld [vmem:[%s730 + $0x30] sm:$0xff]
      %v736 = vld [vmem:[%s730 + $0x38] sm:$0xff]
      %v737 = vld [vmem:[%s730 + $0x48] sm:$0xff]
      %v738 = vld [vmem:[%s730 + $0x50] sm:$0xff]
      %v739 = vld [vmem:[%s730 + $0x60] sm:$0xff]
      %v740 = vld [vmem:[%s730 + $0x68] sm:$0xff]
      %v741 = vld [vmem:[%s730 + $0x78] sm:$0xff]
      %v742 = vld [vmem:[%s730 + $0x80] sm:$0xff]
      %v743 = vld [vmem:[%s730 + $0x90] sm:$0xff]
      %v744 = vld [vmem:[%s730 + $0x98] sm:$0xff]
      %v745 = vld [vmem:[%s730 + $0xa8] sm:$0xff]
      %v746 = vld [vmem:[%s730 + $0xb0] sm:$0xff]
      %v747 = vld [vmem:[%s730 + $0xc0] sm:$0xff]
      %v748 = vld [vmem:[%s730 + $0xc8] sm:$0xff]
      %v749 = vld [vmem:[%s730 + $0xd8] sm:$0xff]
      %v750 = vld [vmem:[%s730 + $0xe0] sm:$0xff]
      %v751 = vld [vmem:[%s730 + $0xf0] sm:$0xff]
      %v752 = vld [vmem:[%s730 + $0xf8] sm:$0xff]
      %v753 = vld [vmem:[%s730 + $0x108] sm:$0xff]
      %v754 = vld [vmem:[%s730 + $0x110] sm:$0xff]
      %v755 = vld [vmem:[%s730 + $0x120] sm:$0xff]
      %v756 = vld [vmem:[%s730 + $0x128] sm:$0xff]
      %v757 = vld [vmem:[%s730 + $0x138] sm:$0xff]
      %v758 = vld [vmem:[%s730 + $0x140] sm:$0xff]
      %v759 = vld [vmem:[%s730 + $0x150] sm:$0xff]
      %v760 = vld [vmem:[%s730 + $0x158] sm:$0xff]
      %v761 = vld [vmem:[%s730 + $0x168] sm:$0xff]
      %v762 = vld [vmem:[%s730 + $0x170] sm:$0xff]
      %v763 = vld [vmem:[%s1 + $0x5] sm:$0x1]
      %v764 = vlaneseq
      %v765 = vshrl.u32 %v764, 7
      %v766 = vsub.s32 0, %v765
      %v767 = vrot.slane %v763, %v766
      %v768 = vmul.f32 %v731, %v767
      %v769 = vmul.f32 %v732, %v767
      %v770 = vmul.f32 %v733, %v767
      %v771 = vmul.f32 %v734, %v767
      %v772 = vmul.f32 %v735, %v767
      %v773 = vmul.f32 %v736, %v767
      %v774 = vmul.f32 %v737, %v767
      %v775 = vmul.f32 %v738, %v767
      %v776 = vmul.f32 %v739, %v767
      %v777 = vmul.f32 %v740, %v767
      %v778 = vmul.f32 %v741, %v767
      %v779 = vmul.f32 %v742, %v767
      %v780 = vmul.f32 %v743, %v767
      %v781 = vmul.f32 %v744, %v767
      %v782 = vmul.f32 %v745, %v767
      %v783 = vmul.f32 %v746, %v767
      %v784 = vmul.f32 %v747, %v767
      %v785 = vmul.f32 %v748, %v767
      %v786 = vmul.f32 %v749, %v767
      %v787 = vmul.f32 %v750, %v767
      %v788 = vmul.f32 %v751, %v767
      %v789 = vmul.f32 %v752, %v767
      %v790 = vmul.f32 %v753, %v767
      %v791 = vmul.f32 %v754, %v767
      %v792 = vmul.f32 %v755, %v767
      %v793 = vmul.f32 %v756, %v767
      %v794 = vmul.f32 %v757, %v767
      %v795 = vmul.f32 %v758, %v767
      %v796 = vmul.f32 %v759, %v767
      %v797 = vmul.f32 %v760, %v767
      %v798 = vmul.f32 %v761, %v767
      %v799 = vmul.f32 %v762, %v767
      %v800 = vadd.f32 %v698, %v768
      %v801 = vadd.f32 %v699, %v769
      %v802 = vadd.f32 %v700, %v770
      %v803 = vadd.f32 %v701, %v771
      %v804 = vadd.f32 %v702, %v772
      %v805 = vadd.f32 %v703, %v773
      %v806 = vadd.f32 %v704, %v774
      %v807 = vadd.f32 %v705, %v775
      %v808 = vadd.f32 %v706, %v776
      %v809 = vadd.f32 %v707, %v777
      %v810 = vadd.f32 %v708, %v778
      %v811 = vadd.f32 %v709, %v779
      %v812 = vadd.f32 %v710, %v780
      %v813 = vadd.f32 %v711, %v781
      %v814 = vadd.f32 %v712, %v782
      %v815 = vadd.f32 %v713, %v783
      %v816 = vadd.f32 %v714, %v784
      %v817 = vadd.f32 %v715, %v785
      %v818 = vadd.f32 %v716, %v786
      %v819 = vadd.f32 %v717, %v787
      %v820 = vadd.f32 %v718, %v788
      %v821 = vadd.f32 %v719, %v789
      %v822 = vadd.f32 %v720, %v790
      %v823 = vadd.f32 %v721, %v791
      %v824 = vadd.f32 %v722, %v792
      %v825 = vadd.f32 %v723, %v793
      %v826 = vadd.f32 %v724, %v794
      %v827 = vadd.f32 %v725, %v795
      %v828 = vadd.f32 %v726, %v796
      %v829 = vadd.f32 %v727, %v797
      %v830 = vadd.f32 %v728, %v798
      %v831 = vadd.f32 %v729, %v799
      %v832 = vld [vmem:[%s730 + $0x1] sm:$0xff]
      %v833 = vld [vmem:[%s730 + $0x9] sm:$0xff]
      %v834 = vld [vmem:[%s730 + $0x19] sm:$0xff]
      %v835 = vld [vmem:[%s730 + $0x21] sm:$0xff]
      %v836 = vld [vmem:[%s730 + $0x31] sm:$0xff]
      %v837 = vld [vmem:[%s730 + $0x39] sm:$0xff]
      %v838 = vld [vmem:[%s730 + $0x49] sm:$0xff]
      %v839 = vld [vmem:[%s730 + $0x51] sm:$0xff]
      %v840 = vld [vmem:[%s730 + $0x61] sm:$0xff]
      %v841 = vld [vmem:[%s730 + $0x69] sm:$0xff]
      %v842 = vld [vmem:[%s730 + $0x79] sm:$0xff]
      %v843 = vld [vmem:[%s730 + $0x81] sm:$0xff]
      %v844 = vld [vmem:[%s730 + $0x91] sm:$0xff]
      %v845 = vld [vmem:[%s730 + $0x99] sm:$0xff]
      %v846 = vld [vmem:[%s730 + $0xa9] sm:$0xff]
      %v847 = vld [vmem:[%s730 + $0xb1] sm:$0xff]
      %v848 = vld [vmem:[%s730 + $0xc1] sm:$0xff]
      %v849 = vld [vmem:[%s730 + $0xc9] sm:$0xff]
      %v850 = vld [vmem:[%s730 + $0xd9] sm:$0xff]
      %v851 = vld [vmem:[%s730 + $0xe1] sm:$0xff]
      %v852 = vld [vmem:[%s730 + $0xf1] sm:$0xff]
      %v853 = vld [vmem:[%s730 + $0xf9] sm:$0xff]
      %v854 = vld [vmem:[%s730 + $0x109] sm:$0xff]
      %v855 = vld [vmem:[%s730 + $0x111] sm:$0xff]
      %v856 = vld [vmem:[%s730 + $0x121] sm:$0xff]
      %v857 = vld [vmem:[%s730 + $0x129] sm:$0xff]
      %v858 = vld [vmem:[%s730 + $0x139] sm:$0xff]
      %v859 = vld [vmem:[%s730 + $0x141] sm:$0xff]
      %v860 = vld [vmem:[%s730 + $0x151] sm:$0xff]
      %v861 = vld [vmem:[%s730 + $0x159] sm:$0xff]
      %v862 = vld [vmem:[%s730 + $0x169] sm:$0xff]
      %v863 = vld [vmem:[%s730 + $0x171] sm:$0xff]
      %v864 = vld [vmem:[%s1 + $0x6] sm:$0x1]
      %v865 = vlaneseq
      %v866 = vshrl.u32 %v865, 7
      %v867 = vsub.s32 0, %v866
      %v868 = vrot.slane %v864, %v867
      %v869 = vmul.f32 %v832, %v868
      %v870 = vmul.f32 %v833, %v868
      %v871 = vmul.f32 %v834, %v868
      %v872 = vmul.f32 %v835, %v868
      %v873 = vmul.f32 %v836, %v868
      %v874 = vmul.f32 %v837, %v868
      %v875 = vmul.f32 %v838, %v868
      %v876 = vmul.f32 %v839, %v868
      %v877 = vmul.f32 %v840, %v868
      %v878 = vmul.f32 %v841, %v868
      %v879 = vmul.f32 %v842, %v868
      %v880 = vmul.f32 %v843, %v868
      %v881 = vmul.f32 %v844, %v868
      %v882 = vmul.f32 %v845, %v868
      %v883 = vmul.f32 %v846, %v868
      %v884 = vmul.f32 %v847, %v868
      %v885 = vmul.f32 %v848, %v868
      %v886 = vmul.f32 %v849, %v868
      %v887 = vmul.f32 %v850, %v868
      %v888 = vmul.f32 %v851, %v868
      %v889 = vmul.f32 %v852, %v868
      %v890 = vmul.f32 %v853, %v868
      %v891 = vmul.f32 %v854, %v868
      %v892 = vmul.f32 %v855, %v868
      %v893 = vmul.f32 %v856, %v868
      %v894 = vmul.f32 %v857, %v868
      %v895 = vmul.f32 %v858, %v868
      %v896 = vmul.f32 %v859, %v868
      %v897 = vmul.f32 %v860, %v868
      %v898 = vmul.f32 %v861, %v868
      %v899 = vmul.f32 %v862, %v868
      %v900 = vmul.f32 %v863, %v868
      %v901 = vadd.f32 %v800, %v869
      %v902 = vadd.f32 %v801, %v870
      %v903 = vadd.f32 %v802, %v871
      %v904 = vadd.f32 %v803, %v872
      %v905 = vadd.f32 %v804, %v873
      %v906 = vadd.f32 %v805, %v874
      %v907 = vadd.f32 %v806, %v875
      %v908 = vadd.f32 %v807, %v876
      %v909 = vadd.f32 %v808, %v877
      %v910 = vadd.f32 %v809, %v878
      %v911 = vadd.f32 %v810, %v879
      %v912 = vadd.f32 %v811, %v880
      %v913 = vadd.f32 %v812, %v881
      %v914 = vadd.f32 %v813, %v882
      %v915 = vadd.f32 %v814, %v883
      %v916 = vadd.f32 %v815, %v884
      %v917 = vadd.f32 %v816, %v885
      %v918 = vadd.f32 %v817, %v886
      %v919 = vadd.f32 %v818, %v887
      %v920 = vadd.f32 %v819, %v888
      %v921 = vadd.f32 %v820, %v889
      %v922 = vadd.f32 %v821, %v890
      %v923 = vadd.f32 %v822, %v891
      %v924 = vadd.f32 %v823, %v892
      %v925 = vadd.f32 %v824, %v893
      %v926 = vadd.f32 %v825, %v894
      %v927 = vadd.f32 %v826, %v895
      %v928 = vadd.f32 %v827, %v896
      %v929 = vadd.f32 %v828, %v897
      %v930 = vadd.f32 %v829, %v898
      %v931 = vadd.f32 %v830, %v899
      %v932 = vadd.f32 %v831, %v900
      %v933 = vld [vmem:[%s730 + $0x2] sm:$0xff]
      %v934 = vld [vmem:[%s730 + $0xa] sm:$0xff]
      %v935 = vld [vmem:[%s730 + $0x1a] sm:$0xff]
      %v936 = vld [vmem:[%s730 + $0x22] sm:$0xff]
      %v937 = vld [vmem:[%s730 + $0x32] sm:$0xff]
      %v938 = vld [vmem:[%s730 + $0x3a] sm:$0xff]
      %v939 = vld [vmem:[%s730 + $0x4a] sm:$0xff]
      %v940 = vld [vmem:[%s730 + $0x52] sm:$0xff]
      %v941 = vld [vmem:[%s730 + $0x62] sm:$0xff]
      %v942 = vld [vmem:[%s730 + $0x6a] sm:$0xff]
      %v943 = vld [vmem:[%s730 + $0x7a] sm:$0xff]
      %v944 = vld [vmem:[%s730 + $0x82] sm:$0xff]
      %v945 = vld [vmem:[%s730 + $0x92] sm:$0xff]
      %v946 = vld [vmem:[%s730 + $0x9a] sm:$0xff]
      %v947 = vld [vmem:[%s730 + $0xaa] sm:$0xff]
      %v948 = vld [vmem:[%s730 + $0xb2] sm:$0xff]
      %v949 = vld [vmem:[%s730 + $0xc2] sm:$0xff]
      %v950 = vld [vmem:[%s730 + $0xca] sm:$0xff]
      %v951 = vld [vmem:[%s730 + $0xda] sm:$0xff]
      %v952 = vld [vmem:[%s730 + $0xe2] sm:$0xff]
      %v953 = vld [vmem:[%s730 + $0xf2] sm:$0xff]
      %v954 = vld [vmem:[%s730 + $0xfa] sm:$0xff]
      %v955 = vld [vmem:[%s730 + $0x10a] sm:$0xff]
      %v956 = vld [vmem:[%s730 + $0x112] sm:$0xff]
      %v957 = vld [vmem:[%s730 + $0x122] sm:$0xff]
      %v958 = vld [vmem:[%s730 + $0x12a] sm:$0xff]
      %v959 = vld [vmem:[%s730 + $0x13a] sm:$0xff]
      %v960 = vld [vmem:[%s730 + $0x142] sm:$0xff]
      %v961 = vld [vmem:[%s730 + $0x152] sm:$0xff]
      %v962 = vld [vmem:[%s730 + $0x15a] sm:$0xff]
      %v963 = vld [vmem:[%s730 + $0x16a] sm:$0xff]
      %v964 = vld [vmem:[%s730 + $0x172] sm:$0xff]
      %v965 = vld [vmem:[%s1 + $0x7] sm:$0x1]
      %v966 = vlaneseq
      %v967 = vshrl.u32 %v966, 7
      %v968 = vsub.s32 0, %v967
      %v969 = vrot.slane %v965, %v968
      %v970 = vmul.f32 %v933, %v969
      %v971 = vmul.f32 %v934, %v969
      %v972 = vmul.f32 %v935, %v969
      %v973 = vmul.f32 %v936, %v969
      %v974 = vmul.f32 %v937, %v969
      %v975 = vmul.f32 %v938, %v969
      %v976 = vmul.f32 %v939, %v969
      %v977 = vmul.f32 %v940, %v969
      %v978 = vmul.f32 %v941, %v969
      %v979 = vmul.f32 %v942, %v969
      %v980 = vmul.f32 %v943, %v969
      %v981 = vmul.f32 %v944, %v969
      %v982 = vmul.f32 %v945, %v969
      %v983 = vmul.f32 %v946, %v969
      %v984 = vmul.f32 %v947, %v969
      %v985 = vmul.f32 %v948, %v969
      %v986 = vmul.f32 %v949, %v969
      %v987 = vmul.f32 %v950, %v969
      %v988 = vmul.f32 %v951, %v969
      %v989 = vmul.f32 %v952, %v969
      %v990 = vmul.f32 %v953, %v969
      %v991 = vmul.f32 %v954, %v969
      %v992 = vmul.f32 %v955, %v969
      %v993 = vmul.f32 %v956, %v969
      %v994 = vmul.f32 %v957, %v969
      %v995 = vmul.f32 %v958, %v969
      %v996 = vmul.f32 %v959, %v969
      %v997 = vmul.f32 %v960, %v969
      %v998 = vmul.f32 %v961, %v969
      %v999 = vmul.f32 %v962, %v969
      %v1000 = vmul.f32 %v963, %v969
      %v1001 = vmul.f32 %v964, %v969
      %v1002 = vadd.f32 %v901, %v970
      %v1003 = vadd.f32 %v902, %v971
      %v1004 = vadd.f32 %v903, %v972
      %v1005 = vadd.f32 %v904, %v973
      %v1006 = vadd.f32 %v905, %v974
      %v1007 = vadd.f32 %v906, %v975
      %v1008 = vadd.f32 %v907, %v976
      %v1009 = vadd.f32 %v908, %v977
      %v1010 = vadd.f32 %v909, %v978
      %v1011 = vadd.f32 %v910, %v979
      %v1012 = vadd.f32 %v911, %v980
      %v1013 = vadd.f32 %v912, %v981
      %v1014 = vadd.f32 %v913, %v982
      %v1015 = vadd.f32 %v914, %v983
      %v1016 = vadd.f32 %v915, %v984
      %v1017 = vadd.f32 %v916, %v985
      %v1018 = vadd.f32 %v917, %v986
      %v1019 = vadd.f32 %v918, %v987
      %v1020 = vadd.f32 %v919, %v988
      %v1021 = vadd.f32 %v920, %v989
      %v1022 = vadd.f32 %v921, %v990
      %v1023 = vadd.f32 %v922, %v991
      %v1024 = vadd.f32 %v923, %v992
      %v1025 = vadd.f32 %v924, %v993
      %v1026 = vadd.f32 %v925, %v994
      %v1027 = vadd.f32 %v926, %v995
      %v1028 = vadd.f32 %v927, %v996
      %v1029 = vadd.f32 %v928, %v997
      %v1030 = vadd.f32 %v929, %v998
      %v1031 = vadd.f32 %v930, %v999
      %v1032 = vadd.f32 %v931, %v1000
      %v1033 = vadd.f32 %v932, %v1001
      %v1034 = vld [vmem:[%s730 + $0x3] sm:$0xff]
      %v1035 = vld [vmem:[%s730 + $0xb] sm:$0xff]
      %v1036 = vld [vmem:[%s730 + $0x1b] sm:$0xff]
      %v1037 = vld [vmem:[%s730 + $0x23] sm:$0xff]
      %v1038 = vld [vmem:[%s730 + $0x33] sm:$0xff]
      %v1039 = vld [vmem:[%s730 + $0x3b] sm:$0xff]
      %v1040 = vld [vmem:[%s730 + $0x4b] sm:$0xff]
      %v1041 = vld [vmem:[%s730 + $0x53] sm:$0xff]
      %v1042 = vld [vmem:[%s730 + $0x63] sm:$0xff]
      %v1043 = vld [vmem:[%s730 + $0x6b] sm:$0xff]
      %v1044 = vld [vmem:[%s730 + $0x7b] sm:$0xff]
      %v1045 = vld [vmem:[%s730 + $0x83] sm:$0xff]
      %v1046 = vld [vmem:[%s730 + $0x93] sm:$0xff]
      %v1047 = vld [vmem:[%s730 + $0x9b] sm:$0xff]
      %v1048 = vld [vmem:[%s730 + $0xab] sm:$0xff]
      %v1049 = vld [vmem:[%s730 + $0xb3] sm:$0xff]
      %v1050 = vld [vmem:[%s730 + $0xc3] sm:$0xff]
      %v1051 = vld [vmem:[%s730 + $0xcb] sm:$0xff]
      %v1052 = vld [vmem:[%s730 + $0xdb] sm:$0xff]
      %v1053 = vld [vmem:[%s730 + $0xe3] sm:$0xff]
      %v1054 = vld [vmem:[%s730 + $0xf3] sm:$0xff]
      %v1055 = vld [vmem:[%s730 + $0xfb] sm:$0xff]
      %v1056 = vld [vmem:[%s730 + $0x10b] sm:$0xff]
      %v1057 = vld [vmem:[%s730 + $0x113] sm:$0xff]
      %v1058 = vld [vmem:[%s730 + $0x123] sm:$0xff]
      %v1059 = vld [vmem:[%s730 + $0x12b] sm:$0xff]
      %v1060 = vld [vmem:[%s730 + $0x13b] sm:$0xff]
      %v1061 = vld [vmem:[%s730 + $0x143] sm:$0xff]
      %v1062 = vld [vmem:[%s730 + $0x153] sm:$0xff]
      %v1063 = vld [vmem:[%s730 + $0x15b] sm:$0xff]
      %v1064 = vld [vmem:[%s730 + $0x16b] sm:$0xff]
      %v1065 = vld [vmem:[%s730 + $0x173] sm:$0xff]
      %v1066 = vld [vmem:[%s1 + $0x8] sm:$0x1]
      %v1067 = vlaneseq
      %v1068 = vshrl.u32 %v1067, 7
      %v1069 = vsub.s32 0, %v1068
      %v1070 = vrot.slane %v1066, %v1069
      %v1071 = vmul.f32 %v1034, %v1070
      %v1072 = vmul.f32 %v1035, %v1070
      %v1073 = vmul.f32 %v1036, %v1070
      %v1074 = vmul.f32 %v1037, %v1070
      %v1075 = vmul.f32 %v1038, %v1070
      %v1076 = vmul.f32 %v1039, %v1070
      %v1077 = vmul.f32 %v1040, %v1070
      %v1078 = vmul.f32 %v1041, %v1070
      %v1079 = vmul.f32 %v1042, %v1070
      %v1080 = vmul.f32 %v1043, %v1070
      %v1081 = vmul.f32 %v1044, %v1070
      %v1082 = vmul.f32 %v1045, %v1070
      %v1083 = vmul.f32 %v1046, %v1070
      %v1084 = vmul.f32 %v1047, %v1070
      %v1085 = vmul.f32 %v1048, %v1070
      %v1086 = vmul.f32 %v1049, %v1070
      %v1087 = vmul.f32 %v1050, %v1070
      %v1088 = vmul.f32 %v1051, %v1070
      %v1089 = vmul.f32 %v1052, %v1070
      %v1090 = vmul.f32 %v1053, %v1070
      %v1091 = vmul.f32 %v1054, %v1070
      %v1092 = vmul.f32 %v1055, %v1070
      %v1093 = vmul.f32 %v1056, %v1070
      %v1094 = vmul.f32 %v1057, %v1070
      %v1095 = vmul.f32 %v1058, %v1070
      %v1096 = vmul.f32 %v1059, %v1070
      %v1097 = vmul.f32 %v1060, %v1070
      %v1098 = vmul.f32 %v1061, %v1070
      %v1099 = vmul.f32 %v1062, %v1070
      %v1100 = vmul.f32 %v1063, %v1070
      %v1101 = vmul.f32 %v1064, %v1070
      %v1102 = vmul.f32 %v1065, %v1070
      %v1103 = vadd.f32 %v1002, %v1071
      %v1104 = vadd.f32 %v1003, %v1072
      %v1105 = vadd.f32 %v1004, %v1073
      %v1106 = vadd.f32 %v1005, %v1074
      %v1107 = vadd.f32 %v1006, %v1075
      %v1108 = vadd.f32 %v1007, %v1076
      %v1109 = vadd.f32 %v1008, %v1077
      %v1110 = vadd.f32 %v1009, %v1078
      %v1111 = vadd.f32 %v1010, %v1079
      %v1112 = vadd.f32 %v1011, %v1080
      %v1113 = vadd.f32 %v1012, %v1081
      %v1114 = vadd.f32 %v1013, %v1082
      %v1115 = vadd.f32 %v1014, %v1083
      %v1116 = vadd.f32 %v1015, %v1084
      %v1117 = vadd.f32 %v1016, %v1085
      %v1118 = vadd.f32 %v1017, %v1086
      %v1119 = vadd.f32 %v1018, %v1087
      %v1120 = vadd.f32 %v1019, %v1088
      %v1121 = vadd.f32 %v1020, %v1089
      %v1122 = vadd.f32 %v1021, %v1090
      %v1123 = vadd.f32 %v1022, %v1091
      %v1124 = vadd.f32 %v1023, %v1092
      %v1125 = vadd.f32 %v1024, %v1093
      %v1126 = vadd.f32 %v1025, %v1094
      %v1127 = vadd.f32 %v1026, %v1095
      %v1128 = vadd.f32 %v1027, %v1096
      %v1129 = vadd.f32 %v1028, %v1097
      %v1130 = vadd.f32 %v1029, %v1098
      %v1131 = vadd.f32 %v1030, %v1099
      %v1132 = vadd.f32 %v1031, %v1100
      %v1133 = vadd.f32 %v1032, %v1101
      %v1134 = vadd.f32 %v1033, %v1102
      %v1135 = vld [vmem:[%s730 + $0x4] sm:$0xff]
      %v1136 = vld [vmem:[%s730 + $0xc] sm:$0xff]
      %v1137 = vld [vmem:[%s730 + $0x1c] sm:$0xff]
      %v1138 = vld [vmem:[%s730 + $0x24] sm:$0xff]
      %v1139 = vld [vmem:[%s730 + $0x34] sm:$0xff]
      %v1140 = vld [vmem:[%s730 + $0x3c] sm:$0xff]
      %v1141 = vld [vmem:[%s730 + $0x4c] sm:$0xff]
      %v1142 = vld [vmem:[%s730 + $0x54] sm:$0xff]
      %v1143 = vld [vmem:[%s730 + $0x64] sm:$0xff]
      %v1144 = vld [vmem:[%s730 + $0x6c] sm:$0xff]
      %v1145 = vld [vmem:[%s730 + $0x7c] sm:$0xff]
      %v1146 = vld [vmem:[%s730 + $0x84] sm:$0xff]
      %v1147 = vld [vmem:[%s730 + $0x94] sm:$0xff]
      %v1148 = vld [vmem:[%s730 + $0x9c] sm:$0xff]
      %v1149 = vld [vmem:[%s730 + $0xac] sm:$0xff]
      %v1150 = vld [vmem:[%s730 + $0xb4] sm:$0xff]
      %v1151 = vld [vmem:[%s730 + $0xc4] sm:$0xff]
      %v1152 = vld [vmem:[%s730 + $0xcc] sm:$0xff]
      %v1153 = vld [vmem:[%s730 + $0xdc] sm:$0xff]
      %v1154 = vld [vmem:[%s730 + $0xe4] sm:$0xff]
      %v1155 = vld [vmem:[%s730 + $0xf4] sm:$0xff]
      %v1156 = vld [vmem:[%s730 + $0xfc] sm:$0xff]
      %v1157 = vld [vmem:[%s730 + $0x10c] sm:$0xff]
      %v1158 = vld [vmem:[%s730 + $0x114] sm:$0xff]
      %v1159 = vld [vmem:[%s730 + $0x124] sm:$0xff]
      %v1160 = vld [vmem:[%s730 + $0x12c] sm:$0xff]
      %v1161 = vld [vmem:[%s730 + $0x13c] sm:$0xff]
      %v1162 = vld [vmem:[%s730 + $0x144] sm:$0xff]
      %v1163 = vld [vmem:[%s730 + $0x154] sm:$0xff]
      %v1164 = vld [vmem:[%s730 + $0x15c] sm:$0xff]
      %v1165 = vld [vmem:[%s730 + $0x16c] sm:$0xff]
      %v1166 = vld [vmem:[%s730 + $0x174] sm:$0xff]
      %v1167 = vld [vmem:[%s1 + $0x9] sm:$0x1]
      %v1168 = vlaneseq
      %v1169 = vshrl.u32 %v1168, 7
      %v1170 = vsub.s32 0, %v1169
      %v1171 = vrot.slane %v1167, %v1170
      %v1172 = vmul.f32 %v1135, %v1171
      %v1173 = vmul.f32 %v1136, %v1171
      %v1174 = vmul.f32 %v1137, %v1171
      %v1175 = vmul.f32 %v1138, %v1171
      %v1176 = vmul.f32 %v1139, %v1171
      %v1177 = vmul.f32 %v1140, %v1171
      %v1178 = vmul.f32 %v1141, %v1171
      %v1179 = vmul.f32 %v1142, %v1171
      %v1180 = vmul.f32 %v1143, %v1171
      %v1181 = vmul.f32 %v1144, %v1171
      %v1182 = vmul.f32 %v1145, %v1171
      %v1183 = vmul.f32 %v1146, %v1171
      %v1184 = vmul.f32 %v1147, %v1171
      %v1185 = vmul.f32 %v1148, %v1171
      %v1186 = vmul.f32 %v1149, %v1171
      %v1187 = vmul.f32 %v1150, %v1171
      %v1188 = vmul.f32 %v1151, %v1171
      %v1189 = vmul.f32 %v1152, %v1171
      %v1190 = vmul.f32 %v1153, %v1171
      %v1191 = vmul.f32 %v1154, %v1171
      %v1192 = vmul.f32 %v1155, %v1171
      %v1193 = vmul.f32 %v1156, %v1171
      %v1194 = vmul.f32 %v1157, %v1171
      %v1195 = vmul.f32 %v1158, %v1171
      %v1196 = vmul.f32 %v1159, %v1171
      %v1197 = vmul.f32 %v1160, %v1171
      %v1198 = vmul.f32 %v1161, %v1171
      %v1199 = vmul.f32 %v1162, %v1171
      %v1200 = vmul.f32 %v1163, %v1171
      %v1201 = vmul.f32 %v1164, %v1171
      %v1202 = vmul.f32 %v1165, %v1171
      %v1203 = vmul.f32 %v1166, %v1171
      %v1204 = vadd.f32 %v1103, %v1172
      %v1205 = vadd.f32 %v1104, %v1173
      %v1206 = vadd.f32 %v1105, %v1174
      %v1207 = vadd.f32 %v1106, %v1175
      %v1208 = vadd.f32 %v1107, %v1176
      %v1209 = vadd.f32 %v1108, %v1177
      %v1210 = vadd.f32 %v1109, %v1178
      %v1211 = vadd.f32 %v1110, %v1179
      %v1212 = vadd.f32 %v1111, %v1180
      %v1213 = vadd.f32 %v1112, %v1181
      %v1214 = vadd.f32 %v1113, %v1182
      %v1215 = vadd.f32 %v1114, %v1183
      %v1216 = vadd.f32 %v1115, %v1184
      %v1217 = vadd.f32 %v1116, %v1185
      %v1218 = vadd.f32 %v1117, %v1186
      %v1219 = vadd.f32 %v1118, %v1187
      %v1220 = vadd.f32 %v1119, %v1188
      %v1221 = vadd.f32 %v1120, %v1189
      %v1222 = vadd.f32 %v1121, %v1190
      %v1223 = vadd.f32 %v1122, %v1191
      %v1224 = vadd.f32 %v1123, %v1192
      %v1225 = vadd.f32 %v1124, %v1193
      %v1226 = vadd.f32 %v1125, %v1194
      %v1227 = vadd.f32 %v1126, %v1195
      %v1228 = vadd.f32 %v1127, %v1196
      %v1229 = vadd.f32 %v1128, %v1197
      %v1230 = vadd.f32 %v1129, %v1198
      %v1231 = vadd.f32 %v1130, %v1199
      %v1232 = vadd.f32 %v1131, %v1200
      %v1233 = vadd.f32 %v1132, %v1201
      %v1234 = vadd.f32 %v1133, %v1202
      %v1235 = vadd.f32 %v1134, %v1203
      %s1236 = scalar_lea.vmem %s219, 48
      %v1237 = vld [vmem:[%s1236] sm:$0xff]
      %v1238 = vld [vmem:[%s1236 + $0x8] sm:$0xff]
      %v1239 = vld [vmem:[%s1236 + $0x18] sm:$0xff]
      %v1240 = vld [vmem:[%s1236 + $0x20] sm:$0xff]
      %v1241 = vld [vmem:[%s1236 + $0x30] sm:$0xff]
      %v1242 = vld [vmem:[%s1236 + $0x38] sm:$0xff]
      %v1243 = vld [vmem:[%s1236 + $0x48] sm:$0xff]
      %v1244 = vld [vmem:[%s1236 + $0x50] sm:$0xff]
      %v1245 = vld [vmem:[%s1236 + $0x60] sm:$0xff]
      %v1246 = vld [vmem:[%s1236 + $0x68] sm:$0xff]
      %v1247 = vld [vmem:[%s1236 + $0x78] sm:$0xff]
      %v1248 = vld [vmem:[%s1236 + $0x80] sm:$0xff]
      %v1249 = vld [vmem:[%s1236 + $0x90] sm:$0xff]
      %v1250 = vld [vmem:[%s1236 + $0x98] sm:$0xff]
      %v1251 = vld [vmem:[%s1236 + $0xa8] sm:$0xff]
      %v1252 = vld [vmem:[%s1236 + $0xb0] sm:$0xff]
      %v1253 = vld [vmem:[%s1236 + $0xc0] sm:$0xff]
      %v1254 = vld [vmem:[%s1236 + $0xc8] sm:$0xff]
      %v1255 = vld [vmem:[%s1236 + $0xd8] sm:$0xff]
      %v1256 = vld [vmem:[%s1236 + $0xe0] sm:$0xff]
      %v1257 = vld [vmem:[%s1236 + $0xf0] sm:$0xff]
      %v1258 = vld [vmem:[%s1236 + $0xf8] sm:$0xff]
      %v1259 = vld [vmem:[%s1236 + $0x108] sm:$0xff]
      %v1260 = vld [vmem:[%s1236 + $0x110] sm:$0xff]
      %v1261 = vld [vmem:[%s1236 + $0x120] sm:$0xff]
      %v1262 = vld [vmem:[%s1236 + $0x128] sm:$0xff]
      %v1263 = vld [vmem:[%s1236 + $0x138] sm:$0xff]
      %v1264 = vld [vmem:[%s1236 + $0x140] sm:$0xff]
      %v1265 = vld [vmem:[%s1236 + $0x150] sm:$0xff]
      %v1266 = vld [vmem:[%s1236 + $0x158] sm:$0xff]
      %v1267 = vld [vmem:[%s1236 + $0x168] sm:$0xff]
      %v1268 = vld [vmem:[%s1236 + $0x170] sm:$0xff]
      %v1269 = vld [vmem:[%s1 + $0xa] sm:$0x1]
      %v1270 = vlaneseq
      %v1271 = vshrl.u32 %v1270, 7
      %v1272 = vsub.s32 0, %v1271
      %v1273 = vrot.slane %v1269, %v1272
      %v1274 = vmul.f32 %v1237, %v1273
      %v1275 = vmul.f32 %v1238, %v1273
      %v1276 = vmul.f32 %v1239, %v1273
      %v1277 = vmul.f32 %v1240, %v1273
      %v1278 = vmul.f32 %v1241, %v1273
      %v1279 = vmul.f32 %v1242, %v1273
      %v1280 = vmul.f32 %v1243, %v1273
      %v1281 = vmul.f32 %v1244, %v1273
      %v1282 = vmul.f32 %v1245, %v1273
      %v1283 = vmul.f32 %v1246, %v1273
      %v1284 = vmul.f32 %v1247, %v1273
      %v1285 = vmul.f32 %v1248, %v1273
      %v1286 = vmul.f32 %v1249, %v1273
      %v1287 = vmul.f32 %v1250, %v1273
      %v1288 = vmul.f32 %v1251, %v1273
      %v1289 = vmul.f32 %v1252, %v1273
      %v1290 = vmul.f32 %v1253, %v1273
      %v1291 = vmul.f32 %v1254, %v1273
      %v1292 = vmul.f32 %v1255, %v1273
      %v1293 = vmul.f32 %v1256, %v1273
      %v1294 = vmul.f32 %v1257, %v1273
      %v1295 = vmul.f32 %v1258, %v1273
      %v1296 = vmul.f32 %v1259, %v1273
      %v1297 = vmul.f32 %v1260, %v1273
      %v1298 = vmul.f32 %v1261, %v1273
      %v1299 = vmul.f32 %v1262, %v1273
      %v1300 = vmul.f32 %v1263, %v1273
      %v1301 = vmul.f32 %v1264, %v1273
      %v1302 = vmul.f32 %v1265, %v1273
      %v1303 = vmul.f32 %v1266, %v1273
      %v1304 = vmul.f32 %v1267, %v1273
      %v1305 = vmul.f32 %v1268, %v1273
      %v1306 = vadd.f32 %v1204, %v1274
      %v1307 = vadd.f32 %v1205, %v1275
      %v1308 = vadd.f32 %v1206, %v1276
      %v1309 = vadd.f32 %v1207, %v1277
      %v1310 = vadd.f32 %v1208, %v1278
      %v1311 = vadd.f32 %v1209, %v1279
      %v1312 = vadd.f32 %v1210, %v1280
      %v1313 = vadd.f32 %v1211, %v1281
      %v1314 = vadd.f32 %v1212, %v1282
      %v1315 = vadd.f32 %v1213, %v1283
      %v1316 = vadd.f32 %v1214, %v1284
      %v1317 = vadd.f32 %v1215, %v1285
      %v1318 = vadd.f32 %v1216, %v1286
      %v1319 = vadd.f32 %v1217, %v1287
      %v1320 = vadd.f32 %v1218, %v1288
      %v1321 = vadd.f32 %v1219, %v1289
      %v1322 = vadd.f32 %v1220, %v1290
      %v1323 = vadd.f32 %v1221, %v1291
      %v1324 = vadd.f32 %v1222, %v1292
      %v1325 = vadd.f32 %v1223, %v1293
      %v1326 = vadd.f32 %v1224, %v1294
      %v1327 = vadd.f32 %v1225, %v1295
      %v1328 = vadd.f32 %v1226, %v1296
      %v1329 = vadd.f32 %v1227, %v1297
      %v1330 = vadd.f32 %v1228, %v1298
      %v1331 = vadd.f32 %v1229, %v1299
      %v1332 = vadd.f32 %v1230, %v1300
      %v1333 = vadd.f32 %v1231, %v1301
      %v1334 = vadd.f32 %v1232, %v1302
      %v1335 = vadd.f32 %v1233, %v1303
      %v1336 = vadd.f32 %v1234, %v1304
      %v1337 = vadd.f32 %v1235, %v1305
      %v1338 = vld [vmem:[%s1236 + $0x1] sm:$0xff]
      %v1339 = vld [vmem:[%s1236 + $0x9] sm:$0xff]
      %v1340 = vld [vmem:[%s1236 + $0x19] sm:$0xff]
      %v1341 = vld [vmem:[%s1236 + $0x21] sm:$0xff]
      %v1342 = vld [vmem:[%s1236 + $0x31] sm:$0xff]
      %v1343 = vld [vmem:[%s1236 + $0x39] sm:$0xff]
      %v1344 = vld [vmem:[%s1236 + $0x49] sm:$0xff]
      %v1345 = vld [vmem:[%s1236 + $0x51] sm:$0xff]
      %v1346 = vld [vmem:[%s1236 + $0x61] sm:$0xff]
      %v1347 = vld [vmem:[%s1236 + $0x69] sm:$0xff]
      %v1348 = vld [vmem:[%s1236 + $0x79] sm:$0xff]
      %v1349 = vld [vmem:[%s1236 + $0x81] sm:$0xff]
      %v1350 = vld [vmem:[%s1236 + $0x91] sm:$0xff]
      %v1351 = vld [vmem:[%s1236 + $0x99] sm:$0xff]
      %v1352 = vld [vmem:[%s1236 + $0xa9] sm:$0xff]
      %v1353 = vld [vmem:[%s1236 + $0xb1] sm:$0xff]
      %v1354 = vld [vmem:[%s1236 + $0xc1] sm:$0xff]
      %v1355 = vld [vmem:[%s1236 + $0xc9] sm:$0xff]
      %v1356 = vld [vmem:[%s1236 + $0xd9] sm:$0xff]
      %v1357 = vld [vmem:[%s1236 + $0xe1] sm:$0xff]
      %v1358 = vld [vmem:[%s1236 + $0xf1] sm:$0xff]
      %v1359 = vld [vmem:[%s1236 + $0xf9] sm:$0xff]
      %v1360 = vld [vmem:[%s1236 + $0x109] sm:$0xff]
      %v1361 = vld [vmem:[%s1236 + $0x111] sm:$0xff]
      %v1362 = vld [vmem:[%s1236 + $0x121] sm:$0xff]
      %v1363 = vld [vmem:[%s1236 + $0x129] sm:$0xff]
      %v1364 = vld [vmem:[%s1236 + $0x139] sm:$0xff]
      %v1365 = vld [vmem:[%s1236 + $0x141] sm:$0xff]
      %v1366 = vld [vmem:[%s1236 + $0x151] sm:$0xff]
      %v1367 = vld [vmem:[%s1236 + $0x159] sm:$0xff]
      %v1368 = vld [vmem:[%s1236 + $0x169] sm:$0xff]
      %v1369 = vld [vmem:[%s1236 + $0x171] sm:$0xff]
      %v1370 = vld [vmem:[%s1 + $0xb] sm:$0x1]
      %v1371 = vlaneseq
      %v1372 = vshrl.u32 %v1371, 7
      %v1373 = vsub.s32 0, %v1372
      %v1374 = vrot.slane %v1370, %v1373
      %v1375 = vmul.f32 %v1338, %v1374
      %v1376 = vmul.f32 %v1339, %v1374
      %v1377 = vmul.f32 %v1340, %v1374
      %v1378 = vmul.f32 %v1341, %v1374
      %v1379 = vmul.f32 %v1342, %v1374
      %v1380 = vmul.f32 %v1343, %v1374
      %v1381 = vmul.f32 %v1344, %v1374
      %v1382 = vmul.f32 %v1345, %v1374
      %v1383 = vmul.f32 %v1346, %v1374
      %v1384 = vmul.f32 %v1347, %v1374
      %v1385 = vmul.f32 %v1348, %v1374
      %v1386 = vmul.f32 %v1349, %v1374
      %v1387 = vmul.f32 %v1350, %v1374
      %v1388 = vmul.f32 %v1351, %v1374
      %v1389 = vmul.f32 %v1352, %v1374
      %v1390 = vmul.f32 %v1353, %v1374
      %v1391 = vmul.f32 %v1354, %v1374
      %v1392 = vmul.f32 %v1355, %v1374
      %v1393 = vmul.f32 %v1356, %v1374
      %v1394 = vmul.f32 %v1357, %v1374
      %v1395 = vmul.f32 %v1358, %v1374
      %v1396 = vmul.f32 %v1359, %v1374
      %v1397 = vmul.f32 %v1360, %v1374
      %v1398 = vmul.f32 %v1361, %v1374
      %v1399 = vmul.f32 %v1362, %v1374
      %v1400 = vmul.f32 %v1363, %v1374
      %v1401 = vmul.f32 %v1364, %v1374
      %v1402 = vmul.f32 %v1365, %v1374
      %v1403 = vmul.f32 %v1366, %v1374
      %v1404 = vmul.f32 %v1367, %v1374
      %v1405 = vmul.f32 %v1368, %v1374
      %v1406 = vmul.f32 %v1369, %v1374
      %v1407 = vadd.f32 %v1306, %v1375
      %v1408 = vadd.f32 %v1307, %v1376
      %v1409 = vadd.f32 %v1308, %v1377
      %v1410 = vadd.f32 %v1309, %v1378
      %v1411 = vadd.f32 %v1310, %v1379
      %v1412 = vadd.f32 %v1311, %v1380
      %v1413 = vadd.f32 %v1312, %v1381
      %v1414 = vadd.f32 %v1313, %v1382
      %v1415 = vadd.f32 %v1314, %v1383
      %v1416 = vadd.f32 %v1315, %v1384
      %v1417 = vadd.f32 %v1316, %v1385
      %v1418 = vadd.f32 %v1317, %v1386
      %v1419 = vadd.f32 %v1318, %v1387
      %v1420 = vadd.f32 %v1319, %v1388
      %v1421 = vadd.f32 %v1320, %v1389
      %v1422 = vadd.f32 %v1321, %v1390
      %v1423 = vadd.f32 %v1322, %v1391
      %v1424 = vadd.f32 %v1323, %v1392
      %v1425 = vadd.f32 %v1324, %v1393
      %v1426 = vadd.f32 %v1325, %v1394
      %v1427 = vadd.f32 %v1326, %v1395
      %v1428 = vadd.f32 %v1327, %v1396
      %v1429 = vadd.f32 %v1328, %v1397
      %v1430 = vadd.f32 %v1329, %v1398
      %v1431 = vadd.f32 %v1330, %v1399
      %v1432 = vadd.f32 %v1331, %v1400
      %v1433 = vadd.f32 %v1332, %v1401
      %v1434 = vadd.f32 %v1333, %v1402
      %v1435 = vadd.f32 %v1334, %v1403
      %v1436 = vadd.f32 %v1335, %v1404
      %v1437 = vadd.f32 %v1336, %v1405
      %v1438 = vadd.f32 %v1337, %v1406
      %v1439 = vld [vmem:[%s1236 + $0x2] sm:$0xff]
      %v1440 = vld [vmem:[%s1236 + $0xa] sm:$0xff]
      %v1441 = vld [vmem:[%s1236 + $0x1a] sm:$0xff]
      %v1442 = vld [vmem:[%s1236 + $0x22] sm:$0xff]
      %v1443 = vld [vmem:[%s1236 + $0x32] sm:$0xff]
      %v1444 = vld [vmem:[%s1236 + $0x3a] sm:$0xff]
      %v1445 = vld [vmem:[%s1236 + $0x4a] sm:$0xff]
      %v1446 = vld [vmem:[%s1236 + $0x52] sm:$0xff]
      %v1447 = vld [vmem:[%s1236 + $0x62] sm:$0xff]
      %v1448 = vld [vmem:[%s1236 + $0x6a] sm:$0xff]
      %v1449 = vld [vmem:[%s1236 + $0x7a] sm:$0xff]
      %v1450 = vld [vmem:[%s1236 + $0x82] sm:$0xff]
      %v1451 = vld [vmem:[%s1236 + $0x92] sm:$0xff]
      %v1452 = vld [vmem:[%s1236 + $0x9a] sm:$0xff]
      %v1453 = vld [vmem:[%s1236 + $0xaa] sm:$0xff]
      %v1454 = vld [vmem:[%s1236 + $0xb2] sm:$0xff]
      %v1455 = vld [vmem:[%s1236 + $0xc2] sm:$0xff]
      %v1456 = vld [vmem:[%s1236 + $0xca] sm:$0xff]
      %v1457 = vld [vmem:[%s1236 + $0xda] sm:$0xff]
      %v1458 = vld [vmem:[%s1236 + $0xe2] sm:$0xff]
      %v1459 = vld [vmem:[%s1236 + $0xf2] sm:$0xff]
      %v1460 = vld [vmem:[%s1236 + $0xfa] sm:$0xff]
      %v1461 = vld [vmem:[%s1236 + $0x10a] sm:$0xff]
      %v1462 = vld [vmem:[%s1236 + $0x112] sm:$0xff]
      %v1463 = vld [vmem:[%s1236 + $0x122] sm:$0xff]
      %v1464 = vld [vmem:[%s1236 + $0x12a] sm:$0xff]
      %v1465 = vld [vmem:[%s1236 + $0x13a] sm:$0xff]
      %v1466 = vld [vmem:[%s1236 + $0x142] sm:$0xff]
      %v1467 = vld [vmem:[%s1236 + $0x152] sm:$0xff]
      %v1468 = vld [vmem:[%s1236 + $0x15a] sm:$0xff]
      %v1469 = vld [vmem:[%s1236 + $0x16a] sm:$0xff]
      %v1470 = vld [vmem:[%s1236 + $0x172] sm:$0xff]
      %v1471 = vld [vmem:[%s1 + $0xc] sm:$0x1]
      %v1472 = vlaneseq
      %v1473 = vshrl.u32 %v1472, 7
      %v1474 = vsub.s32 0, %v1473
      %v1475 = vrot.slane %v1471, %v1474
      %v1476 = vmul.f32 %v1439, %v1475
      %v1477 = vmul.f32 %v1440, %v1475
      %v1478 = vmul.f32 %v1441, %v1475
      %v1479 = vmul.f32 %v1442, %v1475
      %v1480 = vmul.f32 %v1443, %v1475
      %v1481 = vmul.f32 %v1444, %v1475
      %v1482 = vmul.f32 %v1445, %v1475
      %v1483 = vmul.f32 %v1446, %v1475
      %v1484 = vmul.f32 %v1447, %v1475
      %v1485 = vmul.f32 %v1448, %v1475
      %v1486 = vmul.f32 %v1449, %v1475
      %v1487 = vmul.f32 %v1450, %v1475
      %v1488 = vmul.f32 %v1451, %v1475
      %v1489 = vmul.f32 %v1452, %v1475
      %v1490 = vmul.f32 %v1453, %v1475
      %v1491 = vmul.f32 %v1454, %v1475
      %v1492 = vmul.f32 %v1455, %v1475
      %v1493 = vmul.f32 %v1456, %v1475
      %v1494 = vmul.f32 %v1457, %v1475
      %v1495 = vmul.f32 %v1458, %v1475
      %v1496 = vmul.f32 %v1459, %v1475
      %v1497 = vmul.f32 %v1460, %v1475
      %v1498 = vmul.f32 %v1461, %v1475
      %v1499 = vmul.f32 %v1462, %v1475
      %v1500 = vmul.f32 %v1463, %v1475
      %v1501 = vmul.f32 %v1464, %v1475
      %v1502 = vmul.f32 %v1465, %v1475
      %v1503 = vmul.f32 %v1466, %v1475
      %v1504 = vmul.f32 %v1467, %v1475
      %v1505 = vmul.f32 %v1468, %v1475
      %v1506 = vmul.f32 %v1469, %v1475
      %v1507 = vmul.f32 %v1470, %v1475
      %v1508 = vadd.f32 %v1407, %v1476
      %v1509 = vadd.f32 %v1408, %v1477
      %v1510 = vadd.f32 %v1409, %v1478
      %v1511 = vadd.f32 %v1410, %v1479
      %v1512 = vadd.f32 %v1411, %v1480
      %v1513 = vadd.f32 %v1412, %v1481
      %v1514 = vadd.f32 %v1413, %v1482
      %v1515 = vadd.f32 %v1414, %v1483
      %v1516 = vadd.f32 %v1415, %v1484
      %v1517 = vadd.f32 %v1416, %v1485
      %v1518 = vadd.f32 %v1417, %v1486
      %v1519 = vadd.f32 %v1418, %v1487
      %v1520 = vadd.f32 %v1419, %v1488
      %v1521 = vadd.f32 %v1420, %v1489
      %v1522 = vadd.f32 %v1421, %v1490
      %v1523 = vadd.f32 %v1422, %v1491
      %v1524 = vadd.f32 %v1423, %v1492
      %v1525 = vadd.f32 %v1424, %v1493
      %v1526 = vadd.f32 %v1425, %v1494
      %v1527 = vadd.f32 %v1426, %v1495
      %v1528 = vadd.f32 %v1427, %v1496
      %v1529 = vadd.f32 %v1428, %v1497
      %v1530 = vadd.f32 %v1429, %v1498
      %v1531 = vadd.f32 %v1430, %v1499
      %v1532 = vadd.f32 %v1431, %v1500
      %v1533 = vadd.f32 %v1432, %v1501
      %v1534 = vadd.f32 %v1433, %v1502
      %v1535 = vadd.f32 %v1434, %v1503
      %v1536 = vadd.f32 %v1435, %v1504
      %v1537 = vadd.f32 %v1436, %v1505
      %v1538 = vadd.f32 %v1437, %v1506
      %v1539 = vadd.f32 %v1438, %v1507
      %v1540 = vld [vmem:[%s1236 + $0x3] sm:$0xff]
      %v1541 = vld [vmem:[%s1236 + $0xb] sm:$0xff]
      %v1542 = vld [vmem:[%s1236 + $0x1b] sm:$0xff]
      %v1543 = vld [vmem:[%s1236 + $0x23] sm:$0xff]
      %v1544 = vld [vmem:[%s1236 + $0x33] sm:$0xff]
      %v1545 = vld [vmem:[%s1236 + $0x3b] sm:$0xff]
      %v1546 = vld [vmem:[%s1236 + $0x4b] sm:$0xff]
      %v1547 = vld [vmem:[%s1236 + $0x53] sm:$0xff]
      %v1548 = vld [vmem:[%s1236 + $0x63] sm:$0xff]
      %v1549 = vld [vmem:[%s1236 + $0x6b] sm:$0xff]
      %v1550 = vld [vmem:[%s1236 + $0x7b] sm:$0xff]
      %v1551 = vld [vmem:[%s1236 + $0x83] sm:$0xff]
      %v1552 = vld [vmem:[%s1236 + $0x93] sm:$0xff]
      %v1553 = vld [vmem:[%s1236 + $0x9b] sm:$0xff]
      %v1554 = vld [vmem:[%s1236 + $0xab] sm:$0xff]
      %v1555 = vld [vmem:[%s1236 + $0xb3] sm:$0xff]
      %v1556 = vld [vmem:[%s1236 + $0xc3] sm:$0xff]
      %v1557 = vld [vmem:[%s1236 + $0xcb] sm:$0xff]
      %v1558 = vld [vmem:[%s1236 + $0xdb] sm:$0xff]
      %v1559 = vld [vmem:[%s1236 + $0xe3] sm:$0xff]
      %v1560 = vld [vmem:[%s1236 + $0xf3] sm:$0xff]
      %v1561 = vld [vmem:[%s1236 + $0xfb] sm:$0xff]
      %v1562 = vld [vmem:[%s1236 + $0x10b] sm:$0xff]
      %v1563 = vld [vmem:[%s1236 + $0x113] sm:$0xff]
      %v1564 = vld [vmem:[%s1236 + $0x123] sm:$0xff]
      %v1565 = vld [vmem:[%s1236 + $0x12b] sm:$0xff]
      %v1566 = vld [vmem:[%s1236 + $0x13b] sm:$0xff]
      %v1567 = vld [vmem:[%s1236 + $0x143] sm:$0xff]
      %v1568 = vld [vmem:[%s1236 + $0x153] sm:$0xff]
      %v1569 = vld [vmem:[%s1236 + $0x15b] sm:$0xff]
      %v1570 = vld [vmem:[%s1236 + $0x16b] sm:$0xff]
      %v1571 = vld [vmem:[%s1236 + $0x173] sm:$0xff]
      %v1572 = vld [vmem:[%s1 + $0xd] sm:$0x1]
      %v1573 = vlaneseq
      %v1574 = vshrl.u32 %v1573, 7
      %v1575 = vsub.s32 0, %v1574
      %v1576 = vrot.slane %v1572, %v1575
      %v1577 = vmul.f32 %v1540, %v1576
      %v1578 = vmul.f32 %v1541, %v1576
      %v1579 = vmul.f32 %v1542, %v1576
      %v1580 = vmul.f32 %v1543, %v1576
      %v1581 = vmul.f32 %v1544, %v1576
      %v1582 = vmul.f32 %v1545, %v1576
      %v1583 = vmul.f32 %v1546, %v1576
      %v1584 = vmul.f32 %v1547, %v1576
      %v1585 = vmul.f32 %v1548, %v1576
      %v1586 = vmul.f32 %v1549, %v1576
      %v1587 = vmul.f32 %v1550, %v1576
      %v1588 = vmul.f32 %v1551, %v1576
      %v1589 = vmul.f32 %v1552, %v1576
      %v1590 = vmul.f32 %v1553, %v1576
      %v1591 = vmul.f32 %v1554, %v1576
      %v1592 = vmul.f32 %v1555, %v1576
      %v1593 = vmul.f32 %v1556, %v1576
      %v1594 = vmul.f32 %v1557, %v1576
      %v1595 = vmul.f32 %v1558, %v1576
      %v1596 = vmul.f32 %v1559, %v1576
      %v1597 = vmul.f32 %v1560, %v1576
      %v1598 = vmul.f32 %v1561, %v1576
      %v1599 = vmul.f32 %v1562, %v1576
      %v1600 = vmul.f32 %v1563, %v1576
      %v1601 = vmul.f32 %v1564, %v1576
      %v1602 = vmul.f32 %v1565, %v1576
      %v1603 = vmul.f32 %v1566, %v1576
      %v1604 = vmul.f32 %v1567, %v1576
      %v1605 = vmul.f32 %v1568, %v1576
      %v1606 = vmul.f32 %v1569, %v1576
      %v1607 = vmul.f32 %v1570, %v1576
      %v1608 = vmul.f32 %v1571, %v1576
      %v1609 = vadd.f32 %v1508, %v1577
      %v1610 = vadd.f32 %v1509, %v1578
      %v1611 = vadd.f32 %v1510, %v1579
      %v1612 = vadd.f32 %v1511, %v1580
      %v1613 = vadd.f32 %v1512, %v1581
      %v1614 = vadd.f32 %v1513, %v1582
      %v1615 = vadd.f32 %v1514, %v1583
      %v1616 = vadd.f32 %v1515, %v1584
      %v1617 = vadd.f32 %v1516, %v1585
      %v1618 = vadd.f32 %v1517, %v1586
      %v1619 = vadd.f32 %v1518, %v1587
      %v1620 = vadd.f32 %v1519, %v1588
      %v1621 = vadd.f32 %v1520, %v1589
      %v1622 = vadd.f32 %v1521, %v1590
      %v1623 = vadd.f32 %v1522, %v1591
      %v1624 = vadd.f32 %v1523, %v1592
      %v1625 = vadd.f32 %v1524, %v1593
      %v1626 = vadd.f32 %v1525, %v1594
      %v1627 = vadd.f32 %v1526, %v1595
      %v1628 = vadd.f32 %v1527, %v1596
      %v1629 = vadd.f32 %v1528, %v1597
      %v1630 = vadd.f32 %v1529, %v1598
      %v1631 = vadd.f32 %v1530, %v1599
      %v1632 = vadd.f32 %v1531, %v1600
      %v1633 = vadd.f32 %v1532, %v1601
      %v1634 = vadd.f32 %v1533, %v1602
      %v1635 = vadd.f32 %v1534, %v1603
      %v1636 = vadd.f32 %v1535, %v1604
      %v1637 = vadd.f32 %v1536, %v1605
      %v1638 = vadd.f32 %v1537, %v1606
      %v1639 = vadd.f32 %v1538, %v1607
      %v1640 = vadd.f32 %v1539, %v1608
      %v1641 = vld [vmem:[%s1236 + $0x4] sm:$0xff]
      %v1642 = vld [vmem:[%s1236 + $0xc] sm:$0xff]
      %v1643 = vld [vmem:[%s1236 + $0x1c] sm:$0xff]
      %v1644 = vld [vmem:[%s1236 + $0x24] sm:$0xff]
      %v1645 = vld [vmem:[%s1236 + $0x34] sm:$0xff]
      %v1646 = vld [vmem:[%s1236 + $0x3c] sm:$0xff]
      %v1647 = vld [vmem:[%s1236 + $0x4c] sm:$0xff]
      %v1648 = vld [vmem:[%s1236 + $0x54] sm:$0xff]
      %v1649 = vld [vmem:[%s1236 + $0x64] sm:$0xff]
      %v1650 = vld [vmem:[%s1236 + $0x6c] sm:$0xff]
      %v1651 = vld [vmem:[%s1236 + $0x7c] sm:$0xff]
      %v1652 = vld [vmem:[%s1236 + $0x84] sm:$0xff]
      %v1653 = vld [vmem:[%s1236 + $0x94] sm:$0xff]
      %v1654 = vld [vmem:[%s1236 + $0x9c] sm:$0xff]
      %v1655 = vld [vmem:[%s1236 + $0xac] sm:$0xff]
      %v1656 = vld [vmem:[%s1236 + $0xb4] sm:$0xff]
      %v1657 = vld [vmem:[%s1236 + $0xc4] sm:$0xff]
      %v1658 = vld [vmem:[%s1236 + $0xcc] sm:$0xff]
      %v1659 = vld [vmem:[%s1236 + $0xdc] sm:$0xff]
      %v1660 = vld [vmem:[%s1236 + $0xe4] sm:$0xff]
      %v1661 = vld [vmem:[%s1236 + $0xf4] sm:$0xff]
      %v1662 = vld [vmem:[%s1236 + $0xfc] sm:$0xff]
      %v1663 = vld [vmem:[%s1236 + $0x10c] sm:$0xff]
      %v1664 = vld [vmem:[%s1236 + $0x114] sm:$0xff]
      %v1665 = vld [vmem:[%s1236 + $0x124] sm:$0xff]
      %v1666 = vld [vmem:[%s1236 + $0x12c] sm:$0xff]
      %v1667 = vld [vmem:[%s1236 + $0x13c] sm:$0xff]
      %v1668 = vld [vmem:[%s1236 + $0x144] sm:$0xff]
      %v1669 = vld [vmem:[%s1236 + $0x154] sm:$0xff]
      %v1670 = vld [vmem:[%s1236 + $0x15c] sm:$0xff]
      %v1671 = vld [vmem:[%s1236 + $0x16c] sm:$0xff]
      %v1672 = vld [vmem:[%s1236 + $0x174] sm:$0xff]
      %v1673 = vld [vmem:[%s1 + $0xe] sm:$0x1]
      %v1674 = vlaneseq
      %v1675 = vshrl.u32 %v1674, 7
      %v1676 = vsub.s32 0, %v1675
      %v1677 = vrot.slane %v1673, %v1676
      %v1678 = vmul.f32 %v1641, %v1677
      %v1679 = vmul.f32 %v1642, %v1677
      %v1680 = vmul.f32 %v1643, %v1677
      %v1681 = vmul.f32 %v1644, %v1677
      %v1682 = vmul.f32 %v1645, %v1677
      %v1683 = vmul.f32 %v1646, %v1677
      %v1684 = vmul.f32 %v1647, %v1677
      %v1685 = vmul.f32 %v1648, %v1677
      %v1686 = vmul.f32 %v1649, %v1677
      %v1687 = vmul.f32 %v1650, %v1677
      %v1688 = vmul.f32 %v1651, %v1677
      %v1689 = vmul.f32 %v1652, %v1677
      %v1690 = vmul.f32 %v1653, %v1677
      %v1691 = vmul.f32 %v1654, %v1677
      %v1692 = vmul.f32 %v1655, %v1677
      %v1693 = vmul.f32 %v1656, %v1677
      %v1694 = vmul.f32 %v1657, %v1677
      %v1695 = vmul.f32 %v1658, %v1677
      %v1696 = vmul.f32 %v1659, %v1677
      %v1697 = vmul.f32 %v1660, %v1677
      %v1698 = vmul.f32 %v1661, %v1677
      %v1699 = vmul.f32 %v1662, %v1677
      %v1700 = vmul.f32 %v1663, %v1677
      %v1701 = vmul.f32 %v1664, %v1677
      %v1702 = vmul.f32 %v1665, %v1677
      %v1703 = vmul.f32 %v1666, %v1677
      %v1704 = vmul.f32 %v1667, %v1677
      %v1705 = vmul.f32 %v1668, %v1677
      %v1706 = vmul.f32 %v1669, %v1677
      %v1707 = vmul.f32 %v1670, %v1677
      %v1708 = vmul.f32 %v1671, %v1677
      %v1709 = vmul.f32 %v1672, %v1677
      %v1710 = vadd.f32 %v1609, %v1678
      %v1711 = vadd.f32 %v1610, %v1679
      %v1712 = vadd.f32 %v1611, %v1680
      %v1713 = vadd.f32 %v1612, %v1681
      %v1714 = vadd.f32 %v1613, %v1682
      %v1715 = vadd.f32 %v1614, %v1683
      %v1716 = vadd.f32 %v1615, %v1684
      %v1717 = vadd.f32 %v1616, %v1685
      %v1718 = vadd.f32 %v1617, %v1686
      %v1719 = vadd.f32 %v1618, %v1687
      %v1720 = vadd.f32 %v1619, %v1688
      %v1721 = vadd.f32 %v1620, %v1689
      %v1722 = vadd.f32 %v1621, %v1690
      %v1723 = vadd.f32 %v1622, %v1691
      %v1724 = vadd.f32 %v1623, %v1692
      %v1725 = vadd.f32 %v1624, %v1693
      %v1726 = vadd.f32 %v1625, %v1694
      %v1727 = vadd.f32 %v1626, %v1695
      %v1728 = vadd.f32 %v1627, %v1696
      %v1729 = vadd.f32 %v1628, %v1697
      %v1730 = vadd.f32 %v1629, %v1698
      %v1731 = vadd.f32 %v1630, %v1699
      %v1732 = vadd.f32 %v1631, %v1700
      %v1733 = vadd.f32 %v1632, %v1701
      %v1734 = vadd.f32 %v1633, %v1702
      %v1735 = vadd.f32 %v1634, %v1703
      %v1736 = vadd.f32 %v1635, %v1704
      %v1737 = vadd.f32 %v1636, %v1705
      %v1738 = vadd.f32 %v1637, %v1706
      %v1739 = vadd.f32 %v1638, %v1707
      %v1740 = vadd.f32 %v1639, %v1708
      %v1741 = vadd.f32 %v1640, %v1709
      %s1742 = scalar_lea.vmem %s219, 72
      %v1743 = vld [vmem:[%s1742] sm:$0xff]
      %v1744 = vld [vmem:[%s1742 + $0x8] sm:$0xff]
      %v1745 = vld [vmem:[%s1742 + $0x18] sm:$0xff]
      %v1746 = vld [vmem:[%s1742 + $0x20] sm:$0xff]
      %v1747 = vld [vmem:[%s1742 + $0x30] sm:$0xff]
      %v1748 = vld [vmem:[%s1742 + $0x38] sm:$0xff]
      %v1749 = vld [vmem:[%s1742 + $0x48] sm:$0xff]
      %v1750 = vld [vmem:[%s1742 + $0x50] sm:$0xff]
      %v1751 = vld [vmem:[%s1742 + $0x60] sm:$0xff]
      %v1752 = vld [vmem:[%s1742 + $0x68] sm:$0xff]
      %v1753 = vld [vmem:[%s1742 + $0x78] sm:$0xff]
      %v1754 = vld [vmem:[%s1742 + $0x80] sm:$0xff]
      %v1755 = vld [vmem:[%s1742 + $0x90] sm:$0xff]
      %v1756 = vld [vmem:[%s1742 + $0x98] sm:$0xff]
      %v1757 = vld [vmem:[%s1742 + $0xa8] sm:$0xff]
      %v1758 = vld [vmem:[%s1742 + $0xb0] sm:$0xff]
      %v1759 = vld [vmem:[%s1742 + $0xc0] sm:$0xff]
      %v1760 = vld [vmem:[%s1742 + $0xc8] sm:$0xff]
      %v1761 = vld [vmem:[%s1742 + $0xd8] sm:$0xff]
      %v1762 = vld [vmem:[%s1742 + $0xe0] sm:$0xff]
      %v1763 = vld [vmem:[%s1742 + $0xf0] sm:$0xff]
      %v1764 = vld [vmem:[%s1742 + $0xf8] sm:$0xff]
      %v1765 = vld [vmem:[%s1742 + $0x108] sm:$0xff]
      %v1766 = vld [vmem:[%s1742 + $0x110] sm:$0xff]
      %v1767 = vld [vmem:[%s1742 + $0x120] sm:$0xff]
      %v1768 = vld [vmem:[%s1742 + $0x128] sm:$0xff]
      %v1769 = vld [vmem:[%s1742 + $0x138] sm:$0xff]
      %v1770 = vld [vmem:[%s1742 + $0x140] sm:$0xff]
      %v1771 = vld [vmem:[%s1742 + $0x150] sm:$0xff]
      %v1772 = vld [vmem:[%s1742 + $0x158] sm:$0xff]
      %v1773 = vld [vmem:[%s1742 + $0x168] sm:$0xff]
      %v1774 = vld [vmem:[%s1742 + $0x170] sm:$0xff]
      %v1775 = vld [vmem:[%s1 + $0xf] sm:$0x1]
      %v1776 = vlaneseq
      %v1777 = vshrl.u32 %v1776, 7
      %v1778 = vsub.s32 0, %v1777
      %v1779 = vrot.slane %v1775, %v1778
      %v1780 = vmul.f32 %v1743, %v1779
      %v1781 = vmul.f32 %v1744, %v1779
      %v1782 = vmul.f32 %v1745, %v1779
      %v1783 = vmul.f32 %v1746, %v1779
      %v1784 = vmul.f32 %v1747, %v1779
      %v1785 = vmul.f32 %v1748, %v1779
      %v1786 = vmul.f32 %v1749, %v1779
      %v1787 = vmul.f32 %v1750, %v1779
      %v1788 = vmul.f32 %v1751, %v1779
      %v1789 = vmul.f32 %v1752, %v1779
      %v1790 = vmul.f32 %v1753, %v1779
      %v1791 = vmul.f32 %v1754, %v1779
      %v1792 = vmul.f32 %v1755, %v1779
      %v1793 = vmul.f32 %v1756, %v1779
      %v1794 = vmul.f32 %v1757, %v1779
      %v1795 = vmul.f32 %v1758, %v1779
      %v1796 = vmul.f32 %v1759, %v1779
      %v1797 = vmul.f32 %v1760, %v1779
      %v1798 = vmul.f32 %v1761, %v1779
      %v1799 = vmul.f32 %v1762, %v1779
      %v1800 = vmul.f32 %v1763, %v1779
      %v1801 = vmul.f32 %v1764, %v1779
      %v1802 = vmul.f32 %v1765, %v1779
      %v1803 = vmul.f32 %v1766, %v1779
      %v1804 = vmul.f32 %v1767, %v1779
      %v1805 = vmul.f32 %v1768, %v1779
      %v1806 = vmul.f32 %v1769, %v1779
      %v1807 = vmul.f32 %v1770, %v1779
      %v1808 = vmul.f32 %v1771, %v1779
      %v1809 = vmul.f32 %v1772, %v1779
      %v1810 = vmul.f32 %v1773, %v1779
      %v1811 = vmul.f32 %v1774, %v1779
      %v1812 = vadd.f32 %v1710, %v1780
      %v1813 = vadd.f32 %v1711, %v1781
      %v1814 = vadd.f32 %v1712, %v1782
      %v1815 = vadd.f32 %v1713, %v1783
      %v1816 = vadd.f32 %v1714, %v1784
      %v1817 = vadd.f32 %v1715, %v1785
      %v1818 = vadd.f32 %v1716, %v1786
      %v1819 = vadd.f32 %v1717, %v1787
      %v1820 = vadd.f32 %v1718, %v1788
      %v1821 = vadd.f32 %v1719, %v1789
      %v1822 = vadd.f32 %v1720, %v1790
      %v1823 = vadd.f32 %v1721, %v1791
      %v1824 = vadd.f32 %v1722, %v1792
      %v1825 = vadd.f32 %v1723, %v1793
      %v1826 = vadd.f32 %v1724, %v1794
      %v1827 = vadd.f32 %v1725, %v1795
      %v1828 = vadd.f32 %v1726, %v1796
      %v1829 = vadd.f32 %v1727, %v1797
      %v1830 = vadd.f32 %v1728, %v1798
      %v1831 = vadd.f32 %v1729, %v1799
      %v1832 = vadd.f32 %v1730, %v1800
      %v1833 = vadd.f32 %v1731, %v1801
      %v1834 = vadd.f32 %v1732, %v1802
      %v1835 = vadd.f32 %v1733, %v1803
      %v1836 = vadd.f32 %v1734, %v1804
      %v1837 = vadd.f32 %v1735, %v1805
      %v1838 = vadd.f32 %v1736, %v1806
      %v1839 = vadd.f32 %v1737, %v1807
      %v1840 = vadd.f32 %v1738, %v1808
      %v1841 = vadd.f32 %v1739, %v1809
      %v1842 = vadd.f32 %v1740, %v1810
      %v1843 = vadd.f32 %v1741, %v1811
      %v1844 = vld [vmem:[%s1742 + $0x1] sm:$0xff]
      %v1845 = vld [vmem:[%s1742 + $0x9] sm:$0xff]
      %v1846 = vld [vmem:[%s1742 + $0x19] sm:$0xff]
      %v1847 = vld [vmem:[%s1742 + $0x21] sm:$0xff]
      %v1848 = vld [vmem:[%s1742 + $0x31] sm:$0xff]
      %v1849 = vld [vmem:[%s1742 + $0x39] sm:$0xff]
      %v1850 = vld [vmem:[%s1742 + $0x49] sm:$0xff]
      %v1851 = vld [vmem:[%s1742 + $0x51] sm:$0xff]
      %v1852 = vld [vmem:[%s1742 + $0x61] sm:$0xff]
      %v1853 = vld [vmem:[%s1742 + $0x69] sm:$0xff]
      %v1854 = vld [vmem:[%s1742 + $0x79] sm:$0xff]
      %v1855 = vld [vmem:[%s1742 + $0x81] sm:$0xff]
      %v1856 = vld [vmem:[%s1742 + $0x91] sm:$0xff]
      %v1857 = vld [vmem:[%s1742 + $0x99] sm:$0xff]
      %v1858 = vld [vmem:[%s1742 + $0xa9] sm:$0xff]
      %v1859 = vld [vmem:[%s1742 + $0xb1] sm:$0xff]
      %v1860 = vld [vmem:[%s1742 + $0xc1] sm:$0xff]
      %v1861 = vld [vmem:[%s1742 + $0xc9] sm:$0xff]
      %v1862 = vld [vmem:[%s1742 + $0xd9] sm:$0xff]
      %v1863 = vld [vmem:[%s1742 + $0xe1] sm:$0xff]
      %v1864 = vld [vmem:[%s1742 + $0xf1] sm:$0xff]
      %v1865 = vld [vmem:[%s1742 + $0xf9] sm:$0xff]
      %v1866 = vld [vmem:[%s1742 + $0x109] sm:$0xff]
      %v1867 = vld [vmem:[%s1742 + $0x111] sm:$0xff]
      %v1868 = vld [vmem:[%s1742 + $0x121] sm:$0xff]
      %v1869 = vld [vmem:[%s1742 + $0x129] sm:$0xff]
      %v1870 = vld [vmem:[%s1742 + $0x139] sm:$0xff]
      %v1871 = vld [vmem:[%s1742 + $0x141] sm:$0xff]
      %v1872 = vld [vmem:[%s1742 + $0x151] sm:$0xff]
      %v1873 = vld [vmem:[%s1742 + $0x159] sm:$0xff]
      %v1874 = vld [vmem:[%s1742 + $0x169] sm:$0xff]
      %v1875 = vld [vmem:[%s1742 + $0x171] sm:$0xff]
      %v1876 = vld [vmem:[%s1 + $0x10] sm:$0x1]
      %v1877 = vlaneseq
      %v1878 = vshrl.u32 %v1877, 7
      %v1879 = vsub.s32 0, %v1878
      %v1880 = vrot.slane %v1876, %v1879
      %v1881 = vmul.f32 %v1844, %v1880
      %v1882 = vmul.f32 %v1845, %v1880
      %v1883 = vmul.f32 %v1846, %v1880
      %v1884 = vmul.f32 %v1847, %v1880
      %v1885 = vmul.f32 %v1848, %v1880
      %v1886 = vmul.f32 %v1849, %v1880
      %v1887 = vmul.f32 %v1850, %v1880
      %v1888 = vmul.f32 %v1851, %v1880
      %v1889 = vmul.f32 %v1852, %v1880
      %v1890 = vmul.f32 %v1853, %v1880
      %v1891 = vmul.f32 %v1854, %v1880
      %v1892 = vmul.f32 %v1855, %v1880
      %v1893 = vmul.f32 %v1856, %v1880
      %v1894 = vmul.f32 %v1857, %v1880
      %v1895 = vmul.f32 %v1858, %v1880
      %v1896 = vmul.f32 %v1859, %v1880
      %v1897 = vmul.f32 %v1860, %v1880
      %v1898 = vmul.f32 %v1861, %v1880
      %v1899 = vmul.f32 %v1862, %v1880
      %v1900 = vmul.f32 %v1863, %v1880
      %v1901 = vmul.f32 %v1864, %v1880
      %v1902 = vmul.f32 %v1865, %v1880
      %v1903 = vmul.f32 %v1866, %v1880
      %v1904 = vmul.f32 %v1867, %v1880
      %v1905 = vmul.f32 %v1868, %v1880
      %v1906 = vmul.f32 %v1869, %v1880
      %v1907 = vmul.f32 %v1870, %v1880
      %v1908 = vmul.f32 %v1871, %v1880
      %v1909 = vmul.f32 %v1872, %v1880
      %v1910 = vmul.f32 %v1873, %v1880
      %v1911 = vmul.f32 %v1874, %v1880
      %v1912 = vmul.f32 %v1875, %v1880
      %v1913 = vadd.f32 %v1812, %v1881
      %v1914 = vadd.f32 %v1813, %v1882
      %v1915 = vadd.f32 %v1814, %v1883
      %v1916 = vadd.f32 %v1815, %v1884
      %v1917 = vadd.f32 %v1816, %v1885
      %v1918 = vadd.f32 %v1817, %v1886
      %v1919 = vadd.f32 %v1818, %v1887
      %v1920 = vadd.f32 %v1819, %v1888
      %v1921 = vadd.f32 %v1820, %v1889
      %v1922 = vadd.f32 %v1821, %v1890
      %v1923 = vadd.f32 %v1822, %v1891
      %v1924 = vadd.f32 %v1823, %v1892
      %v1925 = vadd.f32 %v1824, %v1893
      %v1926 = vadd.f32 %v1825, %v1894
      %v1927 = vadd.f32 %v1826, %v1895
      %v1928 = vadd.f32 %v1827, %v1896
      %v1929 = vadd.f32 %v1828, %v1897
      %v1930 = vadd.f32 %v1829, %v1898
      %v1931 = vadd.f32 %v1830, %v1899
      %v1932 = vadd.f32 %v1831, %v1900
      %v1933 = vadd.f32 %v1832, %v1901
      %v1934 = vadd.f32 %v1833, %v1902
      %v1935 = vadd.f32 %v1834, %v1903
      %v1936 = vadd.f32 %v1835, %v1904
      %v1937 = vadd.f32 %v1836, %v1905
      %v1938 = vadd.f32 %v1837, %v1906
      %v1939 = vadd.f32 %v1838, %v1907
      %v1940 = vadd.f32 %v1839, %v1908
      %v1941 = vadd.f32 %v1840, %v1909
      %v1942 = vadd.f32 %v1841, %v1910
      %v1943 = vadd.f32 %v1842, %v1911
      %v1944 = vadd.f32 %v1843, %v1912
      %v1945 = vld [vmem:[%s1742 + $0x2] sm:$0xff]
      %v1946 = vld [vmem:[%s1742 + $0xa] sm:$0xff]
      %v1947 = vld [vmem:[%s1742 + $0x1a] sm:$0xff]
      %v1948 = vld [vmem:[%s1742 + $0x22] sm:$0xff]
      %v1949 = vld [vmem:[%s1742 + $0x32] sm:$0xff]
      %v1950 = vld [vmem:[%s1742 + $0x3a] sm:$0xff]
      %v1951 = vld [vmem:[%s1742 + $0x4a] sm:$0xff]
      %v1952 = vld [vmem:[%s1742 + $0x52] sm:$0xff]
      %v1953 = vld [vmem:[%s1742 + $0x62] sm:$0xff]
      %v1954 = vld [vmem:[%s1742 + $0x6a] sm:$0xff]
      %v1955 = vld [vmem:[%s1742 + $0x7a] sm:$0xff]
      %v1956 = vld [vmem:[%s1742 + $0x82] sm:$0xff]
      %v1957 = vld [vmem:[%s1742 + $0x92] sm:$0xff]
      %v1958 = vld [vmem:[%s1742 + $0x9a] sm:$0xff]
      %v1959 = vld [vmem:[%s1742 + $0xaa] sm:$0xff]
      %v1960 = vld [vmem:[%s1742 + $0xb2] sm:$0xff]
      %v1961 = vld [vmem:[%s1742 + $0xc2] sm:$0xff]
      %v1962 = vld [vmem:[%s1742 + $0xca] sm:$0xff]
      %v1963 = vld [vmem:[%s1742 + $0xda] sm:$0xff]
      %v1964 = vld [vmem:[%s1742 + $0xe2] sm:$0xff]
      %v1965 = vld [vmem:[%s1742 + $0xf2] sm:$0xff]
      %v1966 = vld [vmem:[%s1742 + $0xfa] sm:$0xff]
      %v1967 = vld [vmem:[%s1742 + $0x10a] sm:$0xff]
      %v1968 = vld [vmem:[%s1742 + $0x112] sm:$0xff]
      %v1969 = vld [vmem:[%s1742 + $0x122] sm:$0xff]
      %v1970 = vld [vmem:[%s1742 + $0x12a] sm:$0xff]
      %v1971 = vld [vmem:[%s1742 + $0x13a] sm:$0xff]
      %v1972 = vld [vmem:[%s1742 + $0x142] sm:$0xff]
      %v1973 = vld [vmem:[%s1742 + $0x152] sm:$0xff]
      %v1974 = vld [vmem:[%s1742 + $0x15a] sm:$0xff]
      %v1975 = vld [vmem:[%s1742 + $0x16a] sm:$0xff]
      %v1976 = vld [vmem:[%s1742 + $0x172] sm:$0xff]
      %v1977 = vld [vmem:[%s1 + $0x11] sm:$0x1]
      %v1978 = vlaneseq
      %v1979 = vshrl.u32 %v1978, 7
      %v1980 = vsub.s32 0, %v1979
      %v1981 = vrot.slane %v1977, %v1980
      %v1982 = vmul.f32 %v1945, %v1981
      %v1983 = vmul.f32 %v1946, %v1981
      %v1984 = vmul.f32 %v1947, %v1981
      %v1985 = vmul.f32 %v1948, %v1981
      %v1986 = vmul.f32 %v1949, %v1981
      %v1987 = vmul.f32 %v1950, %v1981
      %v1988 = vmul.f32 %v1951, %v1981
      %v1989 = vmul.f32 %v1952, %v1981
      %v1990 = vmul.f32 %v1953, %v1981
      %v1991 = vmul.f32 %v1954, %v1981
      %v1992 = vmul.f32 %v1955, %v1981
      %v1993 = vmul.f32 %v1956, %v1981
      %v1994 = vmul.f32 %v1957, %v1981
      %v1995 = vmul.f32 %v1958, %v1981
      %v1996 = vmul.f32 %v1959, %v1981
      %v1997 = vmul.f32 %v1960, %v1981
      %v1998 = vmul.f32 %v1961, %v1981
      %v1999 = vmul.f32 %v1962, %v1981
      %v2000 = vmul.f32 %v1963, %v1981
      %v2001 = vmul.f32 %v1964, %v1981
      %v2002 = vmul.f32 %v1965, %v1981
      %v2003 = vmul.f32 %v1966, %v1981
      %v2004 = vmul.f32 %v1967, %v1981
      %v2005 = vmul.f32 %v1968, %v1981
      %v2006 = vmul.f32 %v1969, %v1981
      %v2007 = vmul.f32 %v1970, %v1981
      %v2008 = vmul.f32 %v1971, %v1981
      %v2009 = vmul.f32 %v1972, %v1981
      %v2010 = vmul.f32 %v1973, %v1981
      %v2011 = vmul.f32 %v1974, %v1981
      %v2012 = vmul.f32 %v1975, %v1981
      %v2013 = vmul.f32 %v1976, %v1981
      %v2014 = vadd.f32 %v1913, %v1982
      %v2015 = vadd.f32 %v1914, %v1983
      %v2016 = vadd.f32 %v1915, %v1984
      %v2017 = vadd.f32 %v1916, %v1985
      %v2018 = vadd.f32 %v1917, %v1986
      %v2019 = vadd.f32 %v1918, %v1987
      %v2020 = vadd.f32 %v1919, %v1988
      %v2021 = vadd.f32 %v1920, %v1989
      %v2022 = vadd.f32 %v1921, %v1990
      %v2023 = vadd.f32 %v1922, %v1991
      %v2024 = vadd.f32 %v1923, %v1992
      %v2025 = vadd.f32 %v1924, %v1993
      %v2026 = vadd.f32 %v1925, %v1994
      %v2027 = vadd.f32 %v1926, %v1995
      %v2028 = vadd.f32 %v1927, %v1996
      %v2029 = vadd.f32 %v1928, %v1997
      %v2030 = vadd.f32 %v1929, %v1998
      %v2031 = vadd.f32 %v1930, %v1999
      %v2032 = vadd.f32 %v1931, %v2000
      %v2033 = vadd.f32 %v1932, %v2001
      %v2034 = vadd.f32 %v1933, %v2002
      %v2035 = vadd.f32 %v1934, %v2003
      %v2036 = vadd.f32 %v1935, %v2004
      %v2037 = vadd.f32 %v1936, %v2005
      %v2038 = vadd.f32 %v1937, %v2006
      %v2039 = vadd.f32 %v1938, %v2007
      %v2040 = vadd.f32 %v1939, %v2008
      %v2041 = vadd.f32 %v1940, %v2009
      %v2042 = vadd.f32 %v1941, %v2010
      %v2043 = vadd.f32 %v1942, %v2011
      %v2044 = vadd.f32 %v1943, %v2012
      %v2045 = vadd.f32 %v1944, %v2013
      %v2046 = vld [vmem:[%s1742 + $0x3] sm:$0xff]
      %v2047 = vld [vmem:[%s1742 + $0xb] sm:$0xff]
      %v2048 = vld [vmem:[%s1742 + $0x1b] sm:$0xff]
      %v2049 = vld [vmem:[%s1742 + $0x23] sm:$0xff]
      %v2050 = vld [vmem:[%s1742 + $0x33] sm:$0xff]
      %v2051 = vld [vmem:[%s1742 + $0x3b] sm:$0xff]
      %v2052 = vld [vmem:[%s1742 + $0x4b] sm:$0xff]
      %v2053 = vld [vmem:[%s1742 + $0x53] sm:$0xff]
      %v2054 = vld [vmem:[%s1742 + $0x63] sm:$0xff]
      %v2055 = vld [vmem:[%s1742 + $0x6b] sm:$0xff]
      %v2056 = vld [vmem:[%s1742 + $0x7b] sm:$0xff]
      %v2057 = vld [vmem:[%s1742 + $0x83] sm:$0xff]
      %v2058 = vld [vmem:[%s1742 + $0x93] sm:$0xff]
      %v2059 = vld [vmem:[%s1742 + $0x9b] sm:$0xff]
      %v2060 = vld [vmem:[%s1742 + $0xab] sm:$0xff]
      %v2061 = vld [vmem:[%s1742 + $0xb3] sm:$0xff]
      %v2062 = vld [vmem:[%s1742 + $0xc3] sm:$0xff]
      %v2063 = vld [vmem:[%s1742 + $0xcb] sm:$0xff]
      %v2064 = vld [vmem:[%s1742 + $0xdb] sm:$0xff]
      %v2065 = vld [vmem:[%s1742 + $0xe3] sm:$0xff]
      %v2066 = vld [vmem:[%s1742 + $0xf3] sm:$0xff]
      %v2067 = vld [vmem:[%s1742 + $0xfb] sm:$0xff]
      %v2068 = vld [vmem:[%s1742 + $0x10b] sm:$0xff]
      %v2069 = vld [vmem:[%s1742 + $0x113] sm:$0xff]
      %v2070 = vld [vmem:[%s1742 + $0x123] sm:$0xff]
      %v2071 = vld [vmem:[%s1742 + $0x12b] sm:$0xff]
      %v2072 = vld [vmem:[%s1742 + $0x13b] sm:$0xff]
      %v2073 = vld [vmem:[%s1742 + $0x143] sm:$0xff]
      %v2074 = vld [vmem:[%s1742 + $0x153] sm:$0xff]
      %v2075 = vld [vmem:[%s1742 + $0x15b] sm:$0xff]
      %v2076 = vld [vmem:[%s1742 + $0x16b] sm:$0xff]
      %v2077 = vld [vmem:[%s1742 + $0x173] sm:$0xff]
      %v2078 = vld [vmem:[%s1 + $0x12] sm:$0x1]
      %v2079 = vlaneseq
      %v2080 = vshrl.u32 %v2079, 7
      %v2081 = vsub.s32 0, %v2080
      %v2082 = vrot.slane %v2078, %v2081
      %v2083 = vmul.f32 %v2046, %v2082
      %v2084 = vmul.f32 %v2047, %v2082
      %v2085 = vmul.f32 %v2048, %v2082
      %v2086 = vmul.f32 %v2049, %v2082
      %v2087 = vmul.f32 %v2050, %v2082
      %v2088 = vmul.f32 %v2051, %v2082
      %v2089 = vmul.f32 %v2052, %v2082
      %v2090 = vmul.f32 %v2053, %v2082
      %v2091 = vmul.f32 %v2054, %v2082
      %v2092 = vmul.f32 %v2055, %v2082
      %v2093 = vmul.f32 %v2056, %v2082
      %v2094 = vmul.f32 %v2057, %v2082
      %v2095 = vmul.f32 %v2058, %v2082
      %v2096 = vmul.f32 %v2059, %v2082
      %v2097 = vmul.f32 %v2060, %v2082
      %v2098 = vmul.f32 %v2061, %v2082
      %v2099 = vmul.f32 %v2062, %v2082
      %v2100 = vmul.f32 %v2063, %v2082
      %v2101 = vmul.f32 %v2064, %v2082
      %v2102 = vmul.f32 %v2065, %v2082
      %v2103 = vmul.f32 %v2066, %v2082
      %v2104 = vmul.f32 %v2067, %v2082
      %v2105 = vmul.f32 %v2068, %v2082
      %v2106 = vmul.f32 %v2069, %v2082
      %v2107 = vmul.f32 %v2070, %v2082
      %v2108 = vmul.f32 %v2071, %v2082
      %v2109 = vmul.f32 %v2072, %v2082
      %v2110 = vmul.f32 %v2073, %v2082
      %v2111 = vmul.f32 %v2074, %v2082
      %v2112 = vmul.f32 %v2075, %v2082
      %v2113 = vmul.f32 %v2076, %v2082
      %v2114 = vmul.f32 %v2077, %v2082
      %v2115 = vadd.f32 %v2014, %v2083
      %v2116 = vadd.f32 %v2015, %v2084
      %v2117 = vadd.f32 %v2016, %v2085
      %v2118 = vadd.f32 %v2017, %v2086
      %v2119 = vadd.f32 %v2018, %v2087
      %v2120 = vadd.f32 %v2019, %v2088
      %v2121 = vadd.f32 %v2020, %v2089
      %v2122 = vadd.f32 %v2021, %v2090
      %v2123 = vadd.f32 %v2022, %v2091
      %v2124 = vadd.f32 %v2023, %v2092
      %v2125 = vadd.f32 %v2024, %v2093
      %v2126 = vadd.f32 %v2025, %v2094
      %v2127 = vadd.f32 %v2026, %v2095
      %v2128 = vadd.f32 %v2027, %v2096
      %v2129 = vadd.f32 %v2028, %v2097
      %v2130 = vadd.f32 %v2029, %v2098
      %v2131 = vadd.f32 %v2030, %v2099
      %v2132 = vadd.f32 %v2031, %v2100
      %v2133 = vadd.f32 %v2032, %v2101
      %v2134 = vadd.f32 %v2033, %v2102
      %v2135 = vadd.f32 %v2034, %v2103
      %v2136 = vadd.f32 %v2035, %v2104
      %v2137 = vadd.f32 %v2036, %v2105
      %v2138 = vadd.f32 %v2037, %v2106
      %v2139 = vadd.f32 %v2038, %v2107
      %v2140 = vadd.f32 %v2039, %v2108
      %v2141 = vadd.f32 %v2040, %v2109
      %v2142 = vadd.f32 %v2041, %v2110
      %v2143 = vadd.f32 %v2042, %v2111
      %v2144 = vadd.f32 %v2043, %v2112
      %v2145 = vadd.f32 %v2044, %v2113
      %v2146 = vadd.f32 %v2045, %v2114
      %v2147 = vld [vmem:[%s1742 + $0x4] sm:$0xff]
      %v2148 = vld [vmem:[%s1742 + $0xc] sm:$0xff]
      %v2149 = vld [vmem:[%s1742 + $0x1c] sm:$0xff]
      %v2150 = vld [vmem:[%s1742 + $0x24] sm:$0xff]
      %v2151 = vld [vmem:[%s1742 + $0x34] sm:$0xff]
      %v2152 = vld [vmem:[%s1742 + $0x3c] sm:$0xff]
      %v2153 = vld [vmem:[%s1742 + $0x4c] sm:$0xff]
      %v2154 = vld [vmem:[%s1742 + $0x54] sm:$0xff]
      %v2155 = vld [vmem:[%s1742 + $0x64] sm:$0xff]
      %v2156 = vld [vmem:[%s1742 + $0x6c] sm:$0xff]
      %v2157 = vld [vmem:[%s1742 + $0x7c] sm:$0xff]
      %v2158 = vld [vmem:[%s1742 + $0x84] sm:$0xff]
      %v2159 = vld [vmem:[%s1742 + $0x94] sm:$0xff]
      %v2160 = vld [vmem:[%s1742 + $0x9c] sm:$0xff]
      %v2161 = vld [vmem:[%s1742 + $0xac] sm:$0xff]
      %v2162 = vld [vmem:[%s1742 + $0xb4] sm:$0xff]
      %v2163 = vld [vmem:[%s1742 + $0xc4] sm:$0xff]
      %v2164 = vld [vmem:[%s1742 + $0xcc] sm:$0xff]
      %v2165 = vld [vmem:[%s1742 + $0xdc] sm:$0xff]
      %v2166 = vld [vmem:[%s1742 + $0xe4] sm:$0xff]
      %v2167 = vld [vmem:[%s1742 + $0xf4] sm:$0xff]
      %v2168 = vld [vmem:[%s1742 + $0xfc] sm:$0xff]
      %v2169 = vld [vmem:[%s1742 + $0x10c] sm:$0xff]
      %v2170 = vld [vmem:[%s1742 + $0x114] sm:$0xff]
      %v2171 = vld [vmem:[%s1742 + $0x124] sm:$0xff]
      %v2172 = vld [vmem:[%s1742 + $0x12c] sm:$0xff]
      %v2173 = vld [vmem:[%s1742 + $0x13c] sm:$0xff]
      %v2174 = vld [vmem:[%s1742 + $0x144] sm:$0xff]
      %v2175 = vld [vmem:[%s1742 + $0x154] sm:$0xff]
      %v2176 = vld [vmem:[%s1742 + $0x15c] sm:$0xff]
      %v2177 = vld [vmem:[%s1742 + $0x16c] sm:$0xff]
      %v2178 = vld [vmem:[%s1742 + $0x174] sm:$0xff]
      %v2179 = vld [vmem:[%s1 + $0x13] sm:$0x1]
      %v2180 = vlaneseq
      %v2181 = vshrl.u32 %v2180, 7
      %v2182 = vsub.s32 0, %v2181
      %v2183 = vrot.slane %v2179, %v2182
      %v2184 = vmul.f32 %v2147, %v2183
      %v2185 = vmul.f32 %v2148, %v2183
      %v2186 = vmul.f32 %v2149, %v2183
      %v2187 = vmul.f32 %v2150, %v2183
      %v2188 = vmul.f32 %v2151, %v2183
      %v2189 = vmul.f32 %v2152, %v2183
      %v2190 = vmul.f32 %v2153, %v2183
      %v2191 = vmul.f32 %v2154, %v2183
      %v2192 = vmul.f32 %v2155, %v2183
      %v2193 = vmul.f32 %v2156, %v2183
      %v2194 = vmul.f32 %v2157, %v2183
      %v2195 = vmul.f32 %v2158, %v2183
      %v2196 = vmul.f32 %v2159, %v2183
      %v2197 = vmul.f32 %v2160, %v2183
      %v2198 = vmul.f32 %v2161, %v2183
      %v2199 = vmul.f32 %v2162, %v2183
      %v2200 = vmul.f32 %v2163, %v2183
      %v2201 = vmul.f32 %v2164, %v2183
      %v2202 = vmul.f32 %v2165, %v2183
      %v2203 = vmul.f32 %v2166, %v2183
      %v2204 = vmul.f32 %v2167, %v2183
      %v2205 = vmul.f32 %v2168, %v2183
      %v2206 = vmul.f32 %v2169, %v2183
      %v2207 = vmul.f32 %v2170, %v2183
      %v2208 = vmul.f32 %v2171, %v2183
      %v2209 = vmul.f32 %v2172, %v2183
      %v2210 = vmul.f32 %v2173, %v2183
      %v2211 = vmul.f32 %v2174, %v2183
      %v2212 = vmul.f32 %v2175, %v2183
      %v2213 = vmul.f32 %v2176, %v2183
      %v2214 = vmul.f32 %v2177, %v2183
      %v2215 = vmul.f32 %v2178, %v2183
      %v2216 = vadd.f32 %v2115, %v2184
      %v2217 = vadd.f32 %v2116, %v2185
      %v2218 = vadd.f32 %v2117, %v2186
      %v2219 = vadd.f32 %v2118, %v2187
      %v2220 = vadd.f32 %v2119, %v2188
      %v2221 = vadd.f32 %v2120, %v2189
      %v2222 = vadd.f32 %v2121, %v2190
      %v2223 = vadd.f32 %v2122, %v2191
      %v2224 = vadd.f32 %v2123, %v2192
      %v2225 = vadd.f32 %v2124, %v2193
      %v2226 = vadd.f32 %v2125, %v2194
      %v2227 = vadd.f32 %v2126, %v2195
      %v2228 = vadd.f32 %v2127, %v2196
      %v2229 = vadd.f32 %v2128, %v2197
      %v2230 = vadd.f32 %v2129, %v2198
      %v2231 = vadd.f32 %v2130, %v2199
      %v2232 = vadd.f32 %v2131, %v2200
      %v2233 = vadd.f32 %v2132, %v2201
      %v2234 = vadd.f32 %v2133, %v2202
      %v2235 = vadd.f32 %v2134, %v2203
      %v2236 = vadd.f32 %v2135, %v2204
      %v2237 = vadd.f32 %v2136, %v2205
      %v2238 = vadd.f32 %v2137, %v2206
      %v2239 = vadd.f32 %v2138, %v2207
      %v2240 = vadd.f32 %v2139, %v2208
      %v2241 = vadd.f32 %v2140, %v2209
      %v2242 = vadd.f32 %v2141, %v2210
      %v2243 = vadd.f32 %v2142, %v2211
      %v2244 = vadd.f32 %v2143, %v2212
      %v2245 = vadd.f32 %v2144, %v2213
      %v2246 = vadd.f32 %v2145, %v2214
      %v2247 = vadd.f32 %v2146, %v2215
      %s2248 = scalar_lea.vmem %s219, 96
      %v2249 = vld [vmem:[%s2248] sm:$0xff]
      %v2250 = vld [vmem:[%s2248 + $0x8] sm:$0xff]
      %v2251 = vld [vmem:[%s2248 + $0x18] sm:$0xff]
      %v2252 = vld [vmem:[%s2248 + $0x20] sm:$0xff]
      %v2253 = vld [vmem:[%s2248 + $0x30] sm:$0xff]
      %v2254 = vld [vmem:[%s2248 + $0x38] sm:$0xff]
      %v2255 = vld [vmem:[%s2248 + $0x48] sm:$0xff]
      %v2256 = vld [vmem:[%s2248 + $0x50] sm:$0xff]
      %v2257 = vld [vmem:[%s2248 + $0x60] sm:$0xff]
      %v2258 = vld [vmem:[%s2248 + $0x68] sm:$0xff]
      %v2259 = vld [vmem:[%s2248 + $0x78] sm:$0xff]
      %v2260 = vld [vmem:[%s2248 + $0x80] sm:$0xff]
      %v2261 = vld [vmem:[%s2248 + $0x90] sm:$0xff]
      %v2262 = vld [vmem:[%s2248 + $0x98] sm:$0xff]
      %v2263 = vld [vmem:[%s2248 + $0xa8] sm:$0xff]
      %v2264 = vld [vmem:[%s2248 + $0xb0] sm:$0xff]
      %v2265 = vld [vmem:[%s2248 + $0xc0] sm:$0xff]
      %v2266 = vld [vmem:[%s2248 + $0xc8] sm:$0xff]
      %v2267 = vld [vmem:[%s2248 + $0xd8] sm:$0xff]
      %v2268 = vld [vmem:[%s2248 + $0xe0] sm:$0xff]
      %v2269 = vld [vmem:[%s2248 + $0xf0] sm:$0xff]
      %v2270 = vld [vmem:[%s2248 + $0xf8] sm:$0xff]
      %v2271 = vld [vmem:[%s2248 + $0x108] sm:$0xff]
      %v2272 = vld [vmem:[%s2248 + $0x110] sm:$0xff]
      %v2273 = vld [vmem:[%s2248 + $0x120] sm:$0xff]
      %v2274 = vld [vmem:[%s2248 + $0x128] sm:$0xff]
      %v2275 = vld [vmem:[%s2248 + $0x138] sm:$0xff]
      %v2276 = vld [vmem:[%s2248 + $0x140] sm:$0xff]
      %v2277 = vld [vmem:[%s2248 + $0x150] sm:$0xff]
      %v2278 = vld [vmem:[%s2248 + $0x158] sm:$0xff]
      %v2279 = vld [vmem:[%s2248 + $0x168] sm:$0xff]
      %v2280 = vld [vmem:[%s2248 + $0x170] sm:$0xff]
      %v2281 = vld [vmem:[%s1 + $0x14] sm:$0x1]
      %v2282 = vlaneseq
      %v2283 = vshrl.u32 %v2282, 7
      %v2284 = vsub.s32 0, %v2283
      %v2285 = vrot.slane %v2281, %v2284
      %v2286 = vmul.f32 %v2249, %v2285
      %v2287 = vmul.f32 %v2250, %v2285
      %v2288 = vmul.f32 %v2251, %v2285
      %v2289 = vmul.f32 %v2252, %v2285
      %v2290 = vmul.f32 %v2253, %v2285
      %v2291 = vmul.f32 %v2254, %v2285
      %v2292 = vmul.f32 %v2255, %v2285
      %v2293 = vmul.f32 %v2256, %v2285
      %v2294 = vmul.f32 %v2257, %v2285
      %v2295 = vmul.f32 %v2258, %v2285
      %v2296 = vmul.f32 %v2259, %v2285
      %v2297 = vmul.f32 %v2260, %v2285
      %v2298 = vmul.f32 %v2261, %v2285
      %v2299 = vmul.f32 %v2262, %v2285
      %v2300 = vmul.f32 %v2263, %v2285
      %v2301 = vmul.f32 %v2264, %v2285
      %v2302 = vmul.f32 %v2265, %v2285
      %v2303 = vmul.f32 %v2266, %v2285
      %v2304 = vmul.f32 %v2267, %v2285
      %v2305 = vmul.f32 %v2268, %v2285
      %v2306 = vmul.f32 %v2269, %v2285
      %v2307 = vmul.f32 %v2270, %v2285
      %v2308 = vmul.f32 %v2271, %v2285
      %v2309 = vmul.f32 %v2272, %v2285
      %v2310 = vmul.f32 %v2273, %v2285
      %v2311 = vmul.f32 %v2274, %v2285
      %v2312 = vmul.f32 %v2275, %v2285
      %v2313 = vmul.f32 %v2276, %v2285
      %v2314 = vmul.f32 %v2277, %v2285
      %v2315 = vmul.f32 %v2278, %v2285
      %v2316 = vmul.f32 %v2279, %v2285
      %v2317 = vmul.f32 %v2280, %v2285
      %v2318 = vadd.f32 %v2216, %v2286
      %v2319 = vadd.f32 %v2217, %v2287
      %v2320 = vadd.f32 %v2218, %v2288
      %v2321 = vadd.f32 %v2219, %v2289
      %v2322 = vadd.f32 %v2220, %v2290
      %v2323 = vadd.f32 %v2221, %v2291
      %v2324 = vadd.f32 %v2222, %v2292
      %v2325 = vadd.f32 %v2223, %v2293
      %v2326 = vadd.f32 %v2224, %v2294
      %v2327 = vadd.f32 %v2225, %v2295
      %v2328 = vadd.f32 %v2226, %v2296
      %v2329 = vadd.f32 %v2227, %v2297
      %v2330 = vadd.f32 %v2228, %v2298
      %v2331 = vadd.f32 %v2229, %v2299
      %v2332 = vadd.f32 %v2230, %v2300
      %v2333 = vadd.f32 %v2231, %v2301
      %v2334 = vadd.f32 %v2232, %v2302
      %v2335 = vadd.f32 %v2233, %v2303
      %v2336 = vadd.f32 %v2234, %v2304
      %v2337 = vadd.f32 %v2235, %v2305
      %v2338 = vadd.f32 %v2236, %v2306
      %v2339 = vadd.f32 %v2237, %v2307
      %v2340 = vadd.f32 %v2238, %v2308
      %v2341 = vadd.f32 %v2239, %v2309
      %v2342 = vadd.f32 %v2240, %v2310
      %v2343 = vadd.f32 %v2241, %v2311
      %v2344 = vadd.f32 %v2242, %v2312
      %v2345 = vadd.f32 %v2243, %v2313
      %v2346 = vadd.f32 %v2244, %v2314
      %v2347 = vadd.f32 %v2245, %v2315
      %v2348 = vadd.f32 %v2246, %v2316
      %v2349 = vadd.f32 %v2247, %v2317
      %v2350 = vld [vmem:[%s2248 + $0x1] sm:$0xff]
      %v2351 = vld [vmem:[%s2248 + $0x9] sm:$0xff]
      %v2352 = vld [vmem:[%s2248 + $0x19] sm:$0xff]
      %v2353 = vld [vmem:[%s2248 + $0x21] sm:$0xff]
      %v2354 = vld [vmem:[%s2248 + $0x31] sm:$0xff]
      %v2355 = vld [vmem:[%s2248 + $0x39] sm:$0xff]
      %v2356 = vld [vmem:[%s2248 + $0x49] sm:$0xff]
      %v2357 = vld [vmem:[%s2248 + $0x51] sm:$0xff]
      %v2358 = vld [vmem:[%s2248 + $0x61] sm:$0xff]
      %v2359 = vld [vmem:[%s2248 + $0x69] sm:$0xff]
      %v2360 = vld [vmem:[%s2248 + $0x79] sm:$0xff]
      %v2361 = vld [vmem:[%s2248 + $0x81] sm:$0xff]
      %v2362 = vld [vmem:[%s2248 + $0x91] sm:$0xff]
      %v2363 = vld [vmem:[%s2248 + $0x99] sm:$0xff]
      %v2364 = vld [vmem:[%s2248 + $0xa9] sm:$0xff]
      %v2365 = vld [vmem:[%s2248 + $0xb1] sm:$0xff]
      %v2366 = vld [vmem:[%s2248 + $0xc1] sm:$0xff]
      %v2367 = vld [vmem:[%s2248 + $0xc9] sm:$0xff]
      %v2368 = vld [vmem:[%s2248 + $0xd9] sm:$0xff]
      %v2369 = vld [vmem:[%s2248 + $0xe1] sm:$0xff]
      %v2370 = vld [vmem:[%s2248 + $0xf1] sm:$0xff]
      %v2371 = vld [vmem:[%s2248 + $0xf9] sm:$0xff]
      %v2372 = vld [vmem:[%s2248 + $0x109] sm:$0xff]
      %v2373 = vld [vmem:[%s2248 + $0x111] sm:$0xff]
      %v2374 = vld [vmem:[%s2248 + $0x121] sm:$0xff]
      %v2375 = vld [vmem:[%s2248 + $0x129] sm:$0xff]
      %v2376 = vld [vmem:[%s2248 + $0x139] sm:$0xff]
      %v2377 = vld [vmem:[%s2248 + $0x141] sm:$0xff]
      %v2378 = vld [vmem:[%s2248 + $0x151] sm:$0xff]
      %v2379 = vld [vmem:[%s2248 + $0x159] sm:$0xff]
      %v2380 = vld [vmem:[%s2248 + $0x169] sm:$0xff]
      %v2381 = vld [vmem:[%s2248 + $0x171] sm:$0xff]
      %v2382 = vld [vmem:[%s1 + $0x15] sm:$0x1]
      %v2383 = vlaneseq
      %v2384 = vshrl.u32 %v2383, 7
      %v2385 = vsub.s32 0, %v2384
      %v2386 = vrot.slane %v2382, %v2385
      %v2387 = vmul.f32 %v2350, %v2386
      %v2388 = vmul.f32 %v2351, %v2386
      %v2389 = vmul.f32 %v2352, %v2386
      %v2390 = vmul.f32 %v2353, %v2386
      %v2391 = vmul.f32 %v2354, %v2386
      %v2392 = vmul.f32 %v2355, %v2386
      %v2393 = vmul.f32 %v2356, %v2386
      %v2394 = vmul.f32 %v2357, %v2386
      %v2395 = vmul.f32 %v2358, %v2386
      %v2396 = vmul.f32 %v2359, %v2386
      %v2397 = vmul.f32 %v2360, %v2386
      %v2398 = vmul.f32 %v2361, %v2386
      %v2399 = vmul.f32 %v2362, %v2386
      %v2400 = vmul.f32 %v2363, %v2386
      %v2401 = vmul.f32 %v2364, %v2386
      %v2402 = vmul.f32 %v2365, %v2386
      %v2403 = vmul.f32 %v2366, %v2386
      %v2404 = vmul.f32 %v2367, %v2386
      %v2405 = vmul.f32 %v2368, %v2386
      %v2406 = vmul.f32 %v2369, %v2386
      %v2407 = vmul.f32 %v2370, %v2386
      %v2408 = vmul.f32 %v2371, %v2386
      %v2409 = vmul.f32 %v2372, %v2386
      %v2410 = vmul.f32 %v2373, %v2386
      %v2411 = vmul.f32 %v2374, %v2386
      %v2412 = vmul.f32 %v2375, %v2386
      %v2413 = vmul.f32 %v2376, %v2386
      %v2414 = vmul.f32 %v2377, %v2386
      %v2415 = vmul.f32 %v2378, %v2386
      %v2416 = vmul.f32 %v2379, %v2386
      %v2417 = vmul.f32 %v2380, %v2386
      %v2418 = vmul.f32 %v2381, %v2386
      %v2419 = vadd.f32 %v2318, %v2387
      %v2420 = vadd.f32 %v2319, %v2388
      %v2421 = vadd.f32 %v2320, %v2389
      %v2422 = vadd.f32 %v2321, %v2390
      %v2423 = vadd.f32 %v2322, %v2391
      %v2424 = vadd.f32 %v2323, %v2392
      %v2425 = vadd.f32 %v2324, %v2393
      %v2426 = vadd.f32 %v2325, %v2394
      %v2427 = vadd.f32 %v2326, %v2395
      %v2428 = vadd.f32 %v2327, %v2396
      %v2429 = vadd.f32 %v2328, %v2397
      %v2430 = vadd.f32 %v2329, %v2398
      %v2431 = vadd.f32 %v2330, %v2399
      %v2432 = vadd.f32 %v2331, %v2400
      %v2433 = vadd.f32 %v2332, %v2401
      %v2434 = vadd.f32 %v2333, %v2402
      %v2435 = vadd.f32 %v2334, %v2403
      %v2436 = vadd.f32 %v2335, %v2404
      %v2437 = vadd.f32 %v2336, %v2405
      %v2438 = vadd.f32 %v2337, %v2406
      %v2439 = vadd.f32 %v2338, %v2407
      %v2440 = vadd.f32 %v2339, %v2408
      %v2441 = vadd.f32 %v2340, %v2409
      %v2442 = vadd.f32 %v2341, %v2410
      %v2443 = vadd.f32 %v2342, %v2411
      %v2444 = vadd.f32 %v2343, %v2412
      %v2445 = vadd.f32 %v2344, %v2413
      %v2446 = vadd.f32 %v2345, %v2414
      %v2447 = vadd.f32 %v2346, %v2415
      %v2448 = vadd.f32 %v2347, %v2416
      %v2449 = vadd.f32 %v2348, %v2417
      %v2450 = vadd.f32 %v2349, %v2418
      %v2451 = vld [vmem:[%s2248 + $0x2] sm:$0xff]
      %v2452 = vld [vmem:[%s2248 + $0xa] sm:$0xff]
      %v2453 = vld [vmem:[%s2248 + $0x1a] sm:$0xff]
      %v2454 = vld [vmem:[%s2248 + $0x22] sm:$0xff]
      %v2455 = vld [vmem:[%s2248 + $0x32] sm:$0xff]
      %v2456 = vld [vmem:[%s2248 + $0x3a] sm:$0xff]
      %v2457 = vld [vmem:[%s2248 + $0x4a] sm:$0xff]
      %v2458 = vld [vmem:[%s2248 + $0x52] sm:$0xff]
      %v2459 = vld [vmem:[%s2248 + $0x62] sm:$0xff]
      %v2460 = vld [vmem:[%s2248 + $0x6a] sm:$0xff]
      %v2461 = vld [vmem:[%s2248 + $0x7a] sm:$0xff]
      %v2462 = vld [vmem:[%s2248 + $0x82] sm:$0xff]
      %v2463 = vld [vmem:[%s2248 + $0x92] sm:$0xff]
      %v2464 = vld [vmem:[%s2248 + $0x9a] sm:$0xff]
      %v2465 = vld [vmem:[%s2248 + $0xaa] sm:$0xff]
      %v2466 = vld [vmem:[%s2248 + $0xb2] sm:$0xff]
      %v2467 = vld [vmem:[%s2248 + $0xc2] sm:$0xff]
      %v2468 = vld [vmem:[%s2248 + $0xca] sm:$0xff]
      %v2469 = vld [vmem:[%s2248 + $0xda] sm:$0xff]
      %v2470 = vld [vmem:[%s2248 + $0xe2] sm:$0xff]
      %v2471 = vld [vmem:[%s2248 + $0xf2] sm:$0xff]
      %v2472 = vld [vmem:[%s2248 + $0xfa] sm:$0xff]
      %v2473 = vld [vmem:[%s2248 + $0x10a] sm:$0xff]
      %v2474 = vld [vmem:[%s2248 + $0x112] sm:$0xff]
      %v2475 = vld [vmem:[%s2248 + $0x122] sm:$0xff]
      %v2476 = vld [vmem:[%s2248 + $0x12a] sm:$0xff]
      %v2477 = vld [vmem:[%s2248 + $0x13a] sm:$0xff]
      %v2478 = vld [vmem:[%s2248 + $0x142] sm:$0xff]
      %v2479 = vld [vmem:[%s2248 + $0x152] sm:$0xff]
      %v2480 = vld [vmem:[%s2248 + $0x15a] sm:$0xff]
      %v2481 = vld [vmem:[%s2248 + $0x16a] sm:$0xff]
      %v2482 = vld [vmem:[%s2248 + $0x172] sm:$0xff]
      %v2483 = vld [vmem:[%s1 + $0x16] sm:$0x1]
      %v2484 = vlaneseq
      %v2485 = vshrl.u32 %v2484, 7
      %v2486 = vsub.s32 0, %v2485
      %v2487 = vrot.slane %v2483, %v2486
      %v2488 = vmul.f32 %v2451, %v2487
      %v2489 = vmul.f32 %v2452, %v2487
      %v2490 = vmul.f32 %v2453, %v2487
      %v2491 = vmul.f32 %v2454, %v2487
      %v2492 = vmul.f32 %v2455, %v2487
      %v2493 = vmul.f32 %v2456, %v2487
      %v2494 = vmul.f32 %v2457, %v2487
      %v2495 = vmul.f32 %v2458, %v2487
      %v2496 = vmul.f32 %v2459, %v2487
      %v2497 = vmul.f32 %v2460, %v2487
      %v2498 = vmul.f32 %v2461, %v2487
      %v2499 = vmul.f32 %v2462, %v2487
      %v2500 = vmul.f32 %v2463, %v2487
      %v2501 = vmul.f32 %v2464, %v2487
      %v2502 = vmul.f32 %v2465, %v2487
      %v2503 = vmul.f32 %v2466, %v2487
      %v2504 = vmul.f32 %v2467, %v2487
      %v2505 = vmul.f32 %v2468, %v2487
      %v2506 = vmul.f32 %v2469, %v2487
      %v2507 = vmul.f32 %v2470, %v2487
      %v2508 = vmul.f32 %v2471, %v2487
      %v2509 = vmul.f32 %v2472, %v2487
      %v2510 = vmul.f32 %v2473, %v2487
      %v2511 = vmul.f32 %v2474, %v2487
      %v2512 = vmul.f32 %v2475, %v2487
      %v2513 = vmul.f32 %v2476, %v2487
      %v2514 = vmul.f32 %v2477, %v2487
      %v2515 = vmul.f32 %v2478, %v2487
      %v2516 = vmul.f32 %v2479, %v2487
      %v2517 = vmul.f32 %v2480, %v2487
      %v2518 = vmul.f32 %v2481, %v2487
      %v2519 = vmul.f32 %v2482, %v2487
      %v2520 = vadd.f32 %v2419, %v2488
      %v2521 = vadd.f32 %v2420, %v2489
      %v2522 = vadd.f32 %v2421, %v2490
      %v2523 = vadd.f32 %v2422, %v2491
      %v2524 = vadd.f32 %v2423, %v2492
      %v2525 = vadd.f32 %v2424, %v2493
      %v2526 = vadd.f32 %v2425, %v2494
      %v2527 = vadd.f32 %v2426, %v2495
      %v2528 = vadd.f32 %v2427, %v2496
      %v2529 = vadd.f32 %v2428, %v2497
      %v2530 = vadd.f32 %v2429, %v2498
      %v2531 = vadd.f32 %v2430, %v2499
      %v2532 = vadd.f32 %v2431, %v2500
      %v2533 = vadd.f32 %v2432, %v2501
      %v2534 = vadd.f32 %v2433, %v2502
      %v2535 = vadd.f32 %v2434, %v2503
      %v2536 = vadd.f32 %v2435, %v2504
      %v2537 = vadd.f32 %v2436, %v2505
      %v2538 = vadd.f32 %v2437, %v2506
      %v2539 = vadd.f32 %v2438, %v2507
      %v2540 = vadd.f32 %v2439, %v2508
      %v2541 = vadd.f32 %v2440, %v2509
      %v2542 = vadd.f32 %v2441, %v2510
      %v2543 = vadd.f32 %v2442, %v2511
      %v2544 = vadd.f32 %v2443, %v2512
      %v2545 = vadd.f32 %v2444, %v2513
      %v2546 = vadd.f32 %v2445, %v2514
      %v2547 = vadd.f32 %v2446, %v2515
      %v2548 = vadd.f32 %v2447, %v2516
      %v2549 = vadd.f32 %v2448, %v2517
      %v2550 = vadd.f32 %v2449, %v2518
      %v2551 = vadd.f32 %v2450, %v2519
      %v2552 = vld [vmem:[%s2248 + $0x3] sm:$0xff]
      %v2553 = vld [vmem:[%s2248 + $0xb] sm:$0xff]
      %v2554 = vld [vmem:[%s2248 + $0x1b] sm:$0xff]
      %v2555 = vld [vmem:[%s2248 + $0x23] sm:$0xff]
      %v2556 = vld [vmem:[%s2248 + $0x33] sm:$0xff]
      %v2557 = vld [vmem:[%s2248 + $0x3b] sm:$0xff]
      %v2558 = vld [vmem:[%s2248 + $0x4b] sm:$0xff]
      %v2559 = vld [vmem:[%s2248 + $0x53] sm:$0xff]
      %v2560 = vld [vmem:[%s2248 + $0x63] sm:$0xff]
      %v2561 = vld [vmem:[%s2248 + $0x6b] sm:$0xff]
      %v2562 = vld [vmem:[%s2248 + $0x7b] sm:$0xff]
      %v2563 = vld [vmem:[%s2248 + $0x83] sm:$0xff]
      %v2564 = vld [vmem:[%s2248 + $0x93] sm:$0xff]
      %v2565 = vld [vmem:[%s2248 + $0x9b] sm:$0xff]
      %v2566 = vld [vmem:[%s2248 + $0xab] sm:$0xff]
      %v2567 = vld [vmem:[%s2248 + $0xb3] sm:$0xff]
      %v2568 = vld [vmem:[%s2248 + $0xc3] sm:$0xff]
      %v2569 = vld [vmem:[%s2248 + $0xcb] sm:$0xff]
      %v2570 = vld [vmem:[%s2248 + $0xdb] sm:$0xff]
      %v2571 = vld [vmem:[%s2248 + $0xe3] sm:$0xff]
      %v2572 = vld [vmem:[%s2248 + $0xf3] sm:$0xff]
      %v2573 = vld [vmem:[%s2248 + $0xfb] sm:$0xff]
      %v2574 = vld [vmem:[%s2248 + $0x10b] sm:$0xff]
      %v2575 = vld [vmem:[%s2248 + $0x113] sm:$0xff]
      %v2576 = vld [vmem:[%s2248 + $0x123] sm:$0xff]
      %v2577 = vld [vmem:[%s2248 + $0x12b] sm:$0xff]
      %v2578 = vld [vmem:[%s2248 + $0x13b] sm:$0xff]
      %v2579 = vld [vmem:[%s2248 + $0x143] sm:$0xff]
      %v2580 = vld [vmem:[%s2248 + $0x153] sm:$0xff]
      %v2581 = vld [vmem:[%s2248 + $0x15b] sm:$0xff]
      %v2582 = vld [vmem:[%s2248 + $0x16b] sm:$0xff]
      %v2583 = vld [vmem:[%s2248 + $0x173] sm:$0xff]
      %v2584 = vld [vmem:[%s1 + $0x17] sm:$0x1]
      %v2585 = vlaneseq
      %v2586 = vshrl.u32 %v2585, 7
      %v2587 = vsub.s32 0, %v2586
      %v2588 = vrot.slane %v2584, %v2587
      %v2589 = vmul.f32 %v2552, %v2588
      %v2590 = vmul.f32 %v2553, %v2588
      %v2591 = vmul.f32 %v2554, %v2588
      %v2592 = vmul.f32 %v2555, %v2588
      %v2593 = vmul.f32 %v2556, %v2588
      %v2594 = vmul.f32 %v2557, %v2588
      %v2595 = vmul.f32 %v2558, %v2588
      %v2596 = vmul.f32 %v2559, %v2588
      %v2597 = vmul.f32 %v2560, %v2588
      %v2598 = vmul.f32 %v2561, %v2588
      %v2599 = vmul.f32 %v2562, %v2588
      %v2600 = vmul.f32 %v2563, %v2588
      %v2601 = vmul.f32 %v2564, %v2588
      %v2602 = vmul.f32 %v2565, %v2588
      %v2603 = vmul.f32 %v2566, %v2588
      %v2604 = vmul.f32 %v2567, %v2588
      %v2605 = vmul.f32 %v2568, %v2588
      %v2606 = vmul.f32 %v2569, %v2588
      %v2607 = vmul.f32 %v2570, %v2588
      %v2608 = vmul.f32 %v2571, %v2588
      %v2609 = vmul.f32 %v2572, %v2588
      %v2610 = vmul.f32 %v2573, %v2588
      %v2611 = vmul.f32 %v2574, %v2588
      %v2612 = vmul.f32 %v2575, %v2588
      %v2613 = vmul.f32 %v2576, %v2588
      %v2614 = vmul.f32 %v2577, %v2588
      %v2615 = vmul.f32 %v2578, %v2588
      %v2616 = vmul.f32 %v2579, %v2588
      %v2617 = vmul.f32 %v2580, %v2588
      %v2618 = vmul.f32 %v2581, %v2588
      %v2619 = vmul.f32 %v2582, %v2588
      %v2620 = vmul.f32 %v2583, %v2588
      %v2621 = vadd.f32 %v2520, %v2589
      %v2622 = vadd.f32 %v2521, %v2590
      %v2623 = vadd.f32 %v2522, %v2591
      %v2624 = vadd.f32 %v2523, %v2592
      %v2625 = vadd.f32 %v2524, %v2593
      %v2626 = vadd.f32 %v2525, %v2594
      %v2627 = vadd.f32 %v2526, %v2595
      %v2628 = vadd.f32 %v2527, %v2596
      %v2629 = vadd.f32 %v2528, %v2597
      %v2630 = vadd.f32 %v2529, %v2598
      %v2631 = vadd.f32 %v2530, %v2599
      %v2632 = vadd.f32 %v2531, %v2600
      %v2633 = vadd.f32 %v2532, %v2601
      %v2634 = vadd.f32 %v2533, %v2602
      %v2635 = vadd.f32 %v2534, %v2603
      %v2636 = vadd.f32 %v2535, %v2604
      %v2637 = vadd.f32 %v2536, %v2605
      %v2638 = vadd.f32 %v2537, %v2606
      %v2639 = vadd.f32 %v2538, %v2607
      %v2640 = vadd.f32 %v2539, %v2608
      %v2641 = vadd.f32 %v2540, %v2609
      %v2642 = vadd.f32 %v2541, %v2610
      %v2643 = vadd.f32 %v2542, %v2611
      %v2644 = vadd.f32 %v2543, %v2612
      %v2645 = vadd.f32 %v2544, %v2613
      %v2646 = vadd.f32 %v2545, %v2614
      %v2647 = vadd.f32 %v2546, %v2615
      %v2648 = vadd.f32 %v2547, %v2616
      %v2649 = vadd.f32 %v2548, %v2617
      %v2650 = vadd.f32 %v2549, %v2618
      %v2651 = vadd.f32 %v2550, %v2619
      %v2652 = vadd.f32 %v2551, %v2620
      %v2653 = vld [vmem:[%s2248 + $0x4] sm:$0xff]
      %v2654 = vld [vmem:[%s2248 + $0xc] sm:$0xff]
      %v2655 = vld [vmem:[%s2248 + $0x1c] sm:$0xff]
      %v2656 = vld [vmem:[%s2248 + $0x24] sm:$0xff]
      %v2657 = vld [vmem:[%s2248 + $0x34] sm:$0xff]
      %v2658 = vld [vmem:[%s2248 + $0x3c] sm:$0xff]
      %v2659 = vld [vmem:[%s2248 + $0x4c] sm:$0xff]
      %v2660 = vld [vmem:[%s2248 + $0x54] sm:$0xff]
      %v2661 = vld [vmem:[%s2248 + $0x64] sm:$0xff]
      %v2662 = vld [vmem:[%s2248 + $0x6c] sm:$0xff]
      %v2663 = vld [vmem:[%s2248 + $0x7c] sm:$0xff]
      %v2664 = vld [vmem:[%s2248 + $0x84] sm:$0xff]
      %v2665 = vld [vmem:[%s2248 + $0x94] sm:$0xff]
      %v2666 = vld [vmem:[%s2248 + $0x9c] sm:$0xff]
      %v2667 = vld [vmem:[%s2248 + $0xac] sm:$0xff]
      %v2668 = vld [vmem:[%s2248 + $0xb4] sm:$0xff]
      %v2669 = vld [vmem:[%s2248 + $0xc4] sm:$0xff]
      %v2670 = vld [vmem:[%s2248 + $0xcc] sm:$0xff]
      %v2671 = vld [vmem:[%s2248 + $0xdc] sm:$0xff]
      %v2672 = vld [vmem:[%s2248 + $0xe4] sm:$0xff]
      %v2673 = vld [vmem:[%s2248 + $0xf4] sm:$0xff]
      %v2674 = vld [vmem:[%s2248 + $0xfc] sm:$0xff]
      %v2675 = vld [vmem:[%s2248 + $0x10c] sm:$0xff]
      %v2676 = vld [vmem:[%s2248 + $0x114] sm:$0xff]
      %v2677 = vld [vmem:[%s2248 + $0x124] sm:$0xff]
      %v2678 = vld [vmem:[%s2248 + $0x12c] sm:$0xff]
      %v2679 = vld [vmem:[%s2248 + $0x13c] sm:$0xff]
      %v2680 = vld [vmem:[%s2248 + $0x144] sm:$0xff]
      %v2681 = vld [vmem:[%s2248 + $0x154] sm:$0xff]
      %v2682 = vld [vmem:[%s2248 + $0x15c] sm:$0xff]
      %v2683 = vld [vmem:[%s2248 + $0x16c] sm:$0xff]
      %v2684 = vld [vmem:[%s2248 + $0x174] sm:$0xff]
      %v2685 = vld [vmem:[%s1 + $0x18] sm:$0x1]
      %v2686 = vlaneseq
      %v2687 = vshrl.u32 %v2686, 7
      %v2688 = vsub.s32 0, %v2687
      %v2689 = vrot.slane %v2685, %v2688
      %v2690 = vmul.f32 %v2653, %v2689
      %v2691 = vmul.f32 %v2654, %v2689
      %v2692 = vmul.f32 %v2655, %v2689
      %v2693 = vmul.f32 %v2656, %v2689
      %v2694 = vmul.f32 %v2657, %v2689
      %v2695 = vmul.f32 %v2658, %v2689
      %v2696 = vmul.f32 %v2659, %v2689
      %v2697 = vmul.f32 %v2660, %v2689
      %v2698 = vmul.f32 %v2661, %v2689
      %v2699 = vmul.f32 %v2662, %v2689
      %v2700 = vmul.f32 %v2663, %v2689
      %v2701 = vmul.f32 %v2664, %v2689
      %v2702 = vmul.f32 %v2665, %v2689
      %v2703 = vmul.f32 %v2666, %v2689
      %v2704 = vmul.f32 %v2667, %v2689
      %v2705 = vmul.f32 %v2668, %v2689
      %v2706 = vmul.f32 %v2669, %v2689
      %v2707 = vmul.f32 %v2670, %v2689
      %v2708 = vmul.f32 %v2671, %v2689
      %v2709 = vmul.f32 %v2672, %v2689
      %v2710 = vmul.f32 %v2673, %v2689
      %v2711 = vmul.f32 %v2674, %v2689
      %v2712 = vmul.f32 %v2675, %v2689
      %v2713 = vmul.f32 %v2676, %v2689
      %v2714 = vmul.f32 %v2677, %v2689
      %v2715 = vmul.f32 %v2678, %v2689
      %v2716 = vmul.f32 %v2679, %v2689
      %v2717 = vmul.f32 %v2680, %v2689
      %v2718 = vmul.f32 %v2681, %v2689
      %v2719 = vmul.f32 %v2682, %v2689
      %v2720 = vmul.f32 %v2683, %v2689
      %v2721 = vmul.f32 %v2684, %v2689
      %v2722 = vadd.f32 %v2621, %v2690
      %v2723 = vadd.f32 %v2622, %v2691
      %v2724 = vadd.f32 %v2623, %v2692
      %v2725 = vadd.f32 %v2624, %v2693
      %v2726 = vadd.f32 %v2625, %v2694
      %v2727 = vadd.f32 %v2626, %v2695
      %v2728 = vadd.f32 %v2627, %v2696
      %v2729 = vadd.f32 %v2628, %v2697
      %v2730 = vadd.f32 %v2629, %v2698
      %v2731 = vadd.f32 %v2630, %v2699
      %v2732 = vadd.f32 %v2631, %v2700
      %v2733 = vadd.f32 %v2632, %v2701
      %v2734 = vadd.f32 %v2633, %v2702
      %v2735 = vadd.f32 %v2634, %v2703
      %v2736 = vadd.f32 %v2635, %v2704
      %v2737 = vadd.f32 %v2636, %v2705
      %v2738 = vadd.f32 %v2637, %v2706
      %v2739 = vadd.f32 %v2638, %v2707
      %v2740 = vadd.f32 %v2639, %v2708
      %v2741 = vadd.f32 %v2640, %v2709
      %v2742 = vadd.f32 %v2641, %v2710
      %v2743 = vadd.f32 %v2642, %v2711
      %v2744 = vadd.f32 %v2643, %v2712
      %v2745 = vadd.f32 %v2644, %v2713
      %v2746 = vadd.f32 %v2645, %v2714
      %v2747 = vadd.f32 %v2646, %v2715
      %v2748 = vadd.f32 %v2647, %v2716
      %v2749 = vadd.f32 %v2648, %v2717
      %v2750 = vadd.f32 %v2649, %v2718
      %v2751 = vadd.f32 %v2650, %v2719
      %v2752 = vadd.f32 %v2651, %v2720
      %v2753 = vadd.f32 %v2652, %v2721
      %v2754 = vld [vmem:[%s2] sm:$0x1]
      %v2756 = vlaneseq
      %v2757 = vshrl.u32 %v2756, 7
      %v2758 = vsub.s32 0, %v2757
      %v2759 = vrot.slane %v2754, %v2758
      %v2761 = vadd.f32 %v2722, %v2759
      %v2762 = vadd.f32 %v2723, %v2759
      %v2763 = vadd.f32 %v2724, %v2759
      %v2764 = vadd.f32 %v2725, %v2759
      %v2765 = vadd.f32 %v2726, %v2759
      %v2766 = vadd.f32 %v2727, %v2759
      %v2767 = vadd.f32 %v2728, %v2759
      %v2768 = vadd.f32 %v2729, %v2759
      %v2769 = vadd.f32 %v2730, %v2759
      %v2770 = vadd.f32 %v2731, %v2759
      %v2771 = vadd.f32 %v2732, %v2759
      %v2772 = vadd.f32 %v2733, %v2759
      %v2773 = vadd.f32 %v2734, %v2759
      %v2774 = vadd.f32 %v2735, %v2759
      %v2775 = vadd.f32 %v2736, %v2759
      %v2776 = vadd.f32 %v2737, %v2759
      %v2777 = vadd.f32 %v2738, %v2759
      %v2778 = vadd.f32 %v2739, %v2759
      %v2779 = vadd.f32 %v2740, %v2759
      %v2780 = vadd.f32 %v2741, %v2759
      %v2781 = vadd.f32 %v2742, %v2759
      %v2782 = vadd.f32 %v2743, %v2759
      %v2783 = vadd.f32 %v2744, %v2759
      %v2784 = vadd.f32 %v2745, %v2759
      %v2785 = vadd.f32 %v2746, %v2759
      %v2786 = vadd.f32 %v2747, %v2759
      %v2787 = vadd.f32 %v2748, %v2759
      %v2788 = vadd.f32 %v2749, %v2759
      %v2789 = vadd.f32 %v2750, %v2759
      %v2790 = vadd.f32 %v2751, %v2759
      %v2791 = vadd.f32 %v2752, %v2759
      %v2792 = vadd.f32 %v2753, %v2759
      %v2793 = vmax.f32 %v2761, 0.0
      %v2794 = vmax.f32 %v2762, 0.0
      %v2795 = vmax.f32 %v2763, 0.0
      %v2796 = vmax.f32 %v2764, 0.0
      %v2797 = vmax.f32 %v2765, 0.0
      %v2798 = vmax.f32 %v2766, 0.0
      %v2799 = vmax.f32 %v2767, 0.0
      %v2800 = vmax.f32 %v2768, 0.0
      %v2801 = vmax.f32 %v2769, 0.0
      %v2802 = vmax.f32 %v2770, 0.0
      %v2803 = vmax.f32 %v2771, 0.0
      %v2804 = vmax.f32 %v2772, 0.0
      %v2805 = vmax.f32 %v2773, 0.0
      %v2806 = vmax.f32 %v2774, 0.0
      %v2807 = vmax.f32 %v2775, 0.0
      %v2808 = vmax.f32 %v2776, 0.0
      %v2809 = vmax.f32 %v2777, 0.0
      %v2810 = vmax.f32 %v2778, 0.0
      %v2811 = vmax.f32 %v2779, 0.0
      %v2812 = vmax.f32 %v2780, 0.0
      %v2813 = vmax.f32 %v2781, 0.0
      %v2814 = vmax.f32 %v2782, 0.0
      %v2815 = vmax.f32 %v2783, 0.0
      %v2816 = vmax.f32 %v2784, 0.0
      %v2817 = vmax.f32 %v2785, 0.0
      %v2818 = vmax.f32 %v2786, 0.0
      %v2819 = vmax.f32 %v2787, 0.0
      %v2820 = vmax.f32 %v2788, 0.0
      %v2821 = vmax.f32 %v2789, 0.0
      %v2822 = vmax.f32 %v2790, 0.0
      %v2823 = vmax.f32 %v2791, 0.0
      %v2824 = vmax.f32 %v2792, 0.0
      %vm2825 = vcmask 261120
      %2826 = vst.msk [vmem:[#allocation2] sm:$0xff] %vm2825, 0.0
      %2827 = vst.msk [vmem:[#allocation2 + $0x8] sm:$0xff] %vm2825, 0.0
      %vm2828 = vcmask 254976
      %2829 = vst.msk [vmem:[#allocation2 + $0x10] sm:$0x3] %vm2828, 0.0
      %2830 = vst.msk [vmem:[#allocation2 + $0x18] sm:$0xff] %vm2825, 0.0
      %2831 = vst.msk [vmem:[#allocation2 + $0x20] sm:$0xff] %vm2825, 0.0
      %2832 = vst.msk [vmem:[#allocation2 + $0x28] sm:$0x3] %vm2828, 0.0
      %2833 = vst.msk [vmem:[#allocation2 + $0x30] sm:$0xff] %vm2825, 0.0
      %2834 = vst.msk [vmem:[#allocation2 + $0x38] sm:$0xff] %vm2825, 0.0
      %2835 = vst.msk [vmem:[#allocation2 + $0x40] sm:$0x3] %vm2828, 0.0
      %2836 = vst.msk [vmem:[#allocation2 + $0x48] sm:$0xff] %vm2825, 0.0
      %2837 = vst.msk [vmem:[#allocation2 + $0x50] sm:$0xff] %vm2825, 0.0
      %2838 = vst.msk [vmem:[#allocation2 + $0x58] sm:$0x3] %vm2828, 0.0
      %2839 = vst.msk [vmem:[#allocation2 + $0x60] sm:$0xff] %vm2825, 0.0
      %2840 = vst.msk [vmem:[#allocation2 + $0x68] sm:$0xff] %vm2825, 0.0
      %2841 = vst.msk [vmem:[#allocation2 + $0x70] sm:$0x3] %vm2828, 0.0
      %2842 = vst.msk [vmem:[#allocation2 + $0x78] sm:$0xff] %vm2825, 0.0
      %2843 = vst.msk [vmem:[#allocation2 + $0x80] sm:$0xff] %vm2825, 0.0
      %2844 = vst.msk [vmem:[#allocation2 + $0x88] sm:$0x3] %vm2828, 0.0
      %2845 = vst.msk [vmem:[#allocation2 + $0x90] sm:$0xff] %vm2825, 0.0
      %2846 = vst.msk [vmem:[#allocation2 + $0x98] sm:$0xff] %vm2825, 0.0
      %2847 = vst.msk [vmem:[#allocation2 + $0xa0] sm:$0x3] %vm2828, 0.0
      %2848 = vst.msk [vmem:[#allocation2 + $0xa8] sm:$0xff] %vm2825, 0.0
      %2849 = vst.msk [vmem:[#allocation2 + $0xb0] sm:$0xff] %vm2825, 0.0
      %2850 = vst.msk [vmem:[#allocation2 + $0xb8] sm:$0x3] %vm2828, 0.0
      %2851 = vst.msk [vmem:[#allocation2 + $0xc0] sm:$0xff] %vm2825, 0.0
      %2852 = vst.msk [vmem:[#allocation2 + $0xc8] sm:$0xff] %vm2825, 0.0
      %2853 = vst.msk [vmem:[#allocation2 + $0xd0] sm:$0x3] %vm2828, 0.0
      %2854 = vst.msk [vmem:[#allocation2 + $0xd8] sm:$0xff] %vm2825, 0.0
      %2855 = vst.msk [vmem:[#allocation2 + $0xe0] sm:$0xff] %vm2825, 0.0
      %2856 = vst.msk [vmem:[#allocation2 + $0xe8] sm:$0x3] %vm2828, 0.0
      %2857 = vst.msk [vmem:[#allocation2 + $0xf0] sm:$0xff] %vm2825, 0.0
      %2858 = vst.msk [vmem:[#allocation2 + $0xf8] sm:$0xff] %vm2825, 0.0
      %2859 = vst.msk [vmem:[#allocation2 + $0x100] sm:$0x3] %vm2828, 0.0
      %2860 = vst.msk [vmem:[#allocation2 + $0x108] sm:$0xff] %vm2825, 0.0
      %2861 = vst.msk [vmem:[#allocation2 + $0x110] sm:$0xff] %vm2825, 0.0
      %2862 = vst.msk [vmem:[#allocation2 + $0x118] sm:$0x3] %vm2828, 0.0
      %2863 = vst.msk [vmem:[#allocation2 + $0x120] sm:$0xff] %vm2825, 0.0
      %2864 = vst.msk [vmem:[#allocation2 + $0x128] sm:$0xff] %vm2825, 0.0
      %2865 = vst.msk [vmem:[#allocation2 + $0x130] sm:$0x3] %vm2828, 0.0
      %2866 = vst.msk [vmem:[#allocation2 + $0x138] sm:$0xff] %vm2825, 0.0
      %2867 = vst.msk [vmem:[#allocation2 + $0x140] sm:$0xff] %vm2825, 0.0
      %2868 = vst.msk [vmem:[#allocation2 + $0x148] sm:$0x3] %vm2828, 0.0
      %2869 = vst.msk [vmem:[#allocation2 + $0x150] sm:$0xff] %vm2825, 0.0
      %2870 = vst.msk [vmem:[#allocation2 + $0x158] sm:$0xff] %vm2825, 0.0
      %2871 = vst.msk [vmem:[#allocation2 + $0x160] sm:$0x3] %vm2828, 0.0
      %2872 = vst.msk [vmem:[#allocation2 + $0x168] sm:$0xff] %vm2825, 0.0
      %2873 = vst.msk [vmem:[#allocation2 + $0x170] sm:$0xff] %vm2825, 0.0
      %2874 = vst.msk [vmem:[#allocation2 + $0x178] sm:$0x3] %vm2828, 0.0
      %2875 = vst.msk [vmem:[#allocation2 + $0x180] sm:$0xff] %vm2825, 0.0
      %2876 = vst.msk [vmem:[#allocation2 + $0x188] sm:$0xff] %vm2825, 0.0
      %2877 = vst.msk [vmem:[#allocation2 + $0x190] sm:$0x3] %vm2828, 0.0
      %2878 = vst.msk [vmem:[#allocation2 + $0x198] sm:$0xff] %vm2825, 0.0
      %2879 = vst.msk [vmem:[#allocation2 + $0x1a0] sm:$0xff] %vm2825, 0.0
      %2880 = vst.msk [vmem:[#allocation2 + $0x1a8] sm:$0x3] %vm2828, 0.0
      %s2881 = scalar_lea.vmem [#allocation2], 24
      %2882 = vst.msk [vmem:[%s2881 + $0x1] sm:$0xff] %vm2825, %v2793
      %2883 = vst.msk [vmem:[%s2881 + $0x9] sm:$0xff] %vm2825, %v2794
      %2884 = vst.msk [vmem:[%s2881 + $0x19] sm:$0xff] %vm2825, %v2795
      %2885 = vst.msk [vmem:[%s2881 + $0x21] sm:$0xff] %vm2825, %v2796
      %2886 = vst.msk [vmem:[%s2881 + $0x31] sm:$0xff] %vm2825, %v2797
      %2887 = vst.msk [vmem:[%s2881 + $0x39] sm:$0xff] %vm2825, %v2798
      %2888 = vst.msk [vmem:[%s2881 + $0x49] sm:$0xff] %vm2825, %v2799
      %2889 = vst.msk [vmem:[%s2881 + $0x51] sm:$0xff] %vm2825, %v2800
      %2890 = vst.msk [vmem:[%s2881 + $0x61] sm:$0xff] %vm2825, %v2801
      %2891 = vst.msk [vmem:[%s2881 + $0x69] sm:$0xff] %vm2825, %v2802
      %2892 = vst.msk [vmem:[%s2881 + $0x79] sm:$0xff] %vm2825, %v2803
      %2893 = vst.msk [vmem:[%s2881 + $0x81] sm:$0xff] %vm2825, %v2804
      %2894 = vst.msk [vmem:[%s2881 + $0x91] sm:$0xff] %vm2825, %v2805
      %2895 = vst.msk [vmem:[%s2881 + $0x99] sm:$0xff] %vm2825, %v2806
      %2896 = vst.msk [vmem:[%s2881 + $0xa9] sm:$0xff] %vm2825, %v2807
      %2897 = vst.msk [vmem:[%s2881 + $0xb1] sm:$0xff] %vm2825, %v2808
      %2898 = vst.msk [vmem:[%s2881 + $0xc1] sm:$0xff] %vm2825, %v2809
      %2899 = vst.msk [vmem:[%s2881 + $0xc9] sm:$0xff] %vm2825, %v2810
      %2900 = vst.msk [vmem:[%s2881 + $0xd9] sm:$0xff] %vm2825, %v2811
      %2901 = vst.msk [vmem:[%s2881 + $0xe1] sm:$0xff] %vm2825, %v2812
      %2902 = vst.msk [vmem:[%s2881 + $0xf1] sm:$0xff] %vm2825, %v2813
      %2903 = vst.msk [vmem:[%s2881 + $0xf9] sm:$0xff] %vm2825, %v2814
      %2904 = vst.msk [vmem:[%s2881 + $0x109] sm:$0xff] %vm2825, %v2815
      %2905 = vst.msk [vmem:[%s2881 + $0x111] sm:$0xff] %vm2825, %v2816
      %2906 = vst.msk [vmem:[%s2881 + $0x121] sm:$0xff] %vm2825, %v2817
      %2907 = vst.msk [vmem:[%s2881 + $0x129] sm:$0xff] %vm2825, %v2818
      %2908 = vst.msk [vmem:[%s2881 + $0x139] sm:$0xff] %vm2825, %v2819
      %2909 = vst.msk [vmem:[%s2881 + $0x141] sm:$0xff] %vm2825, %v2820
      %2910 = vst.msk [vmem:[%s2881 + $0x151] sm:$0xff] %vm2825, %v2821
      %2911 = vst.msk [vmem:[%s2881 + $0x159] sm:$0xff] %vm2825, %v2822
      %2912 = vst.msk [vmem:[%s2881 + $0x169] sm:$0xff] %vm2825, %v2823
      %2913 = vst.msk [vmem:[%s2881 + $0x171] sm:$0xff] %vm2825, %v2824
      %v2914 = vld [vmem:[#allocation2] sm:$0xff]
      %v2915 = vld [vmem:[#allocation2 + $0x8] sm:$0xff]
      %v2916 = vld [vmem:[#allocation2 + $0x18] sm:$0xff]
      %v2917 = vld [vmem:[#allocation2 + $0x20] sm:$0xff]
      %v2918 = vld [vmem:[#allocation2 + $0x30] sm:$0xff]
      %v2919 = vld [vmem:[#allocation2 + $0x38] sm:$0xff]
      %v2920 = vld [vmem:[#allocation2 + $0x48] sm:$0xff]
      %v2921 = vld [vmem:[#allocation2 + $0x50] sm:$0xff]
      %v2922 = vld [vmem:[#allocation2 + $0x60] sm:$0xff]
      %v2923 = vld [vmem:[#allocation2 + $0x68] sm:$0xff]
      %v2924 = vld [vmem:[#allocation2 + $0x78] sm:$0xff]
      %v2925 = vld [vmem:[#allocation2 + $0x80] sm:$0xff]
      %v2926 = vld [vmem:[#allocation2 + $0x90] sm:$0xff]
      %v2927 = vld [vmem:[#allocation2 + $0x98] sm:$0xff]
      %v2928 = vld [vmem:[#allocation2 + $0xa8] sm:$0xff]
      %v2929 = vld [vmem:[#allocation2 + $0xb0] sm:$0xff]
      %v2930 = vld [vmem:[#allocation2 + $0xc0] sm:$0xff]
      %v2931 = vld [vmem:[#allocation2 + $0xc8] sm:$0xff]
      %v2932 = vld [vmem:[#allocation2 + $0xd8] sm:$0xff]
      %v2933 = vld [vmem:[#allocation2 + $0xe0] sm:$0xff]
      %v2934 = vld [vmem:[#allocation2 + $0xf0] sm:$0xff]
      %v2935 = vld [vmem:[#allocation2 + $0xf8] sm:$0xff]
      %v2936 = vld [vmem:[#allocation2 + $0x108] sm:$0xff]
      %v2937 = vld [vmem:[#allocation2 + $0x110] sm:$0xff]
      %v2938 = vld [vmem:[#allocation2 + $0x120] sm:$0xff]
      %v2939 = vld [vmem:[#allocation2 + $0x128] sm:$0xff]
      %v2940 = vld [vmem:[#allocation2 + $0x138] sm:$0xff]
      %v2941 = vld [vmem:[#allocation2 + $0x140] sm:$0xff]
      %v2942 = vld [vmem:[#allocation2 + $0x150] sm:$0xff]
      %v2943 = vld [vmem:[#allocation2 + $0x158] sm:$0xff]
      %v2944 = vld [vmem:[#allocation2 + $0x168] sm:$0xff]
      %v2945 = vld [vmem:[#allocation2 + $0x170] sm:$0xff]
      %v2946 = vld [vmem:[%s3] sm:$0xff]
      %v2947 = vld [vmem:[%s3 + $0x8] sm:$0xff]
      %v2948 = vld [vmem:[%s3 + $0x10] sm:$0xff]
      %v2949 = vld [vmem:[%s3 + $0x18] sm:$0xff]
      %v2950 = vld [vmem:[#allocation2 + $0x1] sm:$0xff]
      %v2951 = vld [vmem:[#allocation2 + $0x9] sm:$0xff]
      %v2952 = vld [vmem:[#allocation2 + $0x19] sm:$0xff]
      %v2953 = vld [vmem:[#allocation2 + $0x21] sm:$0xff]
      %v2954 = vld [vmem:[#allocation2 + $0x31] sm:$0xff]
      %v2955 = vld [vmem:[#allocation2 + $0x39] sm:$0xff]
      %v2956 = vld [vmem:[#allocation2 + $0x49] sm:$0xff]
      %v2957 = vld [vmem:[#allocation2 + $0x51] sm:$0xff]
      %v2958 = vld [vmem:[#allocation2 + $0x61] sm:$0xff]
      %v2959 = vld [vmem:[#allocation2 + $0x69] sm:$0xff]
      %v2960 = vld [vmem:[#allocation2 + $0x79] sm:$0xff]
      %v2961 = vld [vmem:[#allocation2 + $0x81] sm:$0xff]
      %v2962 = vld [vmem:[#allocation2 + $0x91] sm:$0xff]
      %v2963 = vld [vmem:[#allocation2 + $0x99] sm:$0xff]
      %v2964 = vld [vmem:[#allocation2 + $0xa9] sm:$0xff]
      %v2965 = vld [vmem:[#allocation2 + $0xb1] sm:$0xff]
      %v2966 = vld [vmem:[#allocation2 + $0xc1] sm:$0xff]
      %v2967 = vld [vmem:[#allocation2 + $0xc9] sm:$0xff]
      %v2968 = vld [vmem:[#allocation2 + $0xd9] sm:$0xff]
      %v2969 = vld [vmem:[#allocation2 + $0xe1] sm:$0xff]
      %v2970 = vld [vmem:[#allocation2 + $0xf1] sm:$0xff]
      %v2971 = vld [vmem:[#allocation2 + $0xf9] sm:$0xff]
      %v2972 = vld [vmem:[#allocation2 + $0x109] sm:$0xff]
      %v2973 = vld [vmem:[#allocation2 + $0x111] sm:$0xff]
      %v2974 = vld [vmem:[#allocation2 + $0x121] sm:$0xff]
      %v2975 = vld [vmem:[#allocation2 + $0x129] sm:$0xff]
      %v2976 = vld [vmem:[#allocation2 + $0x139] sm:$0xff]
      %v2977 = vld [vmem:[#allocation2 + $0x141] sm:$0xff]
      %v2978 = vld [vmem:[#allocation2 + $0x151] sm:$0xff]
      %v2979 = vld [vmem:[#allocation2 + $0x159] sm:$0xff]
      %v2980 = vld [vmem:[#allocation2 + $0x169] sm:$0xff]
      %v2981 = vld [vmem:[#allocation2 + $0x171] sm:$0xff]
      %s2982 = scalar_lea.vmem %s3, 32
      %v2983 = vld [vmem:[%s2982] sm:$0xff]
      %v2984 = vld [vmem:[%s2982 + $0x8] sm:$0xff]
      %v2985 = vld [vmem:[%s2982 + $0x10] sm:$0xff]
      %v2986 = vld [vmem:[%s2982 + $0x18] sm:$0xff]
      %v2988 = vsel %vm2825, %v2983, 0
      %v2991 = vsel %vm2825, %v2984, 0
      %v2994 = vsel %vm2825, %v2985, 0
      %v2997 = vsel %vm2825, %v2986, 0
      %v3000 = vsel %vm2825, %v2950, 0
      %v3003 = vsel %vm2825, %v2951, 0
      %v3006 = vsel %vm2825, %v2952, 0
      %v3009 = vsel %vm2825, %v2953, 0
      %v3012 = vsel %vm2825, %v2954, 0
      %v3015 = vsel %vm2825, %v2955, 0
      %v3018 = vsel %vm2825, %v2956, 0
      %v3021 = vsel %vm2825, %v2957, 0
      %v3024 = vsel %vm2825, %v2958, 0
      %v3027 = vsel %vm2825, %v2959, 0
      %v3030 = vsel %vm2825, %v2960, 0
      %v3033 = vsel %vm2825, %v2961, 0
      %v3036 = vsel %vm2825, %v2962, 0
      %v3039 = vsel %vm2825, %v2963, 0
      %v3042 = vsel %vm2825, %v2964, 0
      %v3045 = vsel %vm2825, %v2965, 0
      %v3048 = vsel %vm2825, %v2966, 0
      %v3051 = vsel %vm2825, %v2967, 0
      %v3054 = vsel %vm2825, %v2968, 0
      %v3057 = vsel %vm2825, %v2969, 0
      %v3060 = vsel %vm2825, %v2970, 0
      %v3063 = vsel %vm2825, %v2971, 0
      %v3066 = vsel %vm2825, %v2972, 0
      %v3069 = vsel %vm2825, %v2973, 0
      %v3072 = vsel %vm2825, %v2974, 0
      %v3075 = vsel %vm2825, %v2975, 0
      %v3078 = vsel %vm2825, %v2976, 0
      %v3081 = vsel %vm2825, %v2977, 0
      %v3084 = vsel %vm2825, %v2978, 0
      %v3087 = vsel %vm2825, %v2979, 0
      %v3090 = vsel %vm2825, %v2980, 0
      %v3093 = vsel %vm2825, %v2981, 0
      %3095 = vmatprep.subr.mxu0 0.0
      %3096 = vmatpush1.xpose.msra.mxu0 %v3000
      %3097 = vmatprep.subr.mxu0 0.0
      %3098 = vmatpush1.xpose.msra.mxu0 %v3003
      %3099 = vmatprep.subr.mxu0 0.0
      %3100 = vmatpush1.xpose.msra.mxu0 %v3006
      %3101 = vmatprep.subr.mxu0 0.0
      %3102 = vmatpush1.xpose.msra.mxu0 %v3009
      %3103 = vmatprep.subr.mxu0 0.0
      %3104 = vmatpush1.xpose.msra.mxu0 %v3012
      %3105 = vmatprep.subr.mxu0 0.0
      %3106 = vmatpush1.xpose.msra.mxu0 %v3015
      %3107 = vmatprep.subr.mxu0 0.0
      %3108 = vmatpush1.xpose.msra.mxu0 %v3018
      %3109 = vmatprep.subr.mxu0 0.0
      %3110 = vmatpush1.xpose.msra.mxu0 %v3021
      %3111 = vmatprep.subr.mxu0 0.0
      %3112 = vmatpush1.xpose.msra.mxu0 %v3024
      %3113 = vmatprep.subr.mxu0 0.0
      %3114 = vmatpush1.xpose.msra.mxu0 %v3027
      %3115 = vmatprep.subr.mxu0 0.0
      %3116 = vmatpush1.xpose.msra.mxu0 %v3030
      %3117 = vmatprep.subr.mxu0 0.0
      %3118 = vmatpush1.xpose.msra.mxu0 %v3033
      %3119 = vmatprep.subr.mxu0 0.0
      %3120 = vmatpush1.xpose.msra.mxu0 %v3036
      %3121 = vmatprep.subr.mxu0 0.0
      %3122 = vmatpush1.xpose.msra.mxu0 %v3039
      %3123 = vmatprep.subr.mxu0 0.0
      %3124 = vmatpush1.xpose.msra.mxu0 %v3042
      %3125 = vmatprep.subr.mxu0 0.0
      %3126 = vmatpush1.xpose.msra.mxu0 %v3045
      %3127 = vmatprep.subr.mxu0 0.0
      %3128 = vmatpush1.xpose.msra.mxu0 %v3048
      %3129 = vmatprep.subr.mxu0 0.0
      %3130 = vmatpush1.xpose.msra.mxu0 %v3051
      %3131 = vmatprep.subr.mxu0 0.0
      %3132 = vmatpush1.xpose.msra.mxu0 %v3054
      %3133 = vmatprep.subr.mxu0 0.0
      %3134 = vmatpush1.xpose.msra.mxu0 %v3057
      %3135 = vmatprep.subr.mxu0 0.0
      %3136 = vmatpush1.xpose.msra.mxu0 %v3060
      %3137 = vmatprep.subr.mxu0 0.0
      %3138 = vmatpush1.xpose.msra.mxu0 %v3063
      %3139 = vmatprep.subr.mxu0 0.0
      %3140 = vmatpush1.xpose.msra.mxu0 %v3066
      %3141 = vmatprep.subr.mxu0 0.0
      %3142 = vmatpush1.xpose.msra.mxu0 %v3069
      %3143 = vmatprep.subr.mxu0 0.0
      %3144 = vmatpush1.xpose.msra.mxu0 %v3072
      %3145 = vmatprep.subr.mxu0 0.0
      %3146 = vmatpush1.xpose.msra.mxu0 %v3075
      %3147 = vmatprep.subr.mxu0 0.0
      %3148 = vmatpush1.xpose.msra.mxu0 %v3078
      %3149 = vmatprep.subr.mxu0 0.0
      %3150 = vmatpush1.xpose.msra.mxu0 %v3081
      %3151 = vmatprep.subr.mxu0 0.0
      %3152 = vmatpush1.xpose.msra.mxu0 %v3084
      %3153 = vmatprep.subr.mxu0 0.0
      %3154 = vmatpush1.xpose.msra.mxu0 %v3087
      %3155 = vmatprep.subr.mxu0 0.0
      %3156 = vmatpush1.xpose.msra.mxu0 %v3090
      %3157 = vmatprep.subr.mxu0 0.0
      %3158 = vmatpush1.xpose.msra.mxu0 %v3093
      %3159 = vmatprep.mubr.f32.mxu0 0.0
      %3160 = vmatmul.mubr.f32.gmra.mrb[0].mxu0 %v2988
      %v3161 = vpop.f32.mrb[0].mxu0
      %v3162 = vadd.f32 0.0, %v3161
      %v3163 = vpop.f32.mrb[0].mxu0
      %v3164 = vadd.f32 0.0, %v3163
      %3165 = vmatprep.mubr.f32.mxu0 0.0
      %3166 = vmatmul.mubr.f32.gmra.mrb[0].mxu0 %v2991
      %v3167 = vpop.f32.mrb[0].mxu0
      %v3168 = vadd.f32 0.0, %v3167
      %v3169 = vpop.f32.mrb[0].mxu0
      %v3170 = vadd.f32 0.0, %v3169
      %3171 = vmatprep.mubr.f32.mxu0 0.0
      %3172 = vmatmul.mubr.f32.gmra.mrb[0].mxu0 %v2994
      %v3173 = vpop.f32.mrb[0].mxu0
      %v3174 = vadd.f32 0.0, %v3173
      %v3175 = vpop.f32.mrb[0].mxu0
      %v3176 = vadd.f32 0.0, %v3175
      %3177 = vmatprep.mubr.f32.mxu0 0.0
      %3178 = vmatmul.mubr.f32.gmra.mrb[0].mxu0 %v2997
      %v3179 = vpop.f32.mrb[0].mxu0
      %v3180 = vadd.f32 0.0, %v3179
      %v3181 = vpop.f32.mrb[0].mxu0
      %v3182 = vadd.f32 0.0, %v3181
      %3183 = vdwg.mxu0
      %v3185 = vsel %vm2825, %v2946, 0
      %v3188 = vsel %vm2825, %v2947, 0
      %v3191 = vsel %vm2825, %v2948, 0
      %v3194 = vsel %vm2825, %v2949, 0
      %v3197 = vsel %vm2825, %v2914, 0
      %v3200 = vsel %vm2825, %v2915, 0
      %v3203 = vsel %vm2825, %v2916, 0
      %v3206 = vsel %vm2825, %v2917, 0
      %v3209 = vsel %vm2825, %v2918, 0
      %v3212 = vsel %vm2825, %v2919, 0
      %v3215 = vsel %vm2825, %v2920, 0
      %v3218 = vsel %vm2825, %v2921, 0
      %v3221 = vsel %vm2825, %v2922, 0
      %v3224 = vsel %vm2825, %v2923, 0
      %v3227 = vsel %vm2825, %v2924, 0
      %v3230 = vsel %vm2825, %v2925, 0
      %v3233 = vsel %vm2825, %v2926, 0
      %v3236 = vsel %vm2825, %v2927, 0
      %v3239 = vsel %vm2825, %v2928, 0
      %v3242 = vsel %vm2825, %v2929, 0
      %v3245 = vsel %vm2825, %v2930, 0
      %v3248 = vsel %vm2825, %v2931, 0
      %v3251 = vsel %vm2825, %v2932, 0
      %v3254 = vsel %vm2825, %v2933, 0
      %v3257 = vsel %vm2825, %v2934, 0
      %v3260 = vsel %vm2825, %v2935, 0
      %v3263 = vsel %vm2825, %v2936, 0
      %v3266 = vsel %vm2825, %v2937, 0
      %v3269 = vsel %vm2825, %v2938, 0
      %v3272 = vsel %vm2825, %v2939, 0
      %v3275 = vsel %vm2825, %v2940, 0
      %v3278 = vsel %vm2825, %v2941, 0
      %v3281 = vsel %vm2825, %v2942, 0
      %v3284 = vsel %vm2825, %v2943, 0
      %v3287 = vsel %vm2825, %v2944, 0
      %v3290 = vsel %vm2825, %v2945, 0
      %3292 = vmatprep.subr.mxu0 0.0
      %3293 = vmatpush1.xpose.msra.mxu0 %v3197
      %3294 = vmatprep.subr.mxu0 0.0
      %3295 = vmatpush1.xpose.msra.mxu0 %v3200
      %3296 = vmatprep.subr.mxu0 0.0
      %3297 = vmatpush1.xpose.msra.mxu0 %v3203
      %3298 = vmatprep.subr.mxu0 0.0
      %3299 = vmatpush1.xpose.msra.mxu0 %v3206
      %3300 = vmatprep.subr.mxu0 0.0
      %3301 = vmatpush1.xpose.msra.mxu0 %v3209
      %3302 = vmatprep.subr.mxu0 0.0
      %3303 = vmatpush1.xpose.msra.mxu0 %v3212
      %3304 = vmatprep.subr.mxu0 0.0
      %3305 = vmatpush1.xpose.msra.mxu0 %v3215
      %3306 = vmatprep.subr.mxu0 0.0
      %3307 = vmatpush1.xpose.msra.mxu0 %v3218
      %3308 = vmatprep.subr.mxu0 0.0
      %3309 = vmatpush1.xpose.msra.mxu0 %v3221
      %3310 = vmatprep.subr.mxu0 0.0
      %3311 = vmatpush1.xpose.msra.mxu0 %v3224
      %3312 = vmatprep.subr.mxu0 0.0
      %3313 = vmatpush1.xpose.msra.mxu0 %v3227
      %3314 = vmatprep.subr.mxu0 0.0
      %3315 = vmatpush1.xpose.msra.mxu0 %v3230
      %3316 = vmatprep.subr.mxu0 0.0
      %3317 = vmatpush1.xpose.msra.mxu0 %v3233
      %3318 = vmatprep.subr.mxu0 0.0
      %3319 = vmatpush1.xpose.msra.mxu0 %v3236
      %3320 = vmatprep.subr.mxu0 0.0
      %3321 = vmatpush1.xpose.msra.mxu0 %v3239
      %3322 = vmatprep.subr.mxu0 0.0
      %3323 = vmatpush1.xpose.msra.mxu0 %v3242
      %3324 = vmatprep.subr.mxu0 0.0
      %3325 = vmatpush1.xpose.msra.mxu0 %v3245
      %3326 = vmatprep.subr.mxu0 0.0
      %3327 = vmatpush1.xpose.msra.mxu0 %v3248
      %3328 = vmatprep.subr.mxu0 0.0
      %3329 = vmatpush1.xpose.msra.mxu0 %v3251
      %3330 = vmatprep.subr.mxu0 0.0
      %3331 = vmatpush1.xpose.msra.mxu0 %v3254
      %3332 = vmatprep.subr.mxu0 0.0
      %3333 = vmatpush1.xpose.msra.mxu0 %v3257
      %3334 = vmatprep.subr.mxu0 0.0
      %3335 = vmatpush1.xpose.msra.mxu0 %v3260
      %3336 = vmatprep.subr.mxu0 0.0
      %3337 = vmatpush1.xpose.msra.mxu0 %v3263
      %3338 = vmatprep.subr.mxu0 0.0
      %3339 = vmatpush1.xpose.msra.mxu0 %v3266
      %3340 = vmatprep.subr.mxu0 0.0
      %3341 = vmatpush1.xpose.msra.mxu0 %v3269
      %3342 = vmatprep.subr.mxu0 0.0
      %3343 = vmatpush1.xpose.msra.mxu0 %v3272
      %3344 = vmatprep.subr.mxu0 0.0
      %3345 = vmatpush1.xpose.msra.mxu0 %v3275
      %3346 = vmatprep.subr.mxu0 0.0
      %3347 = vmatpush1.xpose.msra.mxu0 %v3278
      %3348 = vmatprep.subr.mxu0 0.0
      %3349 = vmatpush1.xpose.msra.mxu0 %v3281
      %3350 = vmatprep.subr.mxu0 0.0
      %3351 = vmatpush1.xpose.msra.mxu0 %v3284
      %3352 = vmatprep.subr.mxu0 0.0
      %3353 = vmatpush1.xpose.msra.mxu0 %v3287
      %3354 = vmatprep.subr.mxu0 0.0
      %3355 = vmatpush1.xpose.msra.mxu0 %v3290
      %3356 = vmatprep.mubr.f32.mxu0 0.0
      %3357 = vmatmul.mubr.f32.gmra.mrb[0].mxu0 %v3185
      %v3358 = vpop.f32.mrb[0].mxu0
      %v3359 = vadd.f32 %v3162, %v3358
      %v3360 = vpop.f32.mrb[0].mxu0
      %v3361 = vadd.f32 %v3164, %v3360
      %3362 = vmatprep.mubr.f32.mxu0 0.0
      %3363 = vmatmul.mubr.f32.gmra.mrb[0].mxu0 %v3188
      %v3364 = vpop.f32.mrb[0].mxu0
      %v3365 = vadd.f32 %v3168, %v3364
      %v3366 = vpop.f32.mrb[0].mxu0
      %v3367 = vadd.f32 %v3170, %v3366
      %3368 = vmatprep.mubr.f32.mxu0 0.0
      %3369 = vmatmul.mubr.f32.gmra.mrb[0].mxu0 %v3191
      %v3370 = vpop.f32.mrb[0].mxu0
      %v3371 = vadd.f32 %v3174, %v3370
      %v3372 = vpop.f32.mrb[0].mxu0
      %v3373 = vadd.f32 %v3176, %v3372
      %3374 = vmatprep.mubr.f32.mxu0 0.0
      %3375 = vmatmul.mubr.f32.gmra.mrb[0].mxu0 %v3194
      %v3376 = vpop.f32.mrb[0].mxu0
      %v3377 = vadd.f32 %v3180, %v3376
      %v3378 = vpop.f32.mrb[0].mxu0
      %v3379 = vadd.f32 %v3182, %v3378
      %3380 = vdwg.mxu0
      %v3381 = vld [vmem:[#allocation2 + $0x2] sm:$0xff]
      %v3382 = vld [vmem:[#allocation2 + $0xa] sm:$0xff]
      %v3383 = vld [vmem:[#allocation2 + $0x1a] sm:$0xff]
      %v3384 = vld [vmem:[#allocation2 + $0x22] sm:$0xff]
      %v3385 = vld [vmem:[#allocation2 + $0x32] sm:$0xff]
      %v3386 = vld [vmem:[#allocation2 + $0x3a] sm:$0xff]
      %v3387 = vld [vmem:[#allocation2 + $0x4a] sm:$0xff]
      %v3388 = vld [vmem:[#allocation2 + $0x52] sm:$0xff]
      %v3389 = vld [vmem:[#allocation2 + $0x62] sm:$0xff]
      %v3390 = vld [vmem:[#allocation2 + $0x6a] sm:$0xff]
      %v3391 = vld [vmem:[#allocation2 + $0x7a] sm:$0xff]
      %v3392 = vld [vmem:[#allocation2 + $0x82] sm:$0xff]
      %v3393 = vld [vmem:[#allocation2 + $0x92] sm:$0xff]
      %v3394 = vld [vmem:[#allocation2 + $0x9a] sm:$0xff]
      %v3395 = vld [vmem:[#allocation2 + $0xaa] sm:$0xff]
      %v3396 = vld [vmem:[#allocation2 + $0xb2] sm:$0xff]
      %v3397 = vld [vmem:[#allocation2 + $0xc2] sm:$0xff]
      %v3398 = vld [vmem:[#allocation2 + $0xca] sm:$0xff]
      %v3399 = vld [vmem:[#allocation2 + $0xda] sm:$0xff]
      %v3400 = vld [vmem:[#allocation2 + $0xe2] sm:$0xff]
      %v3401 = vld [vmem:[#allocation2 + $0xf2] sm:$0xff]
      %v3402 = vld [vmem:[#allocation2 + $0xfa] sm:$0xff]
      %v3403 = vld [vmem:[#allocation2 + $0x10a] sm:$0xff]
      %v3404 = vld [vmem:[#allocation2 + $0x112] sm:$0xff]
      %v3405 = vld [vmem:[#allocation2 + $0x122] sm:$0xff]
      %v3406 = vld [vmem:[#allocation2 + $0x12a] sm:$0xff]
      %v3407 = vld [vmem:[#allocation2 + $0x13a] sm:$0xff]
      %v3408 = vld [vmem:[#allocation2 + $0x142] sm:$0xff]
      %v3409 = vld [vmem:[#allocation2 + $0x152] sm:$0xff]
      %v3410 = vld [vmem:[#allocation2 + $0x15a] sm:$0xff]
      %v3411 = vld [vmem:[#allocation2 + $0x16a] sm:$0xff]
      %v3412 = vld [vmem:[#allocation2 + $0x172] sm:$0xff]
      %s3413 = scalar_lea.vmem %s3, 64
      %v3414 = vld [vmem:[%s3413] sm:$0xff]
      %v3415 = vld [vmem:[%s3413 + $0x8] sm:$0xff]
      %v3416 = vld [vmem:[%s3413 + $0x10] sm:$0xff]
      %v3417 = vld [vmem:[%s3413 + $0x18] sm:$0xff]
      %v3419 = vsel %vm2825, %v3414, 0
      %v3422 = vsel %vm2825, %v3415, 0
      %v3425 = vsel %vm2825, %v3416, 0
      %v3428 = vsel %vm2825, %v3417, 0
      %v3431 = vsel %vm2825, %v3381, 0
      %v3434 = vsel %vm2825, %v3382, 0
      %v3437 = vsel %vm2825, %v3383, 0
      %v3440 = vsel %vm2825, %v3384, 0
      %v3443 = vsel %vm2825, %v3385, 0
      %v3446 = vsel %vm2825, %v3386, 0
      %v3449 = vsel %vm2825, %v3387, 0
      %v3452 = vsel %vm2825, %v3388, 0
      %v3455 = vsel %vm2825, %v3389, 0
      %v3458 = vsel %vm2825, %v3390, 0
      %v3461 = vsel %vm2825, %v3391, 0
      %v3464 = vsel %vm2825, %v3392, 0
      %v3467 = vsel %vm2825, %v3393, 0
      %v3470 = vsel %vm2825, %v3394, 0
      %v3473 = vsel %vm2825, %v3395, 0
      %v3476 = vsel %vm2825, %v3396, 0
      %v3479 = vsel %vm2825, %v3397, 0
      %v3482 = vsel %vm2825, %v3398, 0
      %v3485 = vsel %vm2825, %v3399, 0
      %v3488 = vsel %vm2825, %v3400, 0
      %v3491 = vsel %vm2825, %v3401, 0
      %v3494 = vsel %vm2825, %v3402, 0
      %v3497 = vsel %vm2825, %v3403, 0
      %v3500 = vsel %vm2825, %v3404, 0
      %v3503 = vsel %vm2825, %v3405, 0
      %v3506 = vsel %vm2825, %v3406, 0
      %v3509 = vsel %vm2825, %v3407, 0
      %v3512 = vsel %vm2825, %v3408, 0
      %v3515 = vsel %vm2825, %v3409, 0
      %v3518 = vsel %vm2825, %v3410, 0
      %v3521 = vsel %vm2825, %v3411, 0
      %v3524 = vsel %vm2825, %v3412, 0
      %3526 = vmatprep.subr.mxu0 0.0
      %3527 = vmatpush1.xpose.msra.mxu0 %v3431
      %3528 = vmatprep.subr.mxu0 0.0
      %3529 = vmatpush1.xpose.msra.mxu0 %v3434
      %3530 = vmatprep.subr.mxu0 0.0
      %3531 = vmatpush1.xpose.msra.mxu0 %v3437
      %3532 = vmatprep.subr.mxu0 0.0
      %3533 = vmatpush1.xpose.msra.mxu0 %v3440
      %3534 = vmatprep.subr.mxu0 0.0
      %3535 = vmatpush1.xpose.msra.mxu0 %v3443
      %3536 = vmatprep.subr.mxu0 0.0
      %3537 = vmatpush1.xpose.msra.mxu0 %v3446
      %3538 = vmatprep.subr.mxu0 0.0
      %3539 = vmatpush1.xpose.msra.mxu0 %v3449
      %3540 = vmatprep.subr.mxu0 0.0
      %3541 = vmatpush1.xpose.msra.mxu0 %v3452
      %3542 = vmatprep.subr.mxu0 0.0
      %3543 = vmatpush1.xpose.msra.mxu0 %v3455
      %3544 = vmatprep.subr.mxu0 0.0
      %3545 = vmatpush1.xpose.msra.mxu0 %v3458
      %3546 = vmatprep.subr.mxu0 0.0
      %3547 = vmatpush1.xpose.msra.mxu0 %v3461
      %3548 = vmatprep.subr.mxu0 0.0
      %3549 = vmatpush1.xpose.msra.mxu0 %v3464
      %3550 = vmatprep.subr.mxu0 0.0
      %3551 = vmatpush1.xpose.msra.mxu0 %v3467
      %3552 = vmatprep.subr.mxu0 0.0
      %3553 = vmatpush1.xpose.msra.mxu0 %v3470
      %3554 = vmatprep.subr.mxu0 0.0
      %3555 = vmatpush1.xpose.msra.mxu0 %v3473
      %3556 = vmatprep.subr.mxu0 0.0
      %3557 = vmatpush1.xpose.msra.mxu0 %v3476
      %3558 = vmatprep.subr.mxu0 0.0
      %3559 = vmatpush1.xpose.msra.mxu0 %v3479
      %3560 = vmatprep.subr.mxu0 0.0
      %3561 = vmatpush1.xpose.msra.mxu0 %v3482
      %3562 = vmatprep.subr.mxu0 0.0
      %3563 = vmatpush1.xpose.msra.mxu0 %v3485
      %3564 = vmatprep.subr.mxu0 0.0
      %3565 = vmatpush1.xpose.msra.mxu0 %v3488
      %3566 = vmatprep.subr.mxu0 0.0
      %3567 = vmatpush1.xpose.msra.mxu0 %v3491
      %3568 = vmatprep.subr.mxu0 0.0
      %3569 = vmatpush1.xpose.msra.mxu0 %v3494
      %3570 = vmatprep.subr.mxu0 0.0
      %3571 = vmatpush1.xpose.msra.mxu0 %v3497
      %3572 = vmatprep.subr.mxu0 0.0
      %3573 = vmatpush1.xpose.msra.mxu0 %v3500
      %3574 = vmatprep.subr.mxu0 0.0
      %3575 = vmatpush1.xpose.msra.mxu0 %v3503
      %3576 = vmatprep.subr.mxu0 0.0
      %3577 = vmatpush1.xpose.msra.mxu0 %v3506
      %3578 = vmatprep.subr.mxu0 0.0
      %3579 = vmatpush1.xpose.msra.mxu0 %v3509
      %3580 = vmatprep.subr.mxu0 0.0
      %3581 = vmatpush1.xpose.msra.mxu0 %v3512
      %3582 = vmatprep.subr.mxu0 0.0
      %3583 = vmatpush1.xpose.msra.mxu0 %v3515
      %3584 = vmatprep.subr.mxu0 0.0
      %3585 = vmatpush1.xpose.msra.mxu0 %v3518
      %3586 = vmatprep.subr.mxu0 0.0
      %3587 = vmatpush1.xpose.msra.mxu0 %v3521
      %3588 = vmatprep.subr.mxu0 0.0
      %3589 = vmatpush1.xpose.msra.mxu0 %v3524
      %3590 = vmatprep.mubr.f32.mxu0 0.0
      %3591 = vmatmul.mubr.f32.gmra.mrb[0].mxu0 %v3419
      %v3592 = vpop.f32.mrb[0].mxu0
      %v3593 = vadd.f32 0.0, %v3592
      %v3594 = vpop.f32.mrb[0].mxu0
      %v3595 = vadd.f32 0.0, %v3594
      %3596 = vmatprep.mubr.f32.mxu0 0.0
      %3597 = vmatmul.mubr.f32.gmra.mrb[0].mxu0 %v3422
      %v3598 = vpop.f32.mrb[0].mxu0
      %v3599 = vadd.f32 0.0, %v3598
      %v3600 = vpop.f32.mrb[0].mxu0
      %v3601 = vadd.f32 0.0, %v3600
      %3602 = vmatprep.mubr.f32.mxu0 0.0
      %3603 = vmatmul.mubr.f32.gmra.mrb[0].mxu0 %v3425
      %v3604 = vpop.f32.mrb[0].mxu0
      %v3605 = vadd.f32 0.0, %v3604
      %v3606 = vpop.f32.mrb[0].mxu0
      %v3607 = vadd.f32 0.0, %v3606
      %3608 = vmatprep.mubr.f32.mxu0 0.0
      %3609 = vmatmul.mubr.f32.gmra.mrb[0].mxu0 %v3428
      %v3610 = vpop.f32.mrb[0].mxu0
      %v3611 = vadd.f32 0.0, %v3610
      %v3612 = vpop.f32.mrb[0].mxu0
      %v3613 = vadd.f32 0.0, %v3612
      %3614 = vdwg.mxu0
      %v3615 = vadd.f32 %v3359, %v3593
      %v3616 = vadd.f32 %v3361, %v3595
      %v3617 = vadd.f32 %v3365, %v3599
      %v3618 = vadd.f32 %v3367, %v3601
      %v3619 = vadd.f32 %v3371, %v3605
      %v3620 = vadd.f32 %v3373, %v3607
      %v3621 = vadd.f32 %v3377, %v3611
      %v3622 = vadd.f32 %v3379, %v3613
      %v3623 = vld [vmem:[%s2881] sm:$0xff]
      %v3624 = vld [vmem:[%s2881 + $0x8] sm:$0xff]
      %v3625 = vld [vmem:[%s2881 + $0x18] sm:$0xff]
      %v3626 = vld [vmem:[%s2881 + $0x20] sm:$0xff]
      %v3627 = vld [vmem:[%s2881 + $0x30] sm:$0xff]
      %v3628 = vld [vmem:[%s2881 + $0x38] sm:$0xff]
      %v3629 = vld [vmem:[%s2881 + $0x48] sm:$0xff]
      %v3630 = vld [vmem:[%s2881 + $0x50] sm:$0xff]
      %v3631 = vld [vmem:[%s2881 + $0x60] sm:$0xff]
      %v3632 = vld [vmem:[%s2881 + $0x68] sm:$0xff]
      %v3633 = vld [vmem:[%s2881 + $0x78] sm:$0xff]
      %v3634 = vld [vmem:[%s2881 + $0x80] sm:$0xff]
      %v3635 = vld [vmem:[%s2881 + $0x90] sm:$0xff]
      %v3636 = vld [vmem:[%s2881 + $0x98] sm:$0xff]
      %v3637 = vld [vmem:[%s2881 + $0xa8] sm:$0xff]
      %v3638 = vld [vmem:[%s2881 + $0xb0] sm:$0xff]
      %v3639 = vld [vmem:[%s2881 + $0xc0] sm:$0xff]
      %v3640 = vld [vmem:[%s2881 + $0xc8] sm:$0xff]
      %v3641 = vld [vmem:[%s2881 + $0xd8] sm:$0xff]
      %v3642 = vld [vmem:[%s2881 + $0xe0] sm:$0xff]
      %v3643 = vld [vmem:[%s2881 + $0xf0] sm:$0xff]
      %v3644 = vld [vmem:[%s2881 + $0xf8] sm:$0xff]
      %v3645 = vld [vmem:[%s2881 + $0x108] sm:$0xff]
      %v3646 = vld [vmem:[%s2881 + $0x110] sm:$0xff]
      %v3647 = vld [vmem:[%s2881 + $0x120] sm:$0xff]
      %v3648 = vld [vmem:[%s2881 + $0x128] sm:$0xff]
      %v3649 = vld [vmem:[%s2881 + $0x138] sm:$0xff]
      %v3650 = vld [vmem:[%s2881 + $0x140] sm:$0xff]
      %v3651 = vld [vmem:[%s2881 + $0x150] sm:$0xff]
      %v3652 = vld [vmem:[%s2881 + $0x158] sm:$0xff]
      %v3653 = vld [vmem:[%s2881 + $0x168] sm:$0xff]
      %v3654 = vld [vmem:[%s2881 + $0x170] sm:$0xff]
      %s3655 = scalar_lea.vmem %s3, 96
      %v3656 = vld [vmem:[%s3655] sm:$0xff]
      %v3657 = vld [vmem:[%s3655 + $0x8] sm:$0xff]
      %v3658 = vld [vmem:[%s3655 + $0x10] sm:$0xff]
      %v3659 = vld [vmem:[%s3655 + $0x18] sm:$0xff]
      %v3661 = vsel %vm2825, %v3656, 0
      %v3664 = vsel %vm2825, %v3657, 0
      %v3667 = vsel %vm2825, %v3658, 0
      %v3670 = vsel %vm2825, %v3659, 0
      %v3673 = vsel %vm2825, %v3623, 0
      %v3676 = vsel %vm2825, %v3624, 0
      %v3679 = vsel %vm2825, %v3625, 0
      %v3682 = vsel %vm2825, %v3626, 0
      %v3685 = vsel %vm2825, %v3627, 0
      %v3688 = vsel %vm2825, %v3628, 0
      %v3691 = vsel %vm2825, %v3629, 0
      %v3694 = vsel %vm2825, %v3630, 0
      %v3697 = vsel %vm2825, %v3631, 0
      %v3700 = vsel %vm2825, %v3632, 0
      %v3703 = vsel %vm2825, %v3633, 0
      %v3706 = vsel %vm2825, %v3634, 0
      %v3709 = vsel %vm2825, %v3635, 0
      %v3712 = vsel %vm2825, %v3636, 0
      %v3715 = vsel %vm2825, %v3637, 0
      %v3718 = vsel %vm2825, %v3638, 0
      %v3721 = vsel %vm2825, %v3639, 0
      %v3724 = vsel %vm2825, %v3640, 0
      %v3727 = vsel %vm2825, %v3641, 0
      %v3730 = vsel %vm2825, %v3642, 0
      %v3733 = vsel %vm2825, %v3643, 0
      %v3736 = vsel %vm2825, %v3644, 0
      %v3739 = vsel %vm2825, %v3645, 0
      %v3742 = vsel %vm2825, %v3646, 0
      %v3745 = vsel %vm2825, %v3647, 0
      %v3748 = vsel %vm2825, %v3648, 0
      %v3751 = vsel %vm2825, %v3649, 0
      %v3754 = vsel %vm2825, %v3650, 0
      %v3757 = vsel %vm2825, %v3651, 0
      %v3760 = vsel %vm2825, %v3652, 0
      %v3763 = vsel %vm2825, %v3653, 0
      %v3766 = vsel %vm2825, %v3654, 0
      %3768 = vmatprep.subr.mxu0 0.0
      %3769 = vmatpush1.xpose.msra.mxu0 %v3673
      %3770 = vmatprep.subr.mxu0 0.0
      %3771 = vmatpush1.xpose.msra.mxu0 %v3676
      %3772 = vmatprep.subr.mxu0 0.0
      %3773 = vmatpush1.xpose.msra.mxu0 %v3679
      %3774 = vmatprep.subr.mxu0 0.0
      %3775 = vmatpush1.xpose.msra.mxu0 %v3682
      %3776 = vmatprep.subr.mxu0 0.0
      %3777 = vmatpush1.xpose.msra.mxu0 %v3685
      %3778 = vmatprep.subr.mxu0 0.0
      %3779 = vmatpush1.xpose.msra.mxu0 %v3688
      %3780 = vmatprep.subr.mxu0 0.0
      %3781 = vmatpush1.xpose.msra.mxu0 %v3691
      %3782 = vmatprep.subr.mxu0 0.0
      %3783 = vmatpush1.xpose.msra.mxu0 %v3694
      %3784 = vmatprep.subr.mxu0 0.0
      %3785 = vmatpush1.xpose.msra.mxu0 %v3697
      %3786 = vmatprep.subr.mxu0 0.0
      %3787 = vmatpush1.xpose.msra.mxu0 %v3700
      %3788 = vmatprep.subr.mxu0 0.0
      %3789 = vmatpush1.xpose.msra.mxu0 %v3703
      %3790 = vmatprep.subr.mxu0 0.0
      %3791 = vmatpush1.xpose.msra.mxu0 %v3706
      %3792 = vmatprep.subr.mxu0 0.0
      %3793 = vmatpush1.xpose.msra.mxu0 %v3709
      %3794 = vmatprep.subr.mxu0 0.0
      %3795 = vmatpush1.xpose.msra.mxu0 %v3712
      %3796 = vmatprep.subr.mxu0 0.0
      %3797 = vmatpush1.xpose.msra.mxu0 %v3715
      %3798 = vmatprep.subr.mxu0 0.0
      %3799 = vmatpush1.xpose.msra.mxu0 %v3718
      %3800 = vmatprep.subr.mxu0 0.0
      %3801 = vmatpush1.xpose.msra.mxu0 %v3721
      %3802 = vmatprep.subr.mxu0 0.0
      %3803 = vmatpush1.xpose.msra.mxu0 %v3724
      %3804 = vmatprep.subr.mxu0 0.0
      %3805 = vmatpush1.xpose.msra.mxu0 %v3727
      %3806 = vmatprep.subr.mxu0 0.0
      %3807 = vmatpush1.xpose.msra.mxu0 %v3730
      %3808 = vmatprep.subr.mxu0 0.0
      %3809 = vmatpush1.xpose.msra.mxu0 %v3733
      %3810 = vmatprep.subr.mxu0 0.0
      %3811 = vmatpush1.xpose.msra.mxu0 %v3736
      %3812 = vmatprep.subr.mxu0 0.0
      %3813 = vmatpush1.xpose.msra.mxu0 %v3739
      %3814 = vmatprep.subr.mxu0 0.0
      %3815 = vmatpush1.xpose.msra.mxu0 %v3742
      %3816 = vmatprep.subr.mxu0 0.0
      %3817 = vmatpush1.xpose.msra.mxu0 %v3745
      %3818 = vmatprep.subr.mxu0 0.0
      %3819 = vmatpush1.xpose.msra.mxu0 %v3748
      %3820 = vmatprep.subr.mxu0 0.0
      %3821 = vmatpush1.xpose.msra.mxu0 %v3751
      %3822 = vmatprep.subr.mxu0 0.0
      %3823 = vmatpush1.xpose.msra.mxu0 %v3754
      %3824 = vmatprep.subr.mxu0 0.0
      %3825 = vmatpush1.xpose.msra.mxu0 %v3757
      %3826 = vmatprep.subr.mxu0 0.0
      %3827 = vmatpush1.xpose.msra.mxu0 %v3760
      %3828 = vmatprep.subr.mxu0 0.0
      %3829 = vmatpush1.xpose.msra.mxu0 %v3763
      %3830 = vmatprep.subr.mxu0 0.0
      %3831 = vmatpush1.xpose.msra.mxu0 %v3766
      %3832 = vmatprep.mubr.f32.mxu0 0.0
      %3833 = vmatmul.mubr.f32.gmra.mrb[0].mxu0 %v3661
      %v3834 = vpop.f32.mrb[0].mxu0
      %v3835 = vadd.f32 0.0, %v3834
      %v3836 = vpop.f32.mrb[0].mxu0
      %v3837 = vadd.f32 0.0, %v3836
      %3838 = vmatprep.mubr.f32.mxu0 0.0
      %3839 = vmatmul.mubr.f32.gmra.mrb[0].mxu0 %v3664
      %v3840 = vpop.f32.mrb[0].mxu0
      %v3841 = vadd.f32 0.0, %v3840
      %v3842 = vpop.f32.mrb[0].mxu0
      %v3843 = vadd.f32 0.0, %v3842
      %3844 = vmatprep.mubr.f32.mxu0 0.0
      %3845 = vmatmul.mubr.f32.gmra.mrb[0].mxu0 %v3667
      %v3846 = vpop.f32.mrb[0].mxu0
      %v3847 = vadd.f32 0.0, %v3846
      %v3848 = vpop.f32.mrb[0].mxu0
      %v3849 = vadd.f32 0.0, %v3848
      %3850 = vmatprep.mubr.f32.mxu0 0.0
      %3851 = vmatmul.mubr.f32.gmra.mrb[0].mxu0 %v3670
      %v3852 = vpop.f32.mrb[0].mxu0
      %v3853 = vadd.f32 0.0, %v3852
      %v3854 = vpop.f32.mrb[0].mxu0
      %v3855 = vadd.f32 0.0, %v3854
      %3856 = vdwg.mxu0
      %v3857 = vadd.f32 %v3615, %v3835
      %v3858 = vadd.f32 %v3616, %v3837
      %v3859 = vadd.f32 %v3617, %v3841
      %v3860 = vadd.f32 %v3618, %v3843
      %v3861 = vadd.f32 %v3619, %v3847
      %v3862 = vadd.f32 %v3620, %v3849
      %v3863 = vadd.f32 %v3621, %v3853
      %v3864 = vadd.f32 %v3622, %v3855
      %v3865 = vld [vmem:[%s2881 + $0x1] sm:$0xff]
      %v3866 = vld [vmem:[%s2881 + $0x9] sm:$0xff]
      %v3867 = vld [vmem:[%s2881 + $0x19] sm:$0xff]
      %v3868 = vld [vmem:[%s2881 + $0x21] sm:$0xff]
      %v3869 = vld [vmem:[%s2881 + $0x31] sm:$0xff]
      %v3870 = vld [vmem:[%s2881 + $0x39] sm:$0xff]
      %v3871 = vld [vmem:[%s2881 + $0x49] sm:$0xff]
      %v3872 = vld [vmem:[%s2881 + $0x51] sm:$0xff]
      %v3873 = vld [vmem:[%s2881 + $0x61] sm:$0xff]
      %v3874 = vld [vmem:[%s2881 + $0x69] sm:$0xff]
      %v3875 = vld [vmem:[%s2881 + $0x79] sm:$0xff]
      %v3876 = vld [vmem:[%s2881 + $0x81] sm:$0xff]
      %v3877 = vld [vmem:[%s2881 + $0x91] sm:$0xff]
      %v3878 = vld [vmem:[%s2881 + $0x99] sm:$0xff]
      %v3879 = vld [vmem:[%s2881 + $0xa9] sm:$0xff]
      %v3880 = vld [vmem:[%s2881 + $0xb1] sm:$0xff]
      %v3881 = vld [vmem:[%s2881 + $0xc1] sm:$0xff]
      %v3882 = vld [vmem:[%s2881 + $0xc9] sm:$0xff]
      %v3883 = vld [vmem:[%s2881 + $0xd9] sm:$0xff]
      %v3884 = vld [vmem:[%s2881 + $0xe1] sm:$0xff]
      %v3885 = vld [vmem:[%s2881 + $0xf1] sm:$0xff]
      %v3886 = vld [vmem:[%s2881 + $0xf9] sm:$0xff]
      %v3887 = vld [vmem:[%s2881 + $0x109] sm:$0xff]
      %v3888 = vld [vmem:[%s2881 + $0x111] sm:$0xff]
      %v3889 = vld [vmem:[%s2881 + $0x121] sm:$0xff]
      %v3890 = vld [vmem:[%s2881 + $0x129] sm:$0xff]
      %v3891 = vld [vmem:[%s2881 + $0x139] sm:$0xff]
      %v3892 = vld [vmem:[%s2881 + $0x141] sm:$0xff]
      %v3893 = vld [vmem:[%s2881 + $0x151] sm:$0xff]
      %v3894 = vld [vmem:[%s2881 + $0x159] sm:$0xff]
      %v3895 = vld [vmem:[%s2881 + $0x169] sm:$0xff]
      %v3896 = vld [vmem:[%s2881 + $0x171] sm:$0xff]
      %s3897 = scalar_lea.vmem %s3, 128
      %v3898 = vld [vmem:[%s3897] sm:$0xff]
      %v3899 = vld [vmem:[%s3897 + $0x8] sm:$0xff]
      %v3900 = vld [vmem:[%s3897 + $0x10] sm:$0xff]
      %v3901 = vld [vmem:[%s3897 + $0x18] sm:$0xff]
      %v3903 = vsel %vm2825, %v3898, 0
      %v3906 = vsel %vm2825, %v3899, 0
      %v3909 = vsel %vm2825, %v3900, 0
      %v3912 = vsel %vm2825, %v3901, 0
      %v3915 = vsel %vm2825, %v3865, 0
      %v3918 = vsel %vm2825, %v3866, 0
      %v3921 = vsel %vm2825, %v3867, 0
      %v3924 = vsel %vm2825, %v3868, 0
      %v3927 = vsel %vm2825, %v3869, 0
      %v3930 = vsel %vm2825, %v3870, 0
      %v3933 = vsel %vm2825, %v3871, 0
      %v3936 = vsel %vm2825, %v3872, 0
      %v3939 = vsel %vm2825, %v3873, 0
      %v3942 = vsel %vm2825, %v3874, 0
      %v3945 = vsel %vm2825, %v3875, 0
      %v3948 = vsel %vm2825, %v3876, 0
      %v3951 = vsel %vm2825, %v3877, 0
      %v3954 = vsel %vm2825, %v3878, 0
      %v3957 = vsel %vm2825, %v3879, 0
      %v3960 = vsel %vm2825, %v3880, 0
      %v3963 = vsel %vm2825, %v3881, 0
      %v3966 = vsel %vm2825, %v3882, 0
      %v3969 = vsel %vm2825, %v3883, 0
      %v3972 = vsel %vm2825, %v3884, 0
      %v3975 = vsel %vm2825, %v3885, 0
      %v3978 = vsel %vm2825, %v3886, 0
      %v3981 = vsel %vm2825, %v3887, 0
      %v3984 = vsel %vm2825, %v3888, 0
      %v3987 = vsel %vm2825, %v3889, 0
      %v3990 = vsel %vm2825, %v3890, 0
      %v3993 = vsel %vm2825, %v3891, 0
      %v3996 = vsel %vm2825, %v3892, 0
      %v3999 = vsel %vm2825, %v3893, 0
      %v4002 = vsel %vm2825, %v3894, 0
      %v4005 = vsel %vm2825, %v3895, 0
      %v4008 = vsel %vm2825, %v3896, 0
      %4010 = vmatprep.subr.mxu0 0.0
      %4011 = vmatpush1.xpose.msra.mxu0 %v3915
      %4012 = vmatprep.subr.mxu0 0.0
      %4013 = vmatpush1.xpose.msra.mxu0 %v3918
      %4014 = vmatprep.subr.mxu0 0.0
      %4015 = vmatpush1.xpose.msra.mxu0 %v3921
      %4016 = vmatprep.subr.mxu0 0.0
      %4017 = vmatpush1.xpose.msra.mxu0 %v3924
      %4018 = vmatprep.subr.mxu0 0.0
      %4019 = vmatpush1.xpose.msra.mxu0 %v3927
      %4020 = vmatprep.subr.mxu0 0.0
      %4021 = vmatpush1.xpose.msra.mxu0 %v3930
      %4022 = vmatprep.subr.mxu0 0.0
      %4023 = vmatpush1.xpose.msra.mxu0 %v3933
      %4024 = vmatprep.subr.mxu0 0.0
      %4025 = vmatpush1.xpose.msra.mxu0 %v3936
      %4026 = vmatprep.subr.mxu0 0.0
      %4027 = vmatpush1.xpose.msra.mxu0 %v3939
      %4028 = vmatprep.subr.mxu0 0.0
      %4029 = vmatpush1.xpose.msra.mxu0 %v3942
      %4030 = vmatprep.subr.mxu0 0.0
      %4031 = vmatpush1.xpose.msra.mxu0 %v3945
      %4032 = vmatprep.subr.mxu0 0.0
      %4033 = vmatpush1.xpose.msra.mxu0 %v3948
      %4034 = vmatprep.subr.mxu0 0.0
      %4035 = vmatpush1.xpose.msra.mxu0 %v3951
      %4036 = vmatprep.subr.mxu0 0.0
      %4037 = vmatpush1.xpose.msra.mxu0 %v3954
      %4038 = vmatprep.subr.mxu0 0.0
      %4039 = vmatpush1.xpose.msra.mxu0 %v3957
      %4040 = vmatprep.subr.mxu0 0.0
      %4041 = vmatpush1.xpose.msra.mxu0 %v3960
      %4042 = vmatprep.subr.mxu0 0.0
      %4043 = vmatpush1.xpose.msra.mxu0 %v3963
      %4044 = vmatprep.subr.mxu0 0.0
      %4045 = vmatpush1.xpose.msra.mxu0 %v3966
      %4046 = vmatprep.subr.mxu0 0.0
      %4047 = vmatpush1.xpose.msra.mxu0 %v3969
      %4048 = vmatprep.subr.mxu0 0.0
      %4049 = vmatpush1.xpose.msra.mxu0 %v3972
      %4050 = vmatprep.subr.mxu0 0.0
      %4051 = vmatpush1.xpose.msra.mxu0 %v3975
      %4052 = vmatprep.subr.mxu0 0.0
      %4053 = vmatpush1.xpose.msra.mxu0 %v3978
      %4054 = vmatprep.subr.mxu0 0.0
      %4055 = vmatpush1.xpose.msra.mxu0 %v3981
      %4056 = vmatprep.subr.mxu0 0.0
      %4057 = vmatpush1.xpose.msra.mxu0 %v3984
      %4058 = vmatprep.subr.mxu0 0.0
      %4059 = vmatpush1.xpose.msra.mxu0 %v3987
      %4060 = vmatprep.subr.mxu0 0.0
      %4061 = vmatpush1.xpose.msra.mxu0 %v3990
      %4062 = vmatprep.subr.mxu0 0.0
      %4063 = vmatpush1.xpose.msra.mxu0 %v3993
      %4064 = vmatprep.subr.mxu0 0.0
      %4065 = vmatpush1.xpose.msra.mxu0 %v3996
      %4066 = vmatprep.subr.mxu0 0.0
      %4067 = vmatpush1.xpose.msra.mxu0 %v3999
      %4068 = vmatprep.subr.mxu0 0.0
      %4069 = vmatpush1.xpose.msra.mxu0 %v4002
      %4070 = vmatprep.subr.mxu0 0.0
      %4071 = vmatpush1.xpose.msra.mxu0 %v4005
      %4072 = vmatprep.subr.mxu0 0.0
      %4073 = vmatpush1.xpose.msra.mxu0 %v4008
      %4074 = vmatprep.mubr.f32.mxu0 0.0
      %4075 = vmatmul.mubr.f32.gmra.mrb[0].mxu0 %v3903
      %v4076 = vpop.f32.mrb[0].mxu0
      %v4077 = vadd.f32 0.0, %v4076
      %v4078 = vpop.f32.mrb[0].mxu0
      %v4079 = vadd.f32 0.0, %v4078
      %4080 = vmatprep.mubr.f32.mxu0 0.0
      %4081 = vmatmul.mubr.f32.gmra.mrb[0].mxu0 %v3906
      %v4082 = vpop.f32.mrb[0].mxu0
      %v4083 = vadd.f32 0.0, %v4082
      %v4084 = vpop.f32.mrb[0].mxu0
      %v4085 = vadd.f32 0.0, %v4084
      %4086 = vmatprep.mubr.f32.mxu0 0.0
      %4087 = vmatmul.mubr.f32.gmra.mrb[0].mxu0 %v3909
      %v4088 = vpop.f32.mrb[0].mxu0
      %v4089 = vadd.f32 0.0, %v4088
      %v4090 = vpop.f32.mrb[0].mxu0
      %v4091 = vadd.f32 0.0, %v4090
      %4092 = vmatprep.mubr.f32.mxu0 0.0
      %4093 = vmatmul.mubr.f32.gmra.mrb[0].mxu0 %v3912
      %v4094 = vpop.f32.mrb[0].mxu0
      %v4095 = vadd.f32 0.0, %v4094
      %v4096 = vpop.f32.mrb[0].mxu0
      %v4097 = vadd.f32 0.0, %v4096
      %4098 = vdwg.mxu0
      %v4099 = vadd.f32 %v3857, %v4077
      %v4100 = vadd.f32 %v3858, %v4079
      %v4101 = vadd.f32 %v3859, %v4083
      %v4102 = vadd.f32 %v3860, %v4085
      %v4103 = vadd.f32 %v3861, %v4089
      %v4104 = vadd.f32 %v3862, %v4091
      %v4105 = vadd.f32 %v3863, %v4095
      %v4106 = vadd.f32 %v3864, %v4097
      %v4107 = vld [vmem:[%s2881 + $0x2] sm:$0xff]
      %v4108 = vld [vmem:[%s2881 + $0xa] sm:$0xff]
      %v4109 = vld [vmem:[%s2881 + $0x1a] sm:$0xff]
      %v4110 = vld [vmem:[%s2881 + $0x22] sm:$0xff]
      %v4111 = vld [vmem:[%s2881 + $0x32] sm:$0xff]
      %v4112 = vld [vmem:[%s2881 + $0x3a] sm:$0xff]
      %v4113 = vld [vmem:[%s2881 + $0x4a] sm:$0xff]
      %v4114 = vld [vmem:[%s2881 + $0x52] sm:$0xff]
      %v4115 = vld [vmem:[%s2881 + $0x62] sm:$0xff]
      %v4116 = vld [vmem:[%s2881 + $0x6a] sm:$0xff]
      %v4117 = vld [vmem:[%s2881 + $0x7a] sm:$0xff]
      %v4118 = vld [vmem:[%s2881 + $0x82] sm:$0xff]
      %v4119 = vld [vmem:[%s2881 + $0x92] sm:$0xff]
      %v4120 = vld [vmem:[%s2881 + $0x9a] sm:$0xff]
      %v4121 = vld [vmem:[%s2881 + $0xaa] sm:$0xff]
      %v4122 = vld [vmem:[%s2881 + $0xb2] sm:$0xff]
      %v4123 = vld [vmem:[%s2881 + $0xc2] sm:$0xff]
      %v4124 = vld [vmem:[%s2881 + $0xca] sm:$0xff]
      %v4125 = vld [vmem:[%s2881 + $0xda] sm:$0xff]
      %v4126 = vld [vmem:[%s2881 + $0xe2] sm:$0xff]
      %v4127 = vld [vmem:[%s2881 + $0xf2] sm:$0xff]
      %v4128 = vld [vmem:[%s2881 + $0xfa] sm:$0xff]
      %v4129 = vld [vmem:[%s2881 + $0x10a] sm:$0xff]
      %v4130 = vld [vmem:[%s2881 + $0x112] sm:$0xff]
      %v4131 = vld [vmem:[%s2881 + $0x122] sm:$0xff]
      %v4132 = vld [vmem:[%s2881 + $0x12a] sm:$0xff]
      %v4133 = vld [vmem:[%s2881 + $0x13a] sm:$0xff]
      %v4134 = vld [vmem:[%s2881 + $0x142] sm:$0xff]
      %v4135 = vld [vmem:[%s2881 + $0x152] sm:$0xff]
      %v4136 = vld [vmem:[%s2881 + $0x15a] sm:$0xff]
      %v4137 = vld [vmem:[%s2881 + $0x16a] sm:$0xff]
      %v4138 = vld [vmem:[%s2881 + $0x172] sm:$0xff]
      %s4139 = scalar_lea.vmem %s3, 160
      %v4140 = vld [vmem:[%s4139] sm:$0xff]
      %v4141 = vld [vmem:[%s4139 + $0x8] sm:$0xff]
      %v4142 = vld [vmem:[%s4139 + $0x10] sm:$0xff]
      %v4143 = vld [vmem:[%s4139 + $0x18] sm:$0xff]
      %v4145 = vsel %vm2825, %v4140, 0
      %v4148 = vsel %vm2825, %v4141, 0
      %v4151 = vsel %vm2825, %v4142, 0
      %v4154 = vsel %vm2825, %v4143, 0
      %v4157 = vsel %vm2825, %v4107, 0
      %v4160 = vsel %vm2825, %v4108, 0
      %v4163 = vsel %vm2825, %v4109, 0
      %v4166 = vsel %vm2825, %v4110, 0
      %v4169 = vsel %vm2825, %v4111, 0
      %v4172 = vsel %vm2825, %v4112, 0
      %v4175 = vsel %vm2825, %v4113, 0
      %v4178 = vsel %vm2825, %v4114, 0
      %v4181 = vsel %vm2825, %v4115, 0
      %v4184 = vsel %vm2825, %v4116, 0
      %v4187 = vsel %vm2825, %v4117, 0
      %v4190 = vsel %vm2825, %v4118, 0
      %v4193 = vsel %vm2825, %v4119, 0
      %v4196 = vsel %vm2825, %v4120, 0
      %v4199 = vsel %vm2825, %v4121, 0
      %v4202 = vsel %vm2825, %v4122, 0
      %v4205 = vsel %vm2825, %v4123, 0
      %v4208 = vsel %vm2825, %v4124, 0
      %v4211 = vsel %vm2825, %v4125, 0
      %v4214 = vsel %vm2825, %v4126, 0
      %v4217 = vsel %vm2825, %v4127, 0
      %v4220 = vsel %vm2825, %v4128, 0
      %v4223 = vsel %vm2825, %v4129, 0
      %v4226 = vsel %vm2825, %v4130, 0
      %v4229 = vsel %vm2825, %v4131, 0
      %v4232 = vsel %vm2825, %v4132, 0
      %v4235 = vsel %vm2825, %v4133, 0
      %v4238 = vsel %vm2825, %v4134, 0
      %v4241 = vsel %vm2825, %v4135, 0
      %v4244 = vsel %vm2825, %v4136, 0
      %v4247 = vsel %vm2825, %v4137, 0
      %v4250 = vsel %vm2825, %v4138, 0
      %4252 = vmatprep.subr.mxu0 0.0
      %4253 = vmatpush1.xpose.msra.mxu0 %v4157
      %4254 = vmatprep.subr.mxu0 0.0
      %4255 = vmatpush1.xpose.msra.mxu0 %v4160
      %4256 = vmatprep.subr.mxu0 0.0
      %4257 = vmatpush1.xpose.msra.mxu0 %v4163
      %4258 = vmatprep.subr.mxu0 0.0
      %4259 = vmatpush1.xpose.msra.mxu0 %v4166
      %4260 = vmatprep.subr.mxu0 0.0
      %4261 = vmatpush1.xpose.msra.mxu0 %v4169
      %4262 = vmatprep.subr.mxu0 0.0
      %4263 = vmatpush1.xpose.msra.mxu0 %v4172
      %4264 = vmatprep.subr.mxu0 0.0
      %4265 = vmatpush1.xpose.msra.mxu0 %v4175
      %4266 = vmatprep.subr.mxu0 0.0
      %4267 = vmatpush1.xpose.msra.mxu0 %v4178
      %4268 = vmatprep.subr.mxu0 0.0
      %4269 = vmatpush1.xpose.msra.mxu0 %v4181
      %4270 = vmatprep.subr.mxu0 0.0
      %4271 = vmatpush1.xpose.msra.mxu0 %v4184
      %4272 = vmatprep.subr.mxu0 0.0
      %4273 = vmatpush1.xpose.msra.mxu0 %v4187
      %4274 = vmatprep.subr.mxu0 0.0
      %4275 = vmatpush1.xpose.msra.mxu0 %v4190
      %4276 = vmatprep.subr.mxu0 0.0
      %4277 = vmatpush1.xpose.msra.mxu0 %v4193
      %4278 = vmatprep.subr.mxu0 0.0
      %4279 = vmatpush1.xpose.msra.mxu0 %v4196
      %4280 = vmatprep.subr.mxu0 0.0
      %4281 = vmatpush1.xpose.msra.mxu0 %v4199
      %4282 = vmatprep.subr.mxu0 0.0
      %4283 = vmatpush1.xpose.msra.mxu0 %v4202
      %4284 = vmatprep.subr.mxu0 0.0
      %4285 = vmatpush1.xpose.msra.mxu0 %v4205
      %4286 = vmatprep.subr.mxu0 0.0
      %4287 = vmatpush1.xpose.msra.mxu0 %v4208
      %4288 = vmatprep.subr.mxu0 0.0
      %4289 = vmatpush1.xpose.msra.mxu0 %v4211
      %4290 = vmatprep.subr.mxu0 0.0
      %4291 = vmatpush1.xpose.msra.mxu0 %v4214
      %4292 = vmatprep.subr.mxu0 0.0
      %4293 = vmatpush1.xpose.msra.mxu0 %v4217
      %4294 = vmatprep.subr.mxu0 0.0
      %4295 = vmatpush1.xpose.msra.mxu0 %v4220
      %4296 = vmatprep.subr.mxu0 0.0
      %4297 = vmatpush1.xpose.msra.mxu0 %v4223
      %4298 = vmatprep.subr.mxu0 0.0
      %4299 = vmatpush1.xpose.msra.mxu0 %v4226
      %4300 = vmatprep.subr.mxu0 0.0
      %4301 = vmatpush1.xpose.msra.mxu0 %v4229
      %4302 = vmatprep.subr.mxu0 0.0
      %4303 = vmatpush1.xpose.msra.mxu0 %v4232
      %4304 = vmatprep.subr.mxu0 0.0
      %4305 = vmatpush1.xpose.msra.mxu0 %v4235
      %4306 = vmatprep.subr.mxu0 0.0
      %4307 = vmatpush1.xpose.msra.mxu0 %v4238
      %4308 = vmatprep.subr.mxu0 0.0
      %4309 = vmatpush1.xpose.msra.mxu0 %v4241
      %4310 = vmatprep.subr.mxu0 0.0
      %4311 = vmatpush1.xpose.msra.mxu0 %v4244
      %4312 = vmatprep.subr.mxu0 0.0
      %4313 = vmatpush1.xpose.msra.mxu0 %v4247
      %4314 = vmatprep.subr.mxu0 0.0
      %4315 = vmatpush1.xpose.msra.mxu0 %v4250
      %4316 = vmatprep.mubr.f32.mxu0 0.0
      %4317 = vmatmul.mubr.f32.gmra.mrb[0].mxu0 %v4145
      %v4318 = vpop.f32.mrb[0].mxu0
      %v4319 = vadd.f32 0.0, %v4318
      %v4320 = vpop.f32.mrb[0].mxu0
      %v4321 = vadd.f32 0.0, %v4320
      %4322 = vmatprep.mubr.f32.mxu0 0.0
      %4323 = vmatmul.mubr.f32.gmra.mrb[0].mxu0 %v4148
      %v4324 = vpop.f32.mrb[0].mxu0
      %v4325 = vadd.f32 0.0, %v4324
      %v4326 = vpop.f32.mrb[0].mxu0
      %v4327 = vadd.f32 0.0, %v4326
      %4328 = vmatprep.mubr.f32.mxu0 0.0
      %4329 = vmatmul.mubr.f32.gmra.mrb[0].mxu0 %v4151
      %v4330 = vpop.f32.mrb[0].mxu0
      %v4331 = vadd.f32 0.0, %v4330
      %v4332 = vpop.f32.mrb[0].mxu0
      %v4333 = vadd.f32 0.0, %v4332
      %4334 = vmatprep.mubr.f32.mxu0 0.0
      %4335 = vmatmul.mubr.f32.gmra.mrb[0].mxu0 %v4154
      %v4336 = vpop.f32.mrb[0].mxu0
      %v4337 = vadd.f32 0.0, %v4336
      %v4338 = vpop.f32.mrb[0].mxu0
      %v4339 = vadd.f32 0.0, %v4338
      %4340 = vdwg.mxu0
      %v4341 = vadd.f32 %v4099, %v4319
      %v4342 = vadd.f32 %v4100, %v4321
      %v4343 = vadd.f32 %v4101, %v4325
      %v4344 = vadd.f32 %v4102, %v4327
      %v4345 = vadd.f32 %v4103, %v4331
      %v4346 = vadd.f32 %v4104, %v4333
      %v4347 = vadd.f32 %v4105, %v4337
      %v4348 = vadd.f32 %v4106, %v4339
      %s4349 = scalar_lea.vmem [#allocation2], 48
      %v4350 = vld [vmem:[%s4349] sm:$0xff]
      %v4351 = vld [vmem:[%s4349 + $0x8] sm:$0xff]
      %v4352 = vld [vmem:[%s4349 + $0x18] sm:$0xff]
      %v4353 = vld [vmem:[%s4349 + $0x20] sm:$0xff]
      %v4354 = vld [vmem:[%s4349 + $0x30] sm:$0xff]
      %v4355 = vld [vmem:[%s4349 + $0x38] sm:$0xff]
      %v4356 = vld [vmem:[%s4349 + $0x48] sm:$0xff]
      %v4357 = vld [vmem:[%s4349 + $0x50] sm:$0xff]
      %v4358 = vld [vmem:[%s4349 + $0x60] sm:$0xff]
      %v4359 = vld [vmem:[%s4349 + $0x68] sm:$0xff]
      %v4360 = vld [vmem:[%s4349 + $0x78] sm:$0xff]
      %v4361 = vld [vmem:[%s4349 + $0x80] sm:$0xff]
      %v4362 = vld [vmem:[%s4349 + $0x90] sm:$0xff]
      %v4363 = vld [vmem:[%s4349 + $0x98] sm:$0xff]
      %v4364 = vld [vmem:[%s4349 + $0xa8] sm:$0xff]
      %v4365 = vld [vmem:[%s4349 + $0xb0] sm:$0xff]
      %v4366 = vld [vmem:[%s4349 + $0xc0] sm:$0xff]
      %v4367 = vld [vmem:[%s4349 + $0xc8] sm:$0xff]
      %v4368 = vld [vmem:[%s4349 + $0xd8] sm:$0xff]
      %v4369 = vld [vmem:[%s4349 + $0xe0] sm:$0xff]
      %v4370 = vld [vmem:[%s4349 + $0xf0] sm:$0xff]
      %v4371 = vld [vmem:[%s4349 + $0xf8] sm:$0xff]
      %v4372 = vld [vmem:[%s4349 + $0x108] sm:$0xff]
      %v4373 = vld [vmem:[%s4349 + $0x110] sm:$0xff]
      %v4374 = vld [vmem:[%s4349 + $0x120] sm:$0xff]
      %v4375 = vld [vmem:[%s4349 + $0x128] sm:$0xff]
      %v4376 = vld [vmem:[%s4349 + $0x138] sm:$0xff]
      %v4377 = vld [vmem:[%s4349 + $0x140] sm:$0xff]
      %v4378 = vld [vmem:[%s4349 + $0x150] sm:$0xff]
      %v4379 = vld [vmem:[%s4349 + $0x158] sm:$0xff]
      %v4380 = vld [vmem:[%s4349 + $0x168] sm:$0xff]
      %v4381 = vld [vmem:[%s4349 + $0x170] sm:$0xff]
      %s4382 = scalar_lea.vmem %s3, 192
      %v4383 = vld [vmem:[%s4382] sm:$0xff]
      %v4384 = vld [vmem:[%s4382 + $0x8] sm:$0xff]
      %v4385 = vld [vmem:[%s4382 + $0x10] sm:$0xff]
      %v4386 = vld [vmem:[%s4382 + $0x18] sm:$0xff]
      %v4388 = vsel %vm2825, %v4383, 0
      %v4391 = vsel %vm2825, %v4384, 0
      %v4394 = vsel %vm2825, %v4385, 0
      %v4397 = vsel %vm2825, %v4386, 0
      %v4400 = vsel %vm2825, %v4350, 0
      %v4403 = vsel %vm2825, %v4351, 0
      %v4406 = vsel %vm2825, %v4352, 0
      %v4409 = vsel %vm2825, %v4353, 0
      %v4412 = vsel %vm2825, %v4354, 0
      %v4415 = vsel %vm2825, %v4355, 0
      %v4418 = vsel %vm2825, %v4356, 0
      %v4421 = vsel %vm2825, %v4357, 0
      %v4424 = vsel %vm2825, %v4358, 0
      %v4427 = vsel %vm2825, %v4359, 0
      %v4430 = vsel %vm2825, %v4360, 0
      %v4433 = vsel %vm2825, %v4361, 0
      %v4436 = vsel %vm2825, %v4362, 0
      %v4439 = vsel %vm2825, %v4363, 0
      %v4442 = vsel %vm2825, %v4364, 0
      %v4445 = vsel %vm2825, %v4365, 0
      %v4448 = vsel %vm2825, %v4366, 0
      %v4451 = vsel %vm2825, %v4367, 0
      %v4454 = vsel %vm2825, %v4368, 0
      %v4457 = vsel %vm2825, %v4369, 0
      %v4460 = vsel %vm2825, %v4370, 0
      %v4463 = vsel %vm2825, %v4371, 0
      %v4466 = vsel %vm2825, %v4372, 0
      %v4469 = vsel %vm2825, %v4373, 0
      %v4472 = vsel %vm2825, %v4374, 0
      %v4475 = vsel %vm2825, %v4375, 0
      %v4478 = vsel %vm2825, %v4376, 0
      %v4481 = vsel %vm2825, %v4377, 0
      %v4484 = vsel %vm2825, %v4378, 0
      %v4487 = vsel %vm2825, %v4379, 0
      %v4490 = vsel %vm2825, %v4380, 0
      %v4493 = vsel %vm2825, %v4381, 0
      %4495 = vmatprep.subr.mxu0 0.0
      %4496 = vmatpush1.xpose.msra.mxu0 %v4400
      %4497 = vmatprep.subr.mxu0 0.0
      %4498 = vmatpush1.xpose.msra.mxu0 %v4403
      %4499 = vmatprep.subr.mxu0 0.0
      %4500 = vmatpush1.xpose.msra.mxu0 %v4406
      %4501 = vmatprep.subr.mxu0 0.0
      %4502 = vmatpush1.xpose.msra.mxu0 %v4409
      %4503 = vmatprep.subr.mxu0 0.0
      %4504 = vmatpush1.xpose.msra.mxu0 %v4412
      %4505 = vmatprep.subr.mxu0 0.0
      %4506 = vmatpush1.xpose.msra.mxu0 %v4415
      %4507 = vmatprep.subr.mxu0 0.0
      %4508 = vmatpush1.xpose.msra.mxu0 %v4418
      %4509 = vmatprep.subr.mxu0 0.0
      %4510 = vmatpush1.xpose.msra.mxu0 %v4421
      %4511 = vmatprep.subr.mxu0 0.0
      %4512 = vmatpush1.xpose.msra.mxu0 %v4424
      %4513 = vmatprep.subr.mxu0 0.0
      %4514 = vmatpush1.xpose.msra.mxu0 %v4427
      %4515 = vmatprep.subr.mxu0 0.0
      %4516 = vmatpush1.xpose.msra.mxu0 %v4430
      %4517 = vmatprep.subr.mxu0 0.0
      %4518 = vmatpush1.xpose.msra.mxu0 %v4433
      %4519 = vmatprep.subr.mxu0 0.0
      %4520 = vmatpush1.xpose.msra.mxu0 %v4436
      %4521 = vmatprep.subr.mxu0 0.0
      %4522 = vmatpush1.xpose.msra.mxu0 %v4439
      %4523 = vmatprep.subr.mxu0 0.0
      %4524 = vmatpush1.xpose.msra.mxu0 %v4442
      %4525 = vmatprep.subr.mxu0 0.0
      %4526 = vmatpush1.xpose.msra.mxu0 %v4445
      %4527 = vmatprep.subr.mxu0 0.0
      %4528 = vmatpush1.xpose.msra.mxu0 %v4448
      %4529 = vmatprep.subr.mxu0 0.0
      %4530 = vmatpush1.xpose.msra.mxu0 %v4451
      %4531 = vmatprep.subr.mxu0 0.0
      %4532 = vmatpush1.xpose.msra.mxu0 %v4454
      %4533 = vmatprep.subr.mxu0 0.0
      %4534 = vmatpush1.xpose.msra.mxu0 %v4457
      %4535 = vmatprep.subr.mxu0 0.0
      %4536 = vmatpush1.xpose.msra.mxu0 %v4460
      %4537 = vmatprep.subr.mxu0 0.0
      %4538 = vmatpush1.xpose.msra.mxu0 %v4463
      %4539 = vmatprep.subr.mxu0 0.0
      %4540 = vmatpush1.xpose.msra.mxu0 %v4466
      %4541 = vmatprep.subr.mxu0 0.0
      %4542 = vmatpush1.xpose.msra.mxu0 %v4469
      %4543 = vmatprep.subr.mxu0 0.0
      %4544 = vmatpush1.xpose.msra.mxu0 %v4472
      %4545 = vmatprep.subr.mxu0 0.0
      %4546 = vmatpush1.xpose.msra.mxu0 %v4475
      %4547 = vmatprep.subr.mxu0 0.0
      %4548 = vmatpush1.xpose.msra.mxu0 %v4478
      %4549 = vmatprep.subr.mxu0 0.0
      %4550 = vmatpush1.xpose.msra.mxu0 %v4481
      %4551 = vmatprep.subr.mxu0 0.0
      %4552 = vmatpush1.xpose.msra.mxu0 %v4484
      %4553 = vmatprep.subr.mxu0 0.0
      %4554 = vmatpush1.xpose.msra.mxu0 %v4487
      %4555 = vmatprep.subr.mxu0 0.0
      %4556 = vmatpush1.xpose.msra.mxu0 %v4490
      %4557 = vmatprep.subr.mxu0 0.0
      %4558 = vmatpush1.xpose.msra.mxu0 %v4493
      %4559 = vmatprep.mubr.f32.mxu0 0.0
      %4560 = vmatmul.mubr.f32.gmra.mrb[0].mxu0 %v4388
      %v4561 = vpop.f32.mrb[0].mxu0
      %v4562 = vadd.f32 0.0, %v4561
      %v4563 = vpop.f32.mrb[0].mxu0
      %v4564 = vadd.f32 0.0, %v4563
      %4565 = vmatprep.mubr.f32.mxu0 0.0
      %4566 = vmatmul.mubr.f32.gmra.mrb[0].mxu0 %v4391
      %v4567 = vpop.f32.mrb[0].mxu0
      %v4568 = vadd.f32 0.0, %v4567
      %v4569 = vpop.f32.mrb[0].mxu0
      %v4570 = vadd.f32 0.0, %v4569
      %4571 = vmatprep.mubr.f32.mxu0 0.0
      %4572 = vmatmul.mubr.f32.gmra.mrb[0].mxu0 %v4394
      %v4573 = vpop.f32.mrb[0].mxu0
      %v4574 = vadd.f32 0.0, %v4573
      %v4575 = vpop.f32.mrb[0].mxu0
      %v4576 = vadd.f32 0.0, %v4575
      %4577 = vmatprep.mubr.f32.mxu0 0.0
      %4578 = vmatmul.mubr.f32.gmra.mrb[0].mxu0 %v4397
      %v4579 = vpop.f32.mrb[0].mxu0
      %v4580 = vadd.f32 0.0, %v4579
      %v4581 = vpop.f32.mrb[0].mxu0
      %v4582 = vadd.f32 0.0, %v4581
      %4583 = vdwg.mxu0
      %v4584 = vadd.f32 %v4341, %v4562
      %v4585 = vadd.f32 %v4342, %v4564
      %v4586 = vadd.f32 %v4343, %v4568
      %v4587 = vadd.f32 %v4344, %v4570
      %v4588 = vadd.f32 %v4345, %v4574
      %v4589 = vadd.f32 %v4346, %v4576
      %v4590 = vadd.f32 %v4347, %v4580
      %v4591 = vadd.f32 %v4348, %v4582
      %v4592 = vld [vmem:[%s4349 + $0x1] sm:$0xff]
      %v4593 = vld [vmem:[%s4349 + $0x9] sm:$0xff]
      %v4594 = vld [vmem:[%s4349 + $0x19] sm:$0xff]
      %v4595 = vld [vmem:[%s4349 + $0x21] sm:$0xff]
      %v4596 = vld [vmem:[%s4349 + $0x31] sm:$0xff]
      %v4597 = vld [vmem:[%s4349 + $0x39] sm:$0xff]
      %v4598 = vld [vmem:[%s4349 + $0x49] sm:$0xff]
      %v4599 = vld [vmem:[%s4349 + $0x51] sm:$0xff]
      %v4600 = vld [vmem:[%s4349 + $0x61] sm:$0xff]
      %v4601 = vld [vmem:[%s4349 + $0x69] sm:$0xff]
      %v4602 = vld [vmem:[%s4349 + $0x79] sm:$0xff]
      %v4603 = vld [vmem:[%s4349 + $0x81] sm:$0xff]
      %v4604 = vld [vmem:[%s4349 + $0x91] sm:$0xff]
      %v4605 = vld [vmem:[%s4349 + $0x99] sm:$0xff]
      %v4606 = vld [vmem:[%s4349 + $0xa9] sm:$0xff]
      %v4607 = vld [vmem:[%s4349 + $0xb1] sm:$0xff]
      %v4608 = vld [vmem:[%s4349 + $0xc1] sm:$0xff]
      %v4609 = vld [vmem:[%s4349 + $0xc9] sm:$0xff]
      %v4610 = vld [vmem:[%s4349 + $0xd9] sm:$0xff]
      %v4611 = vld [vmem:[%s4349 + $0xe1] sm:$0xff]
      %v4612 = vld [vmem:[%s4349 + $0xf1] sm:$0xff]
      %v4613 = vld [vmem:[%s4349 + $0xf9] sm:$0xff]
      %v4614 = vld [vmem:[%s4349 + $0x109] sm:$0xff]
      %v4615 = vld [vmem:[%s4349 + $0x111] sm:$0xff]
      %v4616 = vld [vmem:[%s4349 + $0x121] sm:$0xff]
      %v4617 = vld [vmem:[%s4349 + $0x129] sm:$0xff]
      %v4618 = vld [vmem:[%s4349 + $0x139] sm:$0xff]
      %v4619 = vld [vmem:[%s4349 + $0x141] sm:$0xff]
      %v4620 = vld [vmem:[%s4349 + $0x151] sm:$0xff]
      %v4621 = vld [vmem:[%s4349 + $0x159] sm:$0xff]
      %v4622 = vld [vmem:[%s4349 + $0x169] sm:$0xff]
      %v4623 = vld [vmem:[%s4349 + $0x171] sm:$0xff]
      %s4624 = scalar_lea.vmem %s3, 224
      %v4625 = vld [vmem:[%s4624] sm:$0xff]
      %v4626 = vld [vmem:[%s4624 + $0x8] sm:$0xff]
      %v4627 = vld [vmem:[%s4624 + $0x10] sm:$0xff]
      %v4628 = vld [vmem:[%s4624 + $0x18] sm:$0xff]
      %v4630 = vsel %vm2825, %v4625, 0
      %v4633 = vsel %vm2825, %v4626, 0
      %v4636 = vsel %vm2825, %v4627, 0
      %v4639 = vsel %vm2825, %v4628, 0
      %v4642 = vsel %vm2825, %v4592, 0
      %v4645 = vsel %vm2825, %v4593, 0
      %v4648 = vsel %vm2825, %v4594, 0
      %v4651 = vsel %vm2825, %v4595, 0
      %v4654 = vsel %vm2825, %v4596, 0
      %v4657 = vsel %vm2825, %v4597, 0
      %v4660 = vsel %vm2825, %v4598, 0
      %v4663 = vsel %vm2825, %v4599, 0
      %v4666 = vsel %vm2825, %v4600, 0
      %v4669 = vsel %vm2825, %v4601, 0
      %v4672 = vsel %vm2825, %v4602, 0
      %v4675 = vsel %vm2825, %v4603, 0
      %v4678 = vsel %vm2825, %v4604, 0
      %v4681 = vsel %vm2825, %v4605, 0
      %v4684 = vsel %vm2825, %v4606, 0
      %v4687 = vsel %vm2825, %v4607, 0
      %v4690 = vsel %vm2825, %v4608, 0
      %v4693 = vsel %vm2825, %v4609, 0
      %v4696 = vsel %vm2825, %v4610, 0
      %v4699 = vsel %vm2825, %v4611, 0
      %v4702 = vsel %vm2825, %v4612, 0
      %v4705 = vsel %vm2825, %v4613, 0
      %v4708 = vsel %vm2825, %v4614, 0
      %v4711 = vsel %vm2825, %v4615, 0
      %v4714 = vsel %vm2825, %v4616, 0
      %v4717 = vsel %vm2825, %v4617, 0
      %v4720 = vsel %vm2825, %v4618, 0
      %v4723 = vsel %vm2825, %v4619, 0
      %v4726 = vsel %vm2825, %v4620, 0
      %v4729 = vsel %vm2825, %v4621, 0
      %v4732 = vsel %vm2825, %v4622, 0
      %v4735 = vsel %vm2825, %v4623, 0
      %4737 = vmatprep.subr.mxu0 0.0
      %4738 = vmatpush1.xpose.msra.mxu0 %v4642
      %4739 = vmatprep.subr.mxu0 0.0
      %4740 = vmatpush1.xpose.msra.mxu0 %v4645
      %4741 = vmatprep.subr.mxu0 0.0
      %4742 = vmatpush1.xpose.msra.mxu0 %v4648
      %4743 = vmatprep.subr.mxu0 0.0
      %4744 = vmatpush1.xpose.msra.mxu0 %v4651
      %4745 = vmatprep.subr.mxu0 0.0
      %4746 = vmatpush1.xpose.msra.mxu0 %v4654
      %4747 = vmatprep.subr.mxu0 0.0
      %4748 = vmatpush1.xpose.msra.mxu0 %v4657
      %4749 = vmatprep.subr.mxu0 0.0
      %4750 = vmatpush1.xpose.msra.mxu0 %v4660
      %4751 = vmatprep.subr.mxu0 0.0
      %4752 = vmatpush1.xpose.msra.mxu0 %v4663
      %4753 = vmatprep.subr.mxu0 0.0
      %4754 = vmatpush1.xpose.msra.mxu0 %v4666
      %4755 = vmatprep.subr.mxu0 0.0
      %4756 = vmatpush1.xpose.msra.mxu0 %v4669
      %4757 = vmatprep.subr.mxu0 0.0
      %4758 = vmatpush1.xpose.msra.mxu0 %v4672
      %4759 = vmatprep.subr.mxu0 0.0
      %4760 = vmatpush1.xpose.msra.mxu0 %v4675
      %4761 = vmatprep.subr.mxu0 0.0
      %4762 = vmatpush1.xpose.msra.mxu0 %v4678
      %4763 = vmatprep.subr.mxu0 0.0
      %4764 = vmatpush1.xpose.msra.mxu0 %v4681
      %4765 = vmatprep.subr.mxu0 0.0
      %4766 = vmatpush1.xpose.msra.mxu0 %v4684
      %4767 = vmatprep.subr.mxu0 0.0
      %4768 = vmatpush1.xpose.msra.mxu0 %v4687
      %4769 = vmatprep.subr.mxu0 0.0
      %4770 = vmatpush1.xpose.msra.mxu0 %v4690
      %4771 = vmatprep.subr.mxu0 0.0
      %4772 = vmatpush1.xpose.msra.mxu0 %v4693
      %4773 = vmatprep.subr.mxu0 0.0
      %4774 = vmatpush1.xpose.msra.mxu0 %v4696
      %4775 = vmatprep.subr.mxu0 0.0
      %4776 = vmatpush1.xpose.msra.mxu0 %v4699
      %4777 = vmatprep.subr.mxu0 0.0
      %4778 = vmatpush1.xpose.msra.mxu0 %v4702
      %4779 = vmatprep.subr.mxu0 0.0
      %4780 = vmatpush1.xpose.msra.mxu0 %v4705
      %4781 = vmatprep.subr.mxu0 0.0
      %4782 = vmatpush1.xpose.msra.mxu0 %v4708
      %4783 = vmatprep.subr.mxu0 0.0
      %4784 = vmatpush1.xpose.msra.mxu0 %v4711
      %4785 = vmatprep.subr.mxu0 0.0
      %4786 = vmatpush1.xpose.msra.mxu0 %v4714
      %4787 = vmatprep.subr.mxu0 0.0
      %4788 = vmatpush1.xpose.msra.mxu0 %v4717
      %4789 = vmatprep.subr.mxu0 0.0
      %4790 = vmatpush1.xpose.msra.mxu0 %v4720
      %4791 = vmatprep.subr.mxu0 0.0
      %4792 = vmatpush1.xpose.msra.mxu0 %v4723
      %4793 = vmatprep.subr.mxu0 0.0
      %4794 = vmatpush1.xpose.msra.mxu0 %v4726
      %4795 = vmatprep.subr.mxu0 0.0
      %4796 = vmatpush1.xpose.msra.mxu0 %v4729
      %4797 = vmatprep.subr.mxu0 0.0
      %4798 = vmatpush1.xpose.msra.mxu0 %v4732
      %4799 = vmatprep.subr.mxu0 0.0
      %4800 = vmatpush1.xpose.msra.mxu0 %v4735
      %4801 = vmatprep.mubr.f32.mxu0 0.0
      %4802 = vmatmul.mubr.f32.gmra.mrb[0].mxu0 %v4630
      %v4803 = vpop.f32.mrb[0].mxu0
      %v4804 = vadd.f32 0.0, %v4803
      %v4805 = vpop.f32.mrb[0].mxu0
      %v4806 = vadd.f32 0.0, %v4805
      %4807 = vmatprep.mubr.f32.mxu0 0.0
      %4808 = vmatmul.mubr.f32.gmra.mrb[0].mxu0 %v4633
      %v4809 = vpop.f32.mrb[0].mxu0
      %v4810 = vadd.f32 0.0, %v4809
      %v4811 = vpop.f32.mrb[0].mxu0
      %v4812 = vadd.f32 0.0, %v4811
      %4813 = vmatprep.mubr.f32.mxu0 0.0
      %4814 = vmatmul.mubr.f32.gmra.mrb[0].mxu0 %v4636
      %v4815 = vpop.f32.mrb[0].mxu0
      %v4816 = vadd.f32 0.0, %v4815
      %v4817 = vpop.f32.mrb[0].mxu0
      %v4818 = vadd.f32 0.0, %v4817
      %4819 = vmatprep.mubr.f32.mxu0 0.0
      %4820 = vmatmul.mubr.f32.gmra.mrb[0].mxu0 %v4639
      %v4821 = vpop.f32.mrb[0].mxu0
      %v4822 = vadd.f32 0.0, %v4821
      %v4823 = vpop.f32.mrb[0].mxu0
      %v4824 = vadd.f32 0.0, %v4823
      %4825 = vdwg.mxu0
      %v4826 = vadd.f32 %v4584, %v4804
      %v4827 = vadd.f32 %v4585, %v4806
      %v4828 = vadd.f32 %v4586, %v4810
      %v4829 = vadd.f32 %v4587, %v4812
      %v4830 = vadd.f32 %v4588, %v4816
      %v4831 = vadd.f32 %v4589, %v4818
      %v4832 = vadd.f32 %v4590, %v4822
      %v4833 = vadd.f32 %v4591, %v4824
      %v4834 = vld [vmem:[%s4349 + $0x2] sm:$0xff]
      %v4835 = vld [vmem:[%s4349 + $0xa] sm:$0xff]
      %v4836 = vld [vmem:[%s4349 + $0x1a] sm:$0xff]
      %v4837 = vld [vmem:[%s4349 + $0x22] sm:$0xff]
      %v4838 = vld [vmem:[%s4349 + $0x32] sm:$0xff]
      %v4839 = vld [vmem:[%s4349 + $0x3a] sm:$0xff]
      %v4840 = vld [vmem:[%s4349 + $0x4a] sm:$0xff]
      %v4841 = vld [vmem:[%s4349 + $0x52] sm:$0xff]
      %v4842 = vld [vmem:[%s4349 + $0x62] sm:$0xff]
      %v4843 = vld [vmem:[%s4349 + $0x6a] sm:$0xff]
      %v4844 = vld [vmem:[%s4349 + $0x7a] sm:$0xff]
      %v4845 = vld [vmem:[%s4349 + $0x82] sm:$0xff]
      %v4846 = vld [vmem:[%s4349 + $0x92] sm:$0xff]
      %v4847 = vld [vmem:[%s4349 + $0x9a] sm:$0xff]
      %v4848 = vld [vmem:[%s4349 + $0xaa] sm:$0xff]
      %v4849 = vld [vmem:[%s4349 + $0xb2] sm:$0xff]
      %v4850 = vld [vmem:[%s4349 + $0xc2] sm:$0xff]
      %v4851 = vld [vmem:[%s4349 + $0xca] sm:$0xff]
      %v4852 = vld [vmem:[%s4349 + $0xda] sm:$0xff]
      %v4853 = vld [vmem:[%s4349 + $0xe2] sm:$0xff]
      %v4854 = vld [vmem:[%s4349 + $0xf2] sm:$0xff]
      %v4855 = vld [vmem:[%s4349 + $0xfa] sm:$0xff]
      %v4856 = vld [vmem:[%s4349 + $0x10a] sm:$0xff]
      %v4857 = vld [vmem:[%s4349 + $0x112] sm:$0xff]
      %v4858 = vld [vmem:[%s4349 + $0x122] sm:$0xff]
      %v4859 = vld [vmem:[%s4349 + $0x12a] sm:$0xff]
      %v4860 = vld [vmem:[%s4349 + $0x13a] sm:$0xff]
      %v4861 = vld [vmem:[%s4349 + $0x142] sm:$0xff]
      %v4862 = vld [vmem:[%s4349 + $0x152] sm:$0xff]
      %v4863 = vld [vmem:[%s4349 + $0x15a] sm:$0xff]
      %v4864 = vld [vmem:[%s4349 + $0x16a] sm:$0xff]
      %v4865 = vld [vmem:[%s4349 + $0x172] sm:$0xff]
      %s4866 = scalar_lea.vmem %s3, 256
      %v4867 = vld [vmem:[%s4866] sm:$0xff]
      %v4868 = vld [vmem:[%s4866 + $0x8] sm:$0xff]
      %v4869 = vld [vmem:[%s4866 + $0x10] sm:$0xff]
      %v4870 = vld [vmem:[%s4866 + $0x18] sm:$0xff]
      %v4872 = vsel %vm2825, %v4867, 0
      %v4875 = vsel %vm2825, %v4868, 0
      %v4878 = vsel %vm2825, %v4869, 0
      %v4881 = vsel %vm2825, %v4870, 0
      %v4884 = vsel %vm2825, %v4834, 0
      %v4887 = vsel %vm2825, %v4835, 0
      %v4890 = vsel %vm2825, %v4836, 0
      %v4893 = vsel %vm2825, %v4837, 0
      %v4896 = vsel %vm2825, %v4838, 0
      %v4899 = vsel %vm2825, %v4839, 0
      %v4902 = vsel %vm2825, %v4840, 0
      %v4905 = vsel %vm2825, %v4841, 0
      %v4908 = vsel %vm2825, %v4842, 0
      %v4911 = vsel %vm2825, %v4843, 0
      %v4914 = vsel %vm2825, %v4844, 0
      %v4917 = vsel %vm2825, %v4845, 0
      %v4920 = vsel %vm2825, %v4846, 0
      %v4923 = vsel %vm2825, %v4847, 0
      %v4926 = vsel %vm2825, %v4848, 0
      %v4929 = vsel %vm2825, %v4849, 0
      %v4932 = vsel %vm2825, %v4850, 0
      %v4935 = vsel %vm2825, %v4851, 0
      %v4938 = vsel %vm2825, %v4852, 0
      %v4941 = vsel %vm2825, %v4853, 0
      %v4944 = vsel %vm2825, %v4854, 0
      %v4947 = vsel %vm2825, %v4855, 0
      %v4950 = vsel %vm2825, %v4856, 0
      %v4953 = vsel %vm2825, %v4857, 0
      %v4956 = vsel %vm2825, %v4858, 0
      %v4959 = vsel %vm2825, %v4859, 0
      %v4962 = vsel %vm2825, %v4860, 0
      %v4965 = vsel %vm2825, %v4861, 0
      %v4968 = vsel %vm2825, %v4862, 0
      %v4971 = vsel %vm2825, %v4863, 0
      %v4974 = vsel %vm2825, %v4864, 0
      %v4977 = vsel %vm2825, %v4865, 0
      %4979 = vmatprep.subr.mxu0 0.0
      %4980 = vmatpush1.xpose.msra.mxu0 %v4884
      %4981 = vmatprep.subr.mxu0 0.0
      %4982 = vmatpush1.xpose.msra.mxu0 %v4887
      %4983 = vmatprep.subr.mxu0 0.0
      %4984 = vmatpush1.xpose.msra.mxu0 %v4890
      %4985 = vmatprep.subr.mxu0 0.0
      %4986 = vmatpush1.xpose.msra.mxu0 %v4893
      %4987 = vmatprep.subr.mxu0 0.0
      %4988 = vmatpush1.xpose.msra.mxu0 %v4896
      %4989 = vmatprep.subr.mxu0 0.0
      %4990 = vmatpush1.xpose.msra.mxu0 %v4899
      %4991 = vmatprep.subr.mxu0 0.0
      %4992 = vmatpush1.xpose.msra.mxu0 %v4902
      %4993 = vmatprep.subr.mxu0 0.0
      %4994 = vmatpush1.xpose.msra.mxu0 %v4905
      %4995 = vmatprep.subr.mxu0 0.0
      %4996 = vmatpush1.xpose.msra.mxu0 %v4908
      %4997 = vmatprep.subr.mxu0 0.0
      %4998 = vmatpush1.xpose.msra.mxu0 %v4911
      %4999 = vmatprep.subr.mxu0 0.0
      %5000 = vmatpush1.xpose.msra.mxu0 %v4914
      %5001 = vmatprep.subr.mxu0 0.0
      %5002 = vmatpush1.xpose.msra.mxu0 %v4917
      %5003 = vmatprep.subr.mxu0 0.0
      %5004 = vmatpush1.xpose.msra.mxu0 %v4920
      %5005 = vmatprep.subr.mxu0 0.0
      %5006 = vmatpush1.xpose.msra.mxu0 %v4923
      %5007 = vmatprep.subr.mxu0 0.0
      %5008 = vmatpush1.xpose.msra.mxu0 %v4926
      %5009 = vmatprep.subr.mxu0 0.0
      %5010 = vmatpush1.xpose.msra.mxu0 %v4929
      %5011 = vmatprep.subr.mxu0 0.0
      %5012 = vmatpush1.xpose.msra.mxu0 %v4932
      %5013 = vmatprep.subr.mxu0 0.0
      %5014 = vmatpush1.xpose.msra.mxu0 %v4935
      %5015 = vmatprep.subr.mxu0 0.0
      %5016 = vmatpush1.xpose.msra.mxu0 %v4938
      %5017 = vmatprep.subr.mxu0 0.0
      %5018 = vmatpush1.xpose.msra.mxu0 %v4941
      %5019 = vmatprep.subr.mxu0 0.0
      %5020 = vmatpush1.xpose.msra.mxu0 %v4944
      %5021 = vmatprep.subr.mxu0 0.0
      %5022 = vmatpush1.xpose.msra.mxu0 %v4947
      %5023 = vmatprep.subr.mxu0 0.0
      %5024 = vmatpush1.xpose.msra.mxu0 %v4950
      %5025 = vmatprep.subr.mxu0 0.0
      %5026 = vmatpush1.xpose.msra.mxu0 %v4953
      %5027 = vmatprep.subr.mxu0 0.0
      %5028 = vmatpush1.xpose.msra.mxu0 %v4956
      %5029 = vmatprep.subr.mxu0 0.0
      %5030 = vmatpush1.xpose.msra.mxu0 %v4959
      %5031 = vmatprep.subr.mxu0 0.0
      %5032 = vmatpush1.xpose.msra.mxu0 %v4962
      %5033 = vmatprep.subr.mxu0 0.0
      %5034 = vmatpush1.xpose.msra.mxu0 %v4965
      %5035 = vmatprep.subr.mxu0 0.0
      %5036 = vmatpush1.xpose.msra.mxu0 %v4968
      %5037 = vmatprep.subr.mxu0 0.0
      %5038 = vmatpush1.xpose.msra.mxu0 %v4971
      %5039 = vmatprep.subr.mxu0 0.0
      %5040 = vmatpush1.xpose.msra.mxu0 %v4974
      %5041 = vmatprep.subr.mxu0 0.0
      %5042 = vmatpush1.xpose.msra.mxu0 %v4977
      %5043 = vmatprep.mubr.f32.mxu0 0.0
      %5044 = vmatmul.mubr.f32.gmra.mrb[0].mxu0 %v4872
      %v5045 = vpop.f32.mrb[0].mxu0
      %v5046 = vadd.f32 0.0, %v5045
      %v5047 = vpop.f32.mrb[0].mxu0
      %v5048 = vadd.f32 0.0, %v5047
      %5049 = vmatprep.mubr.f32.mxu0 0.0
      %5050 = vmatmul.mubr.f32.gmra.mrb[0].mxu0 %v4875
      %v5051 = vpop.f32.mrb[0].mxu0
      %v5052 = vadd.f32 0.0, %v5051
      %v5053 = vpop.f32.mrb[0].mxu0
      %v5054 = vadd.f32 0.0, %v5053
      %5055 = vmatprep.mubr.f32.mxu0 0.0
      %5056 = vmatmul.mubr.f32.gmra.mrb[0].mxu0 %v4878
      %v5057 = vpop.f32.mrb[0].mxu0
      %v5058 = vadd.f32 0.0, %v5057
      %v5059 = vpop.f32.mrb[0].mxu0
      %v5060 = vadd.f32 0.0, %v5059
      %5061 = vmatprep.mubr.f32.mxu0 0.0
      %5062 = vmatmul.mubr.f32.gmra.mrb[0].mxu0 %v4881
      %v5063 = vpop.f32.mrb[0].mxu0
      %v5064 = vadd.f32 0.0, %v5063
      %v5065 = vpop.f32.mrb[0].mxu0
      %v5066 = vadd.f32 0.0, %v5065
      %5067 = vdwg.mxu0
      %v5068 = vadd.f32 %v4826, %v5046
      %v5069 = vadd.f32 %v4827, %v5048
      %v5070 = vadd.f32 %v4828, %v5052
      %v5071 = vadd.f32 %v4829, %v5054
      %v5072 = vadd.f32 %v4830, %v5058
      %v5073 = vadd.f32 %v4831, %v5060
      %v5074 = vadd.f32 %v4832, %v5064
      %v5075 = vadd.f32 %v4833, %v5066
      %v5076 = vld [vmem:[%s4] sm:$0xff]
      %v5077 = vld [vmem:[%s4 + $0x8] sm:$0xff]
      %v5078 = vld [vmem:[%s4 + $0x10] sm:$0xff]
      %v5079 = vld [vmem:[%s4 + $0x18] sm:$0xff]
      %5081 = vset.pattern.permute.xlu0 0
      %5082 = vperm.xlu0 %5081, %v5076
      %v5083 = vpop.permute.xlu0 %5082
      %5086 = vset.pattern.permute.xlu0 0
      %5087 = vperm.xlu0 %5086, %v5077
      %v5088 = vpop.permute.xlu0 %5087
      %5091 = vset.pattern.permute.xlu0 0
      %5092 = vperm.xlu0 %5091, %v5078
      %v5093 = vpop.permute.xlu0 %5092
      %5096 = vset.pattern.permute.xlu0 0
      %5097 = vperm.xlu0 %5096, %v5079
      %v5098 = vpop.permute.xlu0 %5097
      %v5100 = vadd.f32 %v5068, %v5083
      %v5101 = vadd.f32 %v5069, %v5083
      %v5102 = vadd.f32 %v5070, %v5088
      %v5103 = vadd.f32 %v5071, %v5088
      %v5104 = vadd.f32 %v5072, %v5093
      %v5105 = vadd.f32 %v5073, %v5093
      %v5106 = vadd.f32 %v5074, %v5098
      %v5107 = vadd.f32 %v5075, %v5098
      %v5108 = vmax.f32 %v5100, 0.0
      %v5109 = vmax.f32 %v5101, 0.0
      %v5110 = vmax.f32 %v5102, 0.0
      %v5111 = vmax.f32 %v5103, 0.0
      %v5112 = vmax.f32 %v5104, 0.0
      %v5113 = vmax.f32 %v5105, 0.0
      %v5114 = vmax.f32 %v5106, 0.0
      %v5115 = vmax.f32 %v5107, 0.0
      %5116 = vst [vmem:[%s224] sm:$0xff] %v5108
      %5117 = vst [vmem:[%s224 + $0x8] sm:$0xff] %v5109
      %5118 = vst [vmem:[%s224 + $0x10] sm:$0xff] %v5110
      %5119 = vst [vmem:[%s224 + $0x18] sm:$0xff] %v5111
      %5120 = vst [vmem:[%s224 + $0x20] sm:$0xff] %v5112
      %5121 = vst [vmem:[%s224 + $0x28] sm:$0xff] %v5113
      %5122 = vst [vmem:[%s224 + $0x30] sm:$0xff] %v5114
      %5123 = vst [vmem:[%s224 + $0x38] sm:$0xff] %v5115
      %p5124 = scmp.lt.s32.totalorder %s16, 1
      %s5125 = scalar_select %p5124, %s16, 1
      %s5126 = smul.addr %s5125, 8
      %s5127 = smul.addr %s5126, 8
      %s5128 = scalar_lea.vmem %s5, %s5127
      // Predicated region
      $region41: #{downsampling1_forward.1} parent=39 // pred_check
        %p5129 = pneg %p144
      $region42: #{downsampling1_forward.1} parent=39 // pred_check_branch
        %5131 = sbr.rel (%p5129) target = $region44
      $region43: #{downsampling1_forward.1} parent=39 // pred_region
        _
      $region44: #{downsampling1_forward.1} parent=39 // pred_fallthru
        _
    $region40: #{downsampling1_forward.1} parent=5 // pred_fallthru
      _
    %p5132 = scmp.le.s32.totalorder 2, %s11
    // Predicated region
    $region45: #{downsampling1_forward.1} parent=5 // pred_check
      %p5133 = pneg %p5132
    $region46: #{downsampling1_forward.1} parent=5 // pred_check_branch
      %5135 = sbr.rel (%p5133) target = $region48
    $region47: #{downsampling1_forward.1} parent=5 // pred_region
      %s5136 = ssub.s32 %s11, 2
      // Predicated region
      $region49: #{downsampling1_forward.1} parent=47 // pred_check
        %p5137 = pneg %p150
      $region50: #{downsampling1_forward.1} parent=47 // pred_check_branch
        %5139 = sbr.rel (%p5137) target = $region52
      $region51: #{downsampling1_forward.1} parent=47 // pred_region
        %p5140 = scmp.lt.s32.totalorder %s17, 1
        %s5141 = scalar_select %p5140, %s17, 1
        %s5142 = smul.addr %s5141, 8
        %s5143 = smul.addr %s5142, 8
        %s5144 = scalar_lea.vmem %s5, %s5143
      $region52: #{downsampling1_forward.1} parent=47 // pred_fallthru
        _
    $region48: #{downsampling1_forward.1} parent=5 // pred_fallthru
      _
  $region6: #{downsampling1_forward.1} parent=0 // loop_footer
    %s15 = sadd.s32 1, %s11
  $region7: #{downsampling1_forward.1} parent=0 // loop_footer_branch
    %10 = sbr.rel target = $region3
  $region8: #{downsampling1_forward.1} parent=0 // loop_exit
    _

</llo_original>
